<compile_context>
chip_gen: v7x
topology: tpu7x:2x2x1
jax: 0.10.0
libtpu: 0.0.40
codegen_flags: <defaults>
</compile_context>

<pallas_src>
import functools

import jax
import jax.numpy as jnp
import numpy as np
from jax.experimental import pallas as pl
from jax.experimental.pallas import tpu as pltpu

EPS = 1e-5                 # nn.BatchNorm2d default eps
NEG_SLOPE = 0.01           # nn.LeakyReLU() default negative_slope
MXU_DTYPE = jnp.bfloat16   # matmul / prologue dtype (accumulation stays f32)


def _vmem_limit_bytes():
    """~70% of physical VMEM: ~90 MiB on v5e/v6e (128 MiB), ~45 MiB on v7x (64 MiB)."""
    try:
        return int(pltpu.get_tpu_info().vmem_capacity_bytes * 0.70)
    except Exception:
        return 48 * 1024 * 1024


def _pick_tile_h(H, W, c_max, target_bytes=2 << 20):
    """Largest divisor of H whose bf16 input window (T+4, W+2, c_max) is <= target."""
    best = 1
    for d in range(1, H + 1):
        if H % d == 0 and (d + 4) * (W + 2) * c_max * 2 <= target_bytes:
            best = d
    return best


# ---------------------------------------------------------------------------
# Pallas kernels
# ---------------------------------------------------------------------------
def bn_stats_kernel(x_ref, out_ref, *, chunk, n_total, need_mask):
    """Per-chunk partial (sum, sumsq); each grid step writes its own slot."""
    x = x_ref[...]
    if need_mask:  # tail block of a cdiv grid: zero the out-of-range rows
        i = pl.program_id(0)
        rows = jax.lax.broadcasted_iota(jnp.int32, x.shape, 0)
        x = jnp.where(rows + i * chunk < n_total, x, 0.0)
    out_ref[...] = jnp.concatenate(
        [jnp.sum(x, axis=0, keepdims=True),
         jnp.sum(x * x, axis=0, keepdims=True)], axis=0)[None]


def _bn_lrelu_mask(a, scale_ref, shift_ref, t, tile_h, row_off, H, W):
    """Folded BN + LeakyReLU (bf16 VPU math), then re-zero the conv zero-pad
    positions.  The column mask is always needed; the row mask only bites on the
    first/last row tile and is folded into the same single select."""
    C = a.shape[-1]
    a = a * scale_ref[...].reshape(1, 1, C) + shift_ref[...].reshape(1, 1, C)
    a = jnp.where(a >= 0, a, NEG_SLOPE * a)
    rows = jax.lax.broadcasted_iota(jnp.int32, (a.shape[0], a.shape[1], 1), 0)
    cols = jax.lax.broadcasted_iota(jnp.int32, (a.shape[0], a.shape[1], 1), 1)
    g = t * tile_h + rows - row_off                      # global (unpadded) row
    valid = (g >= 0) & (g < H) & (cols >= 1) & (cols <= W)
    return jnp.where(valid, a, jnp.zeros_like(a))


def _conv3x3_rows(a, w_ref, rows_out, W):
    """3x3 conv of an already activated + zero-padded window a: (rows_out+2, W+2, C)
    as three bf16 MXU matmuls with kx merged into the contraction dim (K = 3*C)."""
    C = a.shape[-1]
    # one width-im2col slab (3x fewer materializations than 9 per-tap patches)
    p = jnp.concatenate([a[:, 0:W, :], a[:, 1:W + 1, :], a[:, 2:W + 2, :]], axis=-1)
    p = p.reshape((rows_out + 2) * W, 3 * C)
    acc = jnp.zeros((rows_out * W, w_ref.shape[-1]), jnp.float32)
    for ky in range(3):
        acc = acc + jnp.dot(p[ky * W:(ky + rows_out) * W, :], w_ref[ky],
                            preferred_element_type=jnp.float32)
    return acc


def conv1_kernel(xw_ref, w_ref, s_ref, sh_ref, h1_ref, mom_ref,
                 *, tile_h, H, W, chid):
    """BN1 + LeakyReLU + conv1(3x3) on one (T+4, W+2, Cin) input window.  Writes the
    width-padded (T+2, W+2, Ch) output window conv2 needs and accumulates per-batch
    BN2 moments (conv1 bias dropped: cancelled by BN2's mean subtraction)."""
    t = pl.program_id(1)
    a = _bn_lrelu_mask(xw_ref[0, 0], s_ref, sh_ref, t, tile_h, row_off=2, H=H, W=W)
    acc = _conv3x3_rows(a, w_ref, rows_out=tile_h + 2, W=W)      # f32

    # width-padded bf16 window -> no XLA-side jnp.pad(h1) HBM round-trip
    h = acc.reshape(tile_h + 2, W, chid).astype(h1_ref.dtype)
    zc = jnp.zeros((tile_h + 2, 1, chid), h1_ref.dtype)
    h1_ref[...] = jnp.concatenate([zc, h, zc], axis=1)[None, None]

    # BN2 moments from the rows this step "owns" (each h1 row counted exactly once);
    # per-batch accumulator keeps the b axis megacore-parallel.
    own = acc[W:(tile_h + 1) * W, :]
    @pl.when(t == 0)
    def _init():
        mom_ref[...] = jnp.zeros_like(mom_ref)
    mom_ref[...] += jnp.concatenate(
        [jnp.sum(own, axis=0, keepdims=True),
         jnp.sum(own * own, axis=0, keepdims=True)], axis=0)[None]


def conv2_kernel(hw_ref, xw_ref, w_ref, wb_ref, s_ref, sh_ref, bias_ref, o_ref,
                 *, tile_h, H, W, cin, cout):
    """BN2 + LeakyReLU + conv2(3x3) + fused 1x1 bypass conv + (b2 + bb) bias."""
    t = pl.program_id(1)
    a = _bn_lrelu_mask(hw_ref[0, 0], s_ref, sh_ref, t, tile_h, row_off=1, H=H, W=W)
    acc = _conv3x3_rows(a, w_ref, rows_out=tile_h, W=W)          # (T*W, cout) f32
    # fused bypass: one extra MXU matmul on the raw-x interior of the same window
    xb = xw_ref[0, 0][2:2 + tile_h, 1:1 + W, :].reshape(tile_h * W, cin)
    acc = acc + jnp.dot(xb, wb_ref[...], preferred_element_type=jnp.float32)
    acc = acc + bias_ref[...]
    o_ref[...] = acc.reshape(1, tile_h, W, cout).astype(o_ref.dtype)


# ---------------------------------------------------------------------------
# Host-side helpers
# ---------------------------------------------------------------------------
def _fold_bn(mom, gamma, beta, count):
    """(sum, sumsq) -> folded per-channel scale/shift so BN is a single FMA."""
    mean = mom[0:1] / count
    var = jnp.maximum(mom[1:2] / count - mean * mean, 0.0)
    inv = jax.lax.rsqrt(var + EPS)
    scale = gamma * inv
    shift = beta - mean * scale
    return scale, shift


def init_params(key, input_nc, hidden_nc, output_nc):
    """Deterministic synthetic weights. Conv weights stored HWIO."""
    k1, k2, k3, k4, k5, k6 = jax.random.split(key, 6)
    return {
        "w1": 0.1 * jax.random.normal(k1, (3, 3, input_nc, hidden_nc), jnp.float32),
        "b1": 0.1 * jax.random.normal(k2, (1, hidden_nc), jnp.float32),
        "w2": 0.1 * jax.random.normal(k3, (3, 3, hidden_nc, output_nc), jnp.float32),
        "b2": 0.1 * jax.random.normal(k4, (1, output_nc), jnp.float32),
        "wb": 0.1 * jax.random.normal(k5, (input_nc, output_nc), jnp.float32),
        "bb": 0.1 * jax.random.normal(k6, (1, output_nc), jnp.float32),
        # nn.BatchNorm2d default affine init
        "bn1_gamma": jnp.ones((1, input_nc), jnp.float32),
        "bn1_beta": jnp.zeros((1, input_nc), jnp.float32),
        "bn2_gamma": jnp.ones((1, hidden_nc), jnp.float32),
        "bn2_beta": jnp.zeros((1, hidden_nc), jnp.float32),
    }


@functools.partial(jax.jit, static_argnames=("tile_h",))
def res_block_forward(x_nchw, params, *, tile_h=None):
    B, Cin, H, W = x_nchw.shape
    Ch = params["w1"].shape[-1]
    Cout = params["w2"].shape[-1]
    N = B * H * W
    vmem = _vmem_limit_bytes()

    if tile_h is None:
        tile_h = _pick_tile_h(H, W, max(Cin, Ch, Cout))
    assert H % tile_h == 0, "tile_h must divide H"
    T = tile_h
    nT = H // T

    x_nhwc = jnp.transpose(x_nchw, (0, 2, 3, 1)).astype(jnp.float32)

    # ---- pass 1: BN1 per-channel moments (parallel partial sums, host reduce) ----
    x_flat = x_nhwc.reshape(N, Cin)
    max_chunk = max(8, min(N, (4 << 20) // (Cin * 4)) // 8 * 8)
    chunk = N if N <= max_chunk else max_chunk
    grid1 = pl.cdiv(N, chunk)
    need_mask = (N % chunk) != 0
    partials = pl.pallas_call(
        functools.partial(bn_stats_kernel, chunk=chunk, n_total=N,
                          need_mask=need_mask),
        grid=(grid1,),
        in_specs=[pl.BlockSpec((chunk, Cin), lambda i: (i, 0))],
        out_specs=pl.BlockSpec((1, 2, Cin), lambda i: (i, 0, 0)),
        out_shape=jax.ShapeDtypeStruct((grid1, 2, Cin), jnp.float32),
        compiler_params=pltpu.CompilerParams(
            dimension_semantics=("parallel",), vmem_limit_bytes=vmem),
    )(x_flat)
    mom1 = jnp.sum(partials, axis=0)
    scale1, shift1 = _fold_bn(mom1, params["bn1_gamma"], params["bn1_beta"], N)

    # ---- pass 2: BN1+LReLU -> conv1(3x3), per-batch BN2 moment accumulation ------
    # Overlapping row-window layout: one block per grid step, no halo stream/concat.
    x_p = jnp.pad(x_nhwc.astype(MXU_DTYPE), ((0, 0), (2, 2), (1, 1), (0, 0)))
    x_win = jnp.stack([x_p[:, t * T:t * T + T + 4] for t in range(nT)], axis=1)
    w1 = params["w1"].reshape(3, 3 * Cin, Ch).astype(MXU_DTYPE)   # (ky, kx*cin, ch)
    s1 = scale1.astype(MXU_DTYPE)
    t1 = shift1.astype(MXU_DTYPE)
    kernel1 = functools.partial(conv1_kernel, tile_h=T, H=H, W=W, chid=Ch)
    h1_win, mom2p = pl.pallas_call(
        kernel1,
        grid=(B, nT),
        in_specs=[
            pl.BlockSpec((1, 1, T + 4, W + 2, Cin), lambda b, t: (b, t, 0, 0, 0)),
            pl.BlockSpec((3, 3 * Cin, Ch), lambda b, t: (0, 0, 0)),
            pl.BlockSpec((1, Cin), lambda b, t: (0, 0)),
            pl.BlockSpec((1, Cin), lambda b, t: (0, 0)),
        ],
        out_specs=(
            pl.BlockSpec((1, 1, T + 2, W + 2, Ch), lambda b, t: (b, t, 0, 0, 0)),
            pl.BlockSpec((1, 2, Ch), lambda b, t: (b, 0, 0)),
        ),
        out_shape=(
            jax.ShapeDtypeStruct((B, nT, T + 2, W + 2, Ch), MXU_DTYPE),
            jax.ShapeDtypeStruct((B, 2, Ch), jnp.float32),
        ),
        compiler_params=pltpu.CompilerParams(
            dimension_semantics=("parallel", "arbitrary"),
            vmem_limit_bytes=vmem),
    )(x_win, w1, s1, t1)
    mom2 = jnp.sum(mom2p, axis=0)
    scale2, shift2 = _fold_bn(mom2, params["bn2_gamma"], params["bn2_beta"], N)

    # ---- pass 3: BN2+LReLU -> conv2(3x3) + fused 1x1 bypass + biases --------------
    w2 = params["w2"].reshape(3, 3 * Ch, Cout).astype(MXU_DTYPE)
    wb = params["wb"].astype(MXU_DTYPE)
    bias = (params["b2"] + params["bb"]).astype(jnp.float32)
    s2 = scale2.astype(MXU_DTYPE)
    t2 = shift2.astype(MXU_DTYPE)
    kernel2 = functools.partial(conv2_kernel, tile_h=T, H=H, W=W, cin=Cin, cout=Cout)
    out_nhwc = pl.pallas_call(
        kernel2,
        grid=(B, nT),
        in_specs=[
            pl.BlockSpec((1, 1, T + 2, W + 2, Ch), lambda b, t: (b, t, 0, 0, 0)),
            pl.BlockSpec((1, 1, T + 4, W + 2, Cin), lambda b, t: (b, t, 0, 0, 0)),
            pl.BlockSpec((3, 3 * Ch, Cout), lambda b, t: (0, 0, 0)),
            pl.BlockSpec((Cin, Cout), lambda b, t: (0, 0)),
            pl.BlockSpec((1, Ch), lambda b, t: (0, 0)),
            pl.BlockSpec((1, Ch), lambda b, t: (0, 0)),
            pl.BlockSpec((1, Cout), lambda b, t: (0, 0)),
        ],
        out_specs=pl.BlockSpec((1, T, W, Cout), lambda b, t: (b, t, 0, 0)),
        out_shape=jax.ShapeDtypeStruct((B, H, W, Cout), jnp.float32),
        compiler_params=pltpu.CompilerParams(
            dimension_semantics=("parallel", "parallel"),
            vmem_limit_bytes=vmem),
    )(h1_win, x_win, w2, wb, s2, t2, bias)

    return jnp.transpose(out_nhwc, (0, 3, 1, 2))   # back to PyTorch NCHW


# ---------------------------------------------------------------------------
# Pure-JAX reference (f32, XLA convs) for a sanity check
# ---------------------------------------------------------------------------
def _leaky_relu(x):
    return jnp.where(x >= 0, x, NEG_SLOPE * x)


def reference_forward(x_nchw, params):
    def bn(x, g, b):
        mean = jnp.mean(x, axis=(0, 2, 3), keepdims=True)
        var = jnp.mean((x - mean) ** 2, axis=(0, 2, 3), keepdims=True)
        return ((x - mean) / jnp.sqrt(var + EPS) * g.reshape(1, -1, 1, 1)
                + b.reshape(1, -1, 1, 1))

    def conv(x, w_hwio, b, pad):
        y = jax.lax.conv_general_dilated(
            x, w_hwio, (1, 1), [(pad, pad), (pad, pad)],
            dimension_numbers=("NCHW", "HWIO", "NCHW"),
            precision=jax.lax.Precision.HIGHEST)
        return y + b.reshape(1, -1, 1, 1)

    h = conv(_leaky_relu(bn(x_nchw, params["bn1_gamma"], params["bn1_beta"])),
             params["w1"], params["b1"], 1)
    h = conv(_leaky_relu(bn(h, params["bn2_gamma"], params["bn2_beta"])),
             params["w2"], params["b2"], 1)
    Cin, Cout = params["wb"].shape
    sc = conv(x_nchw, params["wb"].reshape(1, 1, Cin, Cout), params["bb"], 0)
    return h + sc


if __name__ == "__main__":
    key = jax.random.PRNGKey(0)
    kx_, kp_ = jax.random.split(key)

    B, Cin, H, W = 2, 4, 16, 16
    hidden_nc = 8        # ResBlock default: hidden_nc=None -> output_nc
    output_nc = 8

    x = jax.random.normal(kx_, (B, Cin, H, W), jnp.float32)
    params = init_params(kp_, Cin, hidden_nc, output_nc)

    out = jax.block_until_ready(res_block_forward(x, params))
    assert out.shape == (B, output_nc, H, W), out.shape

    ref = jax.block_until_ready(reference_forward(x, params))
    # bf16 MXU operands + bf16 BN/LReLU prologue vs f32 reference -> loose tolerance
    np.testing.assert_allclose(np.asarray(out), np.asarray(ref), rtol=6e-2, atol=6e-2)

    print("KERNEL_OK")
</pallas_src>

<mosaic_0001>
module attributes {stable_mosaic.version = 11 : i64} {
  func.func @bn_stats_kernel(%arg0: i32, %arg1: memref<512x4xf32, #tpu.memory_space<vmem>>, %arg2: memref<1x2x4xf32, #tpu.memory_space<vmem>>) attributes {dimension_semantics = [#tpu.dimension_semantics<parallel>], iteration_bounds = array<i64: 1>, scalar_prefetch = 0 : i64, scratch_operands = 0 : i64, tpu.core_type = #tpu.core_type<tc>, window_params = [{transform_indices = @transform_0, window_bounds = array<i64: 512, 4>}, {transform_indices = @transform_1, window_bounds = array<i64: 1, 2, 4>}]} {
    %c0 = arith.constant 0 : index
    %c0_0 = arith.constant 0 : index
    %0 = vector.load %arg1[%c0, %c0_0] : memref<512x4xf32, #tpu.memory_space<vmem>>, vector<512x4xf32>
    %cst = arith.constant dense<0.000000e+00> : vector<4xf32>
    %1 = vector.multi_reduction <add>, %0, %cst [0] : vector<512x4xf32> to vector<4xf32>
    %2 = vector.shape_cast %1 : vector<4xf32> to vector<1x4xf32>
    %3 = arith.mulf %0, %0 : vector<512x4xf32>
    %cst_1 = arith.constant dense<0.000000e+00> : vector<4xf32>
    %4 = vector.multi_reduction <add>, %3, %cst_1 [0] : vector<512x4xf32> to vector<4xf32>
    %5 = vector.shape_cast %4 : vector<4xf32> to vector<1x4xf32>
    %6 = tpu.concatenate %2, %5 in 0 : vector<1x4xf32>, vector<1x4xf32> -> vector<2x4xf32>
    %7 = vector.shape_cast %6 : vector<2x4xf32> to vector<1x2x4xf32>
    %c0_2 = arith.constant 0 : index
    %c0_3 = arith.constant 0 : index
    %c0_4 = arith.constant 0 : index
    %8 = vector.load %arg2[%c0_2, %c0_3, %c0_4] : memref<1x2x4xf32, #tpu.memory_space<vmem>>, vector<1x2x4xf32>
    tpu.vector_store %arg2[%c0_2, %c0_3, %c0_4], %7 {strides = array<i32>} : memref<1x2x4xf32, #tpu.memory_space<vmem>>, vector<1x2x4xf32>,
    return
  }
  func.func @transform_0(%arg0: i32) -> (i32, i32) {
    %c0_i32 = arith.constant 0 : i32
    %c0_i32_0 = arith.constant 0 : i32
    return %arg0, %c0_i32 : i32, i32
  }
  func.func @transform_1(%arg0: i32) -> (i32, i32, i32) {
    %c0_i32 = arith.constant 0 : i32
    %c0_i32_0 = arith.constant 0 : i32
    %c0_i32_1 = arith.constant 0 : i32
    return %arg0, %c0_i32, %c0_i32_0 : i32, i32, i32
  }
}

module attributes {stable_mosaic.version = 11 : i64} {
  func.func @conv1_kernel(%arg0: i32, %arg1: i32, %arg2: memref<1x1x20x18x4xbf16, #tpu.memory_space<vmem>>, %arg3: memref<3x12x8xbf16, #tpu.memory_space<vmem>>, %arg4: memref<1x4xbf16, #tpu.memory_space<vmem>>, %arg5: memref<1x4xbf16, #tpu.memory_space<vmem>>, %arg6: memref<1x1x18x18x8xbf16, #tpu.memory_space<vmem>>, %arg7: memref<1x2x8xf32, #tpu.memory_space<vmem>>) attributes {dimension_semantics = [#tpu.dimension_semantics<parallel>, #tpu.dimension_semantics<arbitrary>], iteration_bounds = array<i64: 2, 1>, scalar_prefetch = 0 : i64, scratch_operands = 0 : i64, tpu.core_type = #tpu.core_type<tc>, window_params = [{transform_indices = @transform_0, window_bounds = array<i64: 1, 1, 20, 18, 4>}, {pipeline_mode = #tpu.pipeline_mode<synchronous>, transform_indices = @transform_1, window_bounds = array<i64: 3, 12, 8>}, {pipeline_mode = #tpu.pipeline_mode<synchronous>, transform_indices = @transform_2, window_bounds = array<i64: 1, 4>}, {pipeline_mode = #tpu.pipeline_mode<synchronous>, transform_indices = @transform_3, window_bounds = array<i64: 1, 4>}, {transform_indices = @transform_4, window_bounds = array<i64: 1, 1, 18, 18, 8>}, {transform_indices = @transform_5, window_bounds = array<i64: 1, 2, 8>}]} {
    %c0 = arith.constant 0 : index
    %c0_0 = arith.constant 0 : index
    %c0_1 = arith.constant 0 : index
    %c0_2 = arith.constant 0 : index
    %c0_3 = arith.constant 0 : index
    %0 = vector.load %arg2[%c0, %c0_0, %c0_1, %c0_2, %c0_3] : memref<1x1x20x18x4xbf16, #tpu.memory_space<vmem>>, vector<1x1x20x18x4xbf16>
    %1 = vector.shape_cast %0 : vector<1x1x20x18x4xbf16> to vector<20x18x4xbf16>
    %c0_4 = arith.constant 0 : index
    %c0_5 = arith.constant 0 : index
    %2 = vector.load %arg4[%c0_4, %c0_5] : memref<1x4xbf16, #tpu.memory_space<vmem>>, vector<1x4xbf16>
    %3 = vector.shape_cast %2 : vector<1x4xbf16> to vector<1x1x4xbf16>
    %4 = vector.broadcast %3 : vector<1x1x4xbf16> to vector<20x18x4xbf16>
    %5 = arith.mulf %1, %4 : vector<20x18x4xbf16>
    %c0_6 = arith.constant 0 : index
    %c0_7 = arith.constant 0 : index
    %6 = vector.load %arg5[%c0_6, %c0_7] : memref<1x4xbf16, #tpu.memory_space<vmem>>, vector<1x4xbf16>
    %7 = vector.shape_cast %6 : vector<1x4xbf16> to vector<1x1x4xbf16>
    %8 = vector.broadcast %7 : vector<1x1x4xbf16> to vector<20x18x4xbf16>
    %9 = arith.addf %5, %8 : vector<20x18x4xbf16>
    %cst = arith.constant 0.000000e+00 : bf16
    %10 = vector.broadcast %cst : bf16 to vector<20x18x4xbf16>
    %11 = arith.cmpf oge, %9, %10 : vector<20x18x4xbf16>
    %cst_8 = arith.constant 1.000980e-02 : bf16
    %12 = vector.broadcast %cst_8 : bf16 to vector<20x18x4xbf16>
    %13 = arith.mulf %12, %9 : vector<20x18x4xbf16>
    %14 = arith.select %11, %9, %13 : vector<20x18x4xi1>, vector<20x18x4xbf16>
    %15 = tpu.iota {dimensions = array<i32: 0>} : vector<20x18x1xi32>
    %16 = tpu.iota {dimensions = array<i32: 1>} : vector<20x18x1xi32>
    %c16_i32 = arith.constant 16 : i32
    %17 = arith.muli %arg1, %c16_i32 : i32
    %18 = vector.broadcast %17 : i32 to vector<20x18x1xi32>
    %19 = arith.addi %18, %15 : vector<20x18x1xi32>
    %c2_i32 = arith.constant 2 : i32
    %20 = vector.broadcast %c2_i32 : i32 to vector<20x18x1xi32>
    %21 = arith.subi %19, %20 : vector<20x18x1xi32>
    %c0_i32 = arith.constant 0 : i32
    %22 = vector.broadcast %c0_i32 : i32 to vector<20x18x1xi32>
    %23 = arith.cmpi sge, %21, %22 : vector<20x18x1xi32>
    %c16_i32_9 = arith.constant 16 : i32
    %24 = vector.broadcast %c16_i32_9 : i32 to vector<20x18x1xi32>
    %25 = arith.cmpi slt, %21, %24 : vector<20x18x1xi32>
    %26 = arith.andi %23, %25 : vector<20x18x1xi1>
    %c1_i32 = arith.constant 1 : i32
    %27 = vector.broadcast %c1_i32 : i32 to vector<20x18x1xi32>
    %28 = arith.cmpi sge, %16, %27 : vector<20x18x1xi32>
    %29 = arith.andi %26, %28 : vector<20x18x1xi1>
    %c16_i32_10 = arith.constant 16 : i32
    %30 = vector.broadcast %c16_i32_10 : i32 to vector<20x18x1xi32>
    %31 = arith.cmpi sle, %16, %30 : vector<20x18x1xi32>
    %32 = arith.andi %29, %31 : vector<20x18x1xi1>
    %cst_11 = arith.constant 0.000000e+00 : bf16
    %33 = vector.broadcast %cst_11 : bf16 to vector<20x18x4xbf16>
    %34 = vector.shape_cast %32 : vector<20x18x1xi1> to vector<20x18x1xi1>
    %35 = vector.broadcast %34 : vector<20x18x1xi1> to vector<20x18x4xi1>
    %36 = arith.select %35, %14, %33 : vector<20x18x4xi1>, vector<20x18x4xbf16>
    %37 = vector.extract_strided_slice %36 {offsets = [0, 0, 0], sizes = [20, 16, 4], strides = [1, 1, 1]} : vector<20x18x4xbf16> to vector<20x16x4xbf16>
    %38 = vector.extract_strided_slice %36 {offsets = [0, 1, 0], sizes = [20, 16, 4], strides = [1, 1, 1]} : vector<20x18x4xbf16> to vector<20x16x4xbf16>
    %39 = vector.extract_strided_slice %36 {offsets = [0, 2, 0], sizes = [20, 16, 4], strides = [1, 1, 1]} : vector<20x18x4xbf16> to vector<20x16x4xbf16>
    %40 = tpu.concatenate %37, %38, %39 in 2 : vector<20x16x4xbf16>, vector<20x16x4xbf16>, vector<20x16x4xbf16> -> vector<20x16x12xbf16>
    %41 = vector.shape_cast %40 : vector<20x16x12xbf16> to vector<320x12xbf16>
    %cst_12 = arith.constant 0.000000e+00 : f32
    %42 = vector.broadcast %cst_12 : f32 to vector<288x8xf32>
    %43 = vector.extract_strided_slice %41 {offsets = [0, 0], sizes = [288, 12], strides = [1, 1]} : vector<320x12xbf16> to vector<288x12xbf16>
    %c0_13 = arith.constant 0 : index
    %c0_14 = arith.constant 0 : index
    %c0_15 = arith.constant 0 : index
    %44 = vector.load %arg3[%c0_13, %c0_14, %c0_15] : memref<3x12x8xbf16, #tpu.memory_space<vmem>>, vector<1x12x8xbf16>
    %45 = vector.shape_cast %44 : vector<1x12x8xbf16> to vector<12x8xbf16>
    %cst_16 = arith.constant dense<0.000000e+00> : vector<288x8xf32>
    %46 = tpu.matmul %43, %45, %cst_16 {dimension_numbers = #tpu.dot_dimension_numbers<[1], [0], [0], [1], [0, 0, 1, 1], [], []>} : vector<288x12xbf16>, vector<12x8xbf16>, vector<288x8xf32> -> vector<288x8xf32>
    %47 = arith.addf %42, %46 : vector<288x8xf32>
    %48 = vector.extract_strided_slice %41 {offsets = [16, 0], sizes = [288, 12], strides = [1, 1]} : vector<320x12xbf16> to vector<288x12xbf16>
    %c1 = arith.constant 1 : index
    %c0_17 = arith.constant 0 : index
    %c0_18 = arith.constant 0 : index
    %49 = vector.load %arg3[%c1, %c0_17, %c0_18] : memref<3x12x8xbf16, #tpu.memory_space<vmem>>, vector<1x12x8xbf16>
    %50 = vector.shape_cast %49 : vector<1x12x8xbf16> to vector<12x8xbf16>
    %cst_19 = arith.constant dense<0.000000e+00> : vector<288x8xf32>
    %51 = tpu.matmul %48, %50, %cst_19 {dimension_numbers = #tpu.dot_dimension_numbers<[1], [0], [0], [1], [0, 0, 1, 1], [], []>} : vector<288x12xbf16>, vector<12x8xbf16>, vector<288x8xf32> -> vector<288x8xf32>
    %52 = arith.addf %47, %51 : vector<288x8xf32>
    %53 = vector.extract_strided_slice %41 {offsets = [32, 0], sizes = [288, 12], strides = [1, 1]} : vector<320x12xbf16> to vector<288x12xbf16>
    %c2 = arith.constant 2 : index
    %c0_20 = arith.constant 0 : index
    %c0_21 = arith.constant 0 : index
    %54 = vector.load %arg3[%c2, %c0_20, %c0_21] : memref<3x12x8xbf16, #tpu.memory_space<vmem>>, vector<1x12x8xbf16>
    %55 = vector.shape_cast %54 : vector<1x12x8xbf16> to vector<12x8xbf16>
    %cst_22 = arith.constant dense<0.000000e+00> : vector<288x8xf32>
    %56 = tpu.matmul %53, %55, %cst_22 {dimension_numbers = #tpu.dot_dimension_numbers<[1], [0], [0], [1], [0, 0, 1, 1], [], []>} : vector<288x12xbf16>, vector<12x8xbf16>, vector<288x8xf32> -> vector<288x8xf32>
    %57 = arith.addf %52, %56 : vector<288x8xf32>
    %58 = vector.shape_cast %57 : vector<288x8xf32> to vector<18x16x8xf32>
    %59 = arith.truncf %58 : vector<18x16x8xf32> to vector<18x16x8xbf16>
    %cst_23 = arith.constant 0.000000e+00 : bf16
    %60 = vector.broadcast %cst_23 : bf16 to vector<18x1x8xbf16>
    %61 = tpu.concatenate %60, %59, %60 in 1 : vector<18x1x8xbf16>, vector<18x16x8xbf16>, vector<18x1x8xbf16> -> vector<18x18x8xbf16>
    %62 = vector.shape_cast %61 : vector<18x18x8xbf16> to vector<1x1x18x18x8xbf16>
    %c0_24 = arith.constant 0 : index
    %c0_25 = arith.constant 0 : index
    %c0_26 = arith.constant 0 : index
    %c0_27 = arith.constant 0 : index
    %c0_28 = arith.constant 0 : index
    %63 = vector.load %arg6[%c0_24, %c0_25, %c0_26, %c0_27, %c0_28] : memref<1x1x18x18x8xbf16, #tpu.memory_space<vmem>>, vector<1x1x18x18x8xbf16>
    tpu.vector_store %arg6[%c0_24, %c0_25, %c0_26, %c0_27, %c0_28], %62 {strides = array<i32>} : memref<1x1x18x18x8xbf16, #tpu.memory_space<vmem>>, vector<1x1x18x18x8xbf16>,
    %64 = vector.extract_strided_slice %57 {offsets = [16, 0], sizes = [256, 8], strides = [1, 1]} : vector<288x8xf32> to vector<256x8xf32>
    %c0_i32_29 = arith.constant 0 : i32
    %65 = arith.cmpi eq, %arg1, %c0_i32_29 : i32
    %66 = arith.extui %65 : i1 to i32
    %c0_i32_30 = arith.constant 0 : i32
    %67 = arith.cmpi ne, %66, %c0_i32_30 : i32
    scf.if %67 {
      %cst_39 = arith.constant 0.000000e+00 : f32
      %78 = vector.broadcast %cst_39 : f32 to vector<1x2x8xf32>
      %c0_40 = arith.constant 0 : index
      %c0_41 = arith.constant 0 : index
      %c0_42 = arith.constant 0 : index
      %79 = vector.load %arg7[%c0_40, %c0_41, %c0_42] : memref<1x2x8xf32, #tpu.memory_space<vmem>>, vector<1x2x8xf32>
      tpu.vector_store %arg7[%c0_40, %c0_41, %c0_42], %78 {strides = array<i32>} : memref<1x2x8xf32, #tpu.memory_space<vmem>>, vector<1x2x8xf32>,
    } else {
    }
    %c0_31 = arith.constant 0 : index
    %c0_32 = arith.constant 0 : index
    %c0_33 = arith.constant 0 : index
    %68 = vector.load %arg7[%c0_31, %c0_32, %c0_33] : memref<1x2x8xf32, #tpu.memory_space<vmem>>, vector<1x2x8xf32>
    %cst_34 = arith.constant dense<0.000000e+00> : vector<8xf32>
    %69 = vector.multi_reduction <add>, %64, %cst_34 [0] : vector<256x8xf32> to vector<8xf32>
    %70 = vector.shape_cast %69 : vector<8xf32> to vector<1x8xf32>
    %71 = arith.mulf %64, %64 : vector<256x8xf32>
    %cst_35 = arith.constant dense<0.000000e+00> : vector<8xf32>
    %72 = vector.multi_reduction <add>, %71, %cst_35 [0] : vector<256x8xf32> to vector<8xf32>
    %73 = vector.shape_cast %72 : vector<8xf32> to vector<1x8xf32>
    %74 = tpu.concatenate %70, %73 in 0 : vector<1x8xf32>, vector<1x8xf32> -> vector<2x8xf32>
    %75 = vector.shape_cast %74 : vector<2x8xf32> to vector<1x2x8xf32>
    %76 = arith.addf %68, %75 : vector<1x2x8xf32>
    %c0_36 = arith.constant 0 : index
    %c0_37 = arith.constant 0 : index
    %c0_38 = arith.constant 0 : index
    %77 = vector.load %arg7[%c0_36, %c0_37, %c0_38] : memref<1x2x8xf32, #tpu.memory_space<vmem>>, vector<1x2x8xf32>
    tpu.vector_store %arg7[%c0_36, %c0_37, %c0_38], %76 {strides = array<i32>} : memref<1x2x8xf32, #tpu.memory_space<vmem>>, vector<1x2x8xf32>,
    return
  }
  func.func @transform_0(%arg0: i32, %arg1: i32) -> (i32, i32, i32, i32, i32) {
    %c0_i32 = arith.constant 0 : i32
    %c0_i32_0 = arith.constant 0 : i32
    %c0_i32_1 = arith.constant 0 : i32
    %c0_i32_2 = arith.constant 0 : i32
    return %arg0, %arg1, %c0_i32, %c0_i32_0, %c0_i32_1 : i32, i32, i32, i32, i32
  }
  func.func @transform_1(%arg0: i32, %arg1: i32) -> (i32, i32, i32) {
    %c0_i32 = arith.constant 0 : i32
    %c0_i32_0 = arith.constant 0 : i32
    %c0_i32_1 = arith.constant 0 : i32
    %c0_i32_2 = arith.constant 0 : i32
    return %c0_i32, %c0_i32_0, %c0_i32_1 : i32, i32, i32
  }
  func.func @transform_2(%arg0: i32, %arg1: i32) -> (i32, i32) {
    %c0_i32 = arith.constant 0 : i32
    %c0_i32_0 = arith.constant 0 : i32
    %c0_i32_1 = arith.constant 0 : i32
    return %c0_i32, %c0_i32_0 : i32, i32
  }
  func.func @transform_3(%arg0: i32, %arg1: i32) -> (i32, i32) {
    %c0_i32 = arith.constant 0 : i32
    %c0_i32_0 = arith.constant 0 : i32
    %c0_i32_1 = arith.constant 0 : i32
    return %c0_i32, %c0_i32_0 : i32, i32
  }
  func.func @transform_4(%arg0: i32, %arg1: i32) -> (i32, i32, i32, i32, i32) {
    %c0_i32 = arith.constant 0 : i32
    %c0_i32_0 = arith.constant 0 : i32
    %c0_i32_1 = arith.constant 0 : i32
    %c0_i32_2 = arith.constant 0 : i32
    return %arg0, %arg1, %c0_i32, %c0_i32_0, %c0_i32_1 : i32, i32, i32, i32, i32
  }
  func.func @transform_5(%arg0: i32, %arg1: i32) -> (i32, i32, i32) {
    %c0_i32 = arith.constant 0 : i32
    %c0_i32_0 = arith.constant 0 : i32
    %c0_i32_1 = arith.constant 0 : i32
    return %arg0, %c0_i32, %c0_i32_0 : i32, i32, i32
  }
}

module attributes {stable_mosaic.version = 11 : i64} {
  func.func @conv2_kernel(%arg0: i32, %arg1: i32, %arg2: memref<1x1x18x18x8xbf16, #tpu.memory_space<vmem>>, %arg3: memref<1x1x20x18x4xbf16, #tpu.memory_space<vmem>>, %arg4: memref<3x24x8xbf16, #tpu.memory_space<vmem>>, %arg5: memref<4x8xbf16, #tpu.memory_space<vmem>>, %arg6: memref<1x8xbf16, #tpu.memory_space<vmem>>, %arg7: memref<1x8xbf16, #tpu.memory_space<vmem>>, %arg8: memref<1x8xf32, #tpu.memory_space<vmem>>, %arg9: memref<1x16x16x8xf32, #tpu.memory_space<vmem>>) attributes {dimension_semantics = [#tpu.dimension_semantics<parallel>, #tpu.dimension_semantics<parallel>], iteration_bounds = array<i64: 2, 1>, scalar_prefetch = 0 : i64, scratch_operands = 0 : i64, tpu.core_type = #tpu.core_type<tc>, window_params = [{transform_indices = @transform_0, window_bounds = array<i64: 1, 1, 18, 18, 8>}, {transform_indices = @transform_1, window_bounds = array<i64: 1, 1, 20, 18, 4>}, {pipeline_mode = #tpu.pipeline_mode<synchronous>, transform_indices = @transform_2, window_bounds = array<i64: 3, 24, 8>}, {pipeline_mode = #tpu.pipeline_mode<synchronous>, transform_indices = @transform_3, window_bounds = array<i64: 4, 8>}, {pipeline_mode = #tpu.pipeline_mode<synchronous>, transform_indices = @transform_4, window_bounds = array<i64: 1, 8>}, {pipeline_mode = #tpu.pipeline_mode<synchronous>, transform_indices = @transform_5, window_bounds = array<i64: 1, 8>}, {pipeline_mode = #tpu.pipeline_mode<synchronous>, transform_indices = @transform_6, window_bounds = array<i64: 1, 8>}, {transform_indices = @transform_7, window_bounds = array<i64: 1, 16, 16, 8>}]} {
    %c0 = arith.constant 0 : index
    %c0_0 = arith.constant 0 : index
    %c0_1 = arith.constant 0 : index
    %c0_2 = arith.constant 0 : index
    %c0_3 = arith.constant 0 : index
    %0 = vector.load %arg2[%c0, %c0_0, %c0_1, %c0_2, %c0_3] : memref<1x1x18x18x8xbf16, #tpu.memory_space<vmem>>, vector<1x1x18x18x8xbf16>
    %1 = vector.shape_cast %0 : vector<1x1x18x18x8xbf16> to vector<18x18x8xbf16>
    %c0_4 = arith.constant 0 : index
    %c0_5 = arith.constant 0 : index
    %2 = vector.load %arg6[%c0_4, %c0_5] : memref<1x8xbf16, #tpu.memory_space<vmem>>, vector<1x8xbf16>
    %3 = vector.shape_cast %2 : vector<1x8xbf16> to vector<1x1x8xbf16>
    %4 = vector.broadcast %3 : vector<1x1x8xbf16> to vector<18x18x8xbf16>
    %5 = arith.mulf %1, %4 : vector<18x18x8xbf16>
    %c0_6 = arith.constant 0 : index
    %c0_7 = arith.constant 0 : index
    %6 = vector.load %arg7[%c0_6, %c0_7] : memref<1x8xbf16, #tpu.memory_space<vmem>>, vector<1x8xbf16>
    %7 = vector.shape_cast %6 : vector<1x8xbf16> to vector<1x1x8xbf16>
    %8 = vector.broadcast %7 : vector<1x1x8xbf16> to vector<18x18x8xbf16>
    %9 = arith.addf %5, %8 : vector<18x18x8xbf16>
    %cst = arith.constant 0.000000e+00 : bf16
    %10 = vector.broadcast %cst : bf16 to vector<18x18x8xbf16>
    %11 = arith.cmpf oge, %9, %10 : vector<18x18x8xbf16>
    %cst_8 = arith.constant 1.000980e-02 : bf16
    %12 = vector.broadcast %cst_8 : bf16 to vector<18x18x8xbf16>
    %13 = arith.mulf %12, %9 : vector<18x18x8xbf16>
    %14 = arith.select %11, %9, %13 : vector<18x18x8xi1>, vector<18x18x8xbf16>
    %15 = tpu.iota {dimensions = array<i32: 0>} : vector<18x18x1xi32>
    %16 = tpu.iota {dimensions = array<i32: 1>} : vector<18x18x1xi32>
    %c16_i32 = arith.constant 16 : i32
    %17 = arith.muli %arg1, %c16_i32 : i32
    %18 = vector.broadcast %17 : i32 to vector<18x18x1xi32>
    %19 = arith.addi %18, %15 : vector<18x18x1xi32>
    %c1_i32 = arith.constant 1 : i32
    %20 = vector.broadcast %c1_i32 : i32 to vector<18x18x1xi32>
    %21 = arith.subi %19, %20 : vector<18x18x1xi32>
    %c0_i32 = arith.constant 0 : i32
    %22 = vector.broadcast %c0_i32 : i32 to vector<18x18x1xi32>
    %23 = arith.cmpi sge, %21, %22 : vector<18x18x1xi32>
    %c16_i32_9 = arith.constant 16 : i32
    %24 = vector.broadcast %c16_i32_9 : i32 to vector<18x18x1xi32>
    %25 = arith.cmpi slt, %21, %24 : vector<18x18x1xi32>
    %26 = arith.andi %23, %25 : vector<18x18x1xi1>
    %c1_i32_10 = arith.constant 1 : i32
    %27 = vector.broadcast %c1_i32_10 : i32 to vector<18x18x1xi32>
    %28 = arith.cmpi sge, %16, %27 : vector<18x18x1xi32>
    %29 = arith.andi %26, %28 : vector<18x18x1xi1>
    %c16_i32_11 = arith.constant 16 : i32
    %30 = vector.broadcast %c16_i32_11 : i32 to vector<18x18x1xi32>
    %31 = arith.cmpi sle, %16, %30 : vector<18x18x1xi32>
    %32 = arith.andi %29, %31 : vector<18x18x1xi1>
    %cst_12 = arith.constant 0.000000e+00 : bf16
    %33 = vector.broadcast %cst_12 : bf16 to vector<18x18x8xbf16>
    %34 = vector.shape_cast %32 : vector<18x18x1xi1> to vector<18x18x1xi1>
    %35 = vector.broadcast %34 : vector<18x18x1xi1> to vector<18x18x8xi1>
    %36 = arith.select %35, %14, %33 : vector<18x18x8xi1>, vector<18x18x8xbf16>
    %37 = vector.extract_strided_slice %36 {offsets = [0, 0, 0], sizes = [18, 16, 8], strides = [1, 1, 1]} : vector<18x18x8xbf16> to vector<18x16x8xbf16>
    %38 = vector.extract_strided_slice %36 {offsets = [0, 1, 0], sizes = [18, 16, 8], strides = [1, 1, 1]} : vector<18x18x8xbf16> to vector<18x16x8xbf16>
    %39 = vector.extract_strided_slice %36 {offsets = [0, 2, 0], sizes = [18, 16, 8], strides = [1, 1, 1]} : vector<18x18x8xbf16> to vector<18x16x8xbf16>
    %40 = tpu.concatenate %37, %38, %39 in 2 : vector<18x16x8xbf16>, vector<18x16x8xbf16>, vector<18x16x8xbf16> -> vector<18x16x24xbf16>
    %41 = vector.shape_cast %40 : vector<18x16x24xbf16> to vector<288x24xbf16>
    %cst_13 = arith.constant 0.000000e+00 : f32
    %42 = vector.broadcast %cst_13 : f32 to vector<256x8xf32>
    %43 = vector.extract_strided_slice %41 {offsets = [0, 0], sizes = [256, 24], strides = [1, 1]} : vector<288x24xbf16> to vector<256x24xbf16>
    %c0_14 = arith.constant 0 : index
    %c0_15 = arith.constant 0 : index
    %c0_16 = arith.constant 0 : index
    %44 = vector.load %arg4[%c0_14, %c0_15, %c0_16] : memref<3x24x8xbf16, #tpu.memory_space<vmem>>, vector<1x24x8xbf16>
    %45 = vector.shape_cast %44 : vector<1x24x8xbf16> to vector<24x8xbf16>
    %cst_17 = arith.constant dense<0.000000e+00> : vector<256x8xf32>
    %46 = tpu.matmul %43, %45, %cst_17 {dimension_numbers = #tpu.dot_dimension_numbers<[1], [0], [0], [1], [0, 0, 1, 1], [], []>} : vector<256x24xbf16>, vector<24x8xbf16>, vector<256x8xf32> -> vector<256x8xf32>
    %47 = arith.addf %42, %46 : vector<256x8xf32>
    %48 = vector.extract_strided_slice %41 {offsets = [16, 0], sizes = [256, 24], strides = [1, 1]} : vector<288x24xbf16> to vector<256x24xbf16>
    %c1 = arith.constant 1 : index
    %c0_18 = arith.constant 0 : index
    %c0_19 = arith.constant 0 : index
    %49 = vector.load %arg4[%c1, %c0_18, %c0_19] : memref<3x24x8xbf16, #tpu.memory_space<vmem>>, vector<1x24x8xbf16>
    %50 = vector.shape_cast %49 : vector<1x24x8xbf16> to vector<24x8xbf16>
    %cst_20 = arith.constant dense<0.000000e+00> : vector<256x8xf32>
    %51 = tpu.matmul %48, %50, %cst_20 {dimension_numbers = #tpu.dot_dimension_numbers<[1], [0], [0], [1], [0, 0, 1, 1], [], []>} : vector<256x24xbf16>, vector<24x8xbf16>, vector<256x8xf32> -> vector<256x8xf32>
    %52 = arith.addf %47, %51 : vector<256x8xf32>
    %53 = vector.extract_strided_slice %41 {offsets = [32, 0], sizes = [256, 24], strides = [1, 1]} : vector<288x24xbf16> to vector<256x24xbf16>
    %c2 = arith.constant 2 : index
    %c0_21 = arith.constant 0 : index
    %c0_22 = arith.constant 0 : index
    %54 = vector.load %arg4[%c2, %c0_21, %c0_22] : memref<3x24x8xbf16, #tpu.memory_space<vmem>>, vector<1x24x8xbf16>
    %55 = vector.shape_cast %54 : vector<1x24x8xbf16> to vector<24x8xbf16>
    %cst_23 = arith.constant dense<0.000000e+00> : vector<256x8xf32>
    %56 = tpu.matmul %53, %55, %cst_23 {dimension_numbers = #tpu.dot_dimension_numbers<[1], [0], [0], [1], [0, 0, 1, 1], [], []>} : vector<256x24xbf16>, vector<24x8xbf16>, vector<256x8xf32> -> vector<256x8xf32>
    %57 = arith.addf %52, %56 : vector<256x8xf32>
    %c0_24 = arith.constant 0 : index
    %c0_25 = arith.constant 0 : index
    %c0_26 = arith.constant 0 : index
    %c0_27 = arith.constant 0 : index
    %c0_28 = arith.constant 0 : index
    %58 = vector.load %arg3[%c0_24, %c0_25, %c0_26, %c0_27, %c0_28] : memref<1x1x20x18x4xbf16, #tpu.memory_space<vmem>>, vector<1x1x20x18x4xbf16>
    %59 = vector.shape_cast %58 : vector<1x1x20x18x4xbf16> to vector<20x18x4xbf16>
    %60 = vector.extract_strided_slice %59 {offsets = [2, 1, 0], sizes = [16, 16, 4], strides = [1, 1, 1]} : vector<20x18x4xbf16> to vector<16x16x4xbf16>
    %61 = vector.shape_cast %60 : vector<16x16x4xbf16> to vector<256x4xbf16>
    %c0_29 = arith.constant 0 : index
    %c0_30 = arith.constant 0 : index
    %62 = vector.load %arg5[%c0_29, %c0_30] : memref<4x8xbf16, #tpu.memory_space<vmem>>, vector<4x8xbf16>
    %cst_31 = arith.constant dense<0.000000e+00> : vector<256x8xf32>
    %63 = tpu.matmul %61, %62, %cst_31 {dimension_numbers = #tpu.dot_dimension_numbers<[1], [0], [0], [1], [0, 0, 1, 1], [], []>} : vector<256x4xbf16>, vector<4x8xbf16>, vector<256x8xf32> -> vector<256x8xf32>
    %64 = arith.addf %57, %63 : vector<256x8xf32>
    %c0_32 = arith.constant 0 : index
    %c0_33 = arith.constant 0 : index
    %65 = vector.load %arg8[%c0_32, %c0_33] : memref<1x8xf32, #tpu.memory_space<vmem>>, vector<1x8xf32>
    %66 = vector.broadcast %65 : vector<1x8xf32> to vector<256x8xf32>
    %67 = arith.addf %64, %66 : vector<256x8xf32>
    %68 = vector.shape_cast %67 : vector<256x8xf32> to vector<1x16x16x8xf32>
    %c0_34 = arith.constant 0 : index
    %c0_35 = arith.constant 0 : index
    %c0_36 = arith.constant 0 : index
    %c0_37 = arith.constant 0 : index
    %69 = vector.load %arg9[%c0_34, %c0_35, %c0_36, %c0_37] : memref<1x16x16x8xf32, #tpu.memory_space<vmem>>, vector<1x16x16x8xf32>
    tpu.vector_store %arg9[%c0_34, %c0_35, %c0_36, %c0_37], %68 {strides = array<i32>} : memref<1x16x16x8xf32, #tpu.memory_space<vmem>>, vector<1x16x16x8xf32>,
    return
  }
  func.func @transform_0(%arg0: i32, %arg1: i32) -> (i32, i32, i32, i32, i32) {
    %c0_i32 = arith.constant 0 : i32
    %c0_i32_0 = arith.constant 0 : i32
    %c0_i32_1 = arith.constant 0 : i32
    %c0_i32_2 = arith.constant 0 : i32
    return %arg0, %arg1, %c0_i32, %c0_i32_0, %c0_i32_1 : i32, i32, i32, i32, i32
  }
  func.func @transform_1(%arg0: i32, %arg1: i32) -> (i32, i32, i32, i32, i32) {
    %c0_i32 = arith.constant 0 : i32
    %c0_i32_0 = arith.constant 0 : i32
    %c0_i32_1 = arith.constant 0 : i32
    %c0_i32_2 = arith.constant 0 : i32
    return %arg0, %arg1, %c0_i32, %c0_i32_0, %c0_i32_1 : i32, i32, i32, i32, i32
  }
  func.func @transform_2(%arg0: i32, %arg1: i32) -> (i32, i32, i32) {
    %c0_i32 = arith.constant 0 : i32
    %c0_i32_0 = arith.constant 0 : i32
    %c0_i32_1 = arith.constant 0 : i32
    %c0_i32_2 = arith.constant 0 : i32
    return %c0_i32, %c0_i32_0, %c0_i32_1 : i32, i32, i32
  }
  func.func @transform_3(%arg0: i32, %arg1: i32) -> (i32, i32) {
    %c0_i32 = arith.constant 0 : i32
    %c0_i32_0 = arith.constant 0 : i32
    %c0_i32_1 = arith.constant 0 : i32
    return %c0_i32, %c0_i32_0 : i32, i32
  }
  func.func @transform_4(%arg0: i32, %arg1: i32) -> (i32, i32) {
    %c0_i32 = arith.constant 0 : i32
    %c0_i32_0 = arith.constant 0 : i32
    %c0_i32_1 = arith.constant 0 : i32
    return %c0_i32, %c0_i32_0 : i32, i32
  }
  func.func @transform_5(%arg0: i32, %arg1: i32) -> (i32, i32) {
    %c0_i32 = arith.constant 0 : i32
    %c0_i32_0 = arith.constant 0 : i32
    %c0_i32_1 = arith.constant 0 : i32
    return %c0_i32, %c0_i32_0 : i32, i32
  }
  func.func @transform_6(%arg0: i32, %arg1: i32) -> (i32, i32) {
    %c0_i32 = arith.constant 0 : i32
    %c0_i32_0 = arith.constant 0 : i32
    %c0_i32_1 = arith.constant 0 : i32
    return %c0_i32, %c0_i32_0 : i32, i32
  }
  func.func @transform_7(%arg0: i32, %arg1: i32) -> (i32, i32, i32, i32) {
    %c0_i32 = arith.constant 0 : i32
    %c0_i32_0 = arith.constant 0 : i32
    %c0_i32_1 = arith.constant 0 : i32
    return %arg0, %arg1, %c0_i32, %c0_i32_0 : i32, i32, i32, i32
  }
}

</mosaic_0001>

<llo_original>
// kernel: res_block_forward.3
$region0: #{res_block_forward.3}
  #allocation0 [shape = 'u32[]', space=smem, size = 0x4, offset = 0x4, fixed_abs, tag = 'smem constant byte address 0x4 - core index']
  #allocation1 [shape = 'u32[144,128]{1,0:T(1,128)}', space=vmem, size = 0x12000, scoped, tag = 'internal scratch']
  %s0 = inlined_call_operand.vmem [shape: f32[512,4], index: 0, kind: input, shape index: {}]
  %s1 = inlined_call_operand.vmem [shape: f32[1,2,4], index: 1, kind: output, shape index: {}]
  %s2 = sld [smem:[#allocation0]]
  $region14: #{res_block_forward.3} parent=0
    _
  %s4 = ssub.s32 1, %s2
  %s5 = scalar_select 0, %s4, %s2
  // Predicated region
  $region2: #{res_block_forward.3} parent=0 // pred_check
    _
  $region3: #{res_block_forward.3} parent=0 // pred_check_branch
    %7 = sbr.rel (0) target = $region5
  $region4: #{res_block_forward.3} parent=0 // pred_region
    _
  $region5: #{res_block_forward.3} parent=0 // pred_fallthru
    _
  %v8 = vld [vmem:[%s0] sm:$0xff]
  %v9 = vld [vmem:[%s0 + $0x8] sm:$0xff]
  %v10 = vld [vmem:[%s0 + $0x10] sm:$0xff]
  %v11 = vld [vmem:[%s0 + $0x18] sm:$0xff]
  %v12 = vld [vmem:[%s0 + $0x20] sm:$0xff]
  %v13 = vld [vmem:[%s0 + $0x28] sm:$0xff]
  %v14 = vld [vmem:[%s0 + $0x30] sm:$0xff]
  %v15 = vld [vmem:[%s0 + $0x38] sm:$0xff]
  %v16 = vld [vmem:[%s0 + $0x40] sm:$0xff]
  %v17 = vld [vmem:[%s0 + $0x48] sm:$0xff]
  %v18 = vld [vmem:[%s0 + $0x50] sm:$0xff]
  %v19 = vld [vmem:[%s0 + $0x58] sm:$0xff]
  %v20 = vld [vmem:[%s0 + $0x60] sm:$0xff]
  %v21 = vld [vmem:[%s0 + $0x68] sm:$0xff]
  %v22 = vld [vmem:[%s0 + $0x70] sm:$0xff]
  %v23 = vld [vmem:[%s0 + $0x78] sm:$0xff]
  %v24 = vld [vmem:[%s0 + $0x80] sm:$0xff]
  %v25 = vld [vmem:[%s0 + $0x88] sm:$0xff]
  %v26 = vld [vmem:[%s0 + $0x90] sm:$0xff]
  %v27 = vld [vmem:[%s0 + $0x98] sm:$0xff]
  %v28 = vld [vmem:[%s0 + $0xa0] sm:$0xff]
  %v29 = vld [vmem:[%s0 + $0xa8] sm:$0xff]
  %v30 = vld [vmem:[%s0 + $0xb0] sm:$0xff]
  %v31 = vld [vmem:[%s0 + $0xb8] sm:$0xff]
  %v32 = vld [vmem:[%s0 + $0xc0] sm:$0xff]
  %v33 = vld [vmem:[%s0 + $0xc8] sm:$0xff]
  %v34 = vld [vmem:[%s0 + $0xd0] sm:$0xff]
  %v35 = vld [vmem:[%s0 + $0xd8] sm:$0xff]
  %v36 = vld [vmem:[%s0 + $0xe0] sm:$0xff]
  %v37 = vld [vmem:[%s0 + $0xe8] sm:$0xff]
  %v38 = vld [vmem:[%s0 + $0xf0] sm:$0xff]
  %v39 = vld [vmem:[%s0 + $0xf8] sm:$0xff]
  %v40 = vld [vmem:[%s0 + $0x100] sm:$0xff]
  %v41 = vld [vmem:[%s0 + $0x108] sm:$0xff]
  %v42 = vld [vmem:[%s0 + $0x110] sm:$0xff]
  %v43 = vld [vmem:[%s0 + $0x118] sm:$0xff]
  %v44 = vld [vmem:[%s0 + $0x120] sm:$0xff]
  %v45 = vld [vmem:[%s0 + $0x128] sm:$0xff]
  %v46 = vld [vmem:[%s0 + $0x130] sm:$0xff]
  %v47 = vld [vmem:[%s0 + $0x138] sm:$0xff]
  %v48 = vld [vmem:[%s0 + $0x140] sm:$0xff]
  %v49 = vld [vmem:[%s0 + $0x148] sm:$0xff]
  %v50 = vld [vmem:[%s0 + $0x150] sm:$0xff]
  %v51 = vld [vmem:[%s0 + $0x158] sm:$0xff]
  %v52 = vld [vmem:[%s0 + $0x160] sm:$0xff]
  %v53 = vld [vmem:[%s0 + $0x168] sm:$0xff]
  %v54 = vld [vmem:[%s0 + $0x170] sm:$0xff]
  %v55 = vld [vmem:[%s0 + $0x178] sm:$0xff]
  %v56 = vld [vmem:[%s0 + $0x180] sm:$0xff]
  %v57 = vld [vmem:[%s0 + $0x188] sm:$0xff]
  %v58 = vld [vmem:[%s0 + $0x190] sm:$0xff]
  %v59 = vld [vmem:[%s0 + $0x198] sm:$0xff]
  %v60 = vld [vmem:[%s0 + $0x1a0] sm:$0xff]
  %v61 = vld [vmem:[%s0 + $0x1a8] sm:$0xff]
  %v62 = vld [vmem:[%s0 + $0x1b0] sm:$0xff]
  %v63 = vld [vmem:[%s0 + $0x1b8] sm:$0xff]
  %v64 = vld [vmem:[%s0 + $0x1c0] sm:$0xff]
  %v65 = vld [vmem:[%s0 + $0x1c8] sm:$0xff]
  %v66 = vld [vmem:[%s0 + $0x1d0] sm:$0xff]
  %v67 = vld [vmem:[%s0 + $0x1d8] sm:$0xff]
  %v68 = vld [vmem:[%s0 + $0x1e0] sm:$0xff]
  %v69 = vld [vmem:[%s0 + $0x1e8] sm:$0xff]
  %v70 = vld [vmem:[%s0 + $0x1f0] sm:$0xff]
  %v71 = vld [vmem:[%s0 + $0x1f8] sm:$0xff]
  %vm72 = vcmask 31744
  %v73 = vsel %vm72, %v8, 0.0
  %v74 = vsel %vm72, %v9, 0.0
  %v75 = vadd.f32 %v73, %v74
  %v76 = vsel %vm72, %v10, 0.0
  %v77 = vadd.f32 %v75, %v76
  %v78 = vsel %vm72, %v11, 0.0
  %v79 = vadd.f32 %v77, %v78
  %v80 = vsel %vm72, %v12, 0.0
  %v81 = vadd.f32 %v79, %v80
  %v82 = vsel %vm72, %v13, 0.0
  %v83 = vadd.f32 %v81, %v82
  %v84 = vsel %vm72, %v14, 0.0
  %v85 = vadd.f32 %v83, %v84
  %v86 = vsel %vm72, %v15, 0.0
  %v87 = vadd.f32 %v85, %v86
  %v88 = vsel %vm72, %v16, 0.0
  %v89 = vadd.f32 %v87, %v88
  %v90 = vsel %vm72, %v17, 0.0
  %v91 = vadd.f32 %v89, %v90
  %v92 = vsel %vm72, %v18, 0.0
  %v93 = vadd.f32 %v91, %v92
  %v94 = vsel %vm72, %v19, 0.0
  %v95 = vadd.f32 %v93, %v94
  %v96 = vsel %vm72, %v20, 0.0
  %v97 = vadd.f32 %v95, %v96
  %v98 = vsel %vm72, %v21, 0.0
  %v99 = vadd.f32 %v97, %v98
  %v100 = vsel %vm72, %v22, 0.0
  %v101 = vadd.f32 %v99, %v100
  %v102 = vsel %vm72, %v23, 0.0
  %v103 = vadd.f32 %v101, %v102
  %v104 = vsel %vm72, %v24, 0.0
  %v105 = vadd.f32 %v103, %v104
  %v106 = vsel %vm72, %v25, 0.0
  %v107 = vadd.f32 %v105, %v106
  %v108 = vsel %vm72, %v26, 0.0
  %v109 = vadd.f32 %v107, %v108
  %v110 = vsel %vm72, %v27, 0.0
  %v111 = vadd.f32 %v109, %v110
  %v112 = vsel %vm72, %v28, 0.0
  %v113 = vadd.f32 %v111, %v112
  %v114 = vsel %vm72, %v29, 0.0
  %v115 = vadd.f32 %v113, %v114
  %v116 = vsel %vm72, %v30, 0.0
  %v117 = vadd.f32 %v115, %v116
  %v118 = vsel %vm72, %v31, 0.0
  %v119 = vadd.f32 %v117, %v118
  %v120 = vsel %vm72, %v32, 0.0
  %v121 = vadd.f32 %v119, %v120
  %v122 = vsel %vm72, %v33, 0.0
  %v123 = vadd.f32 %v121, %v122
  %v124 = vsel %vm72, %v34, 0.0
  %v125 = vadd.f32 %v123, %v124
  %v126 = vsel %vm72, %v35, 0.0
  %v127 = vadd.f32 %v125, %v126
  %v128 = vsel %vm72, %v36, 0.0
  %v129 = vadd.f32 %v127, %v128
  %v130 = vsel %vm72, %v37, 0.0
  %v131 = vadd.f32 %v129, %v130
  %v132 = vsel %vm72, %v38, 0.0
  %v133 = vadd.f32 %v131, %v132
  %v134 = vsel %vm72, %v39, 0.0
  %v135 = vadd.f32 %v133, %v134
  %v136 = vsel %vm72, %v40, 0.0
  %v137 = vadd.f32 %v135, %v136
  %v138 = vsel %vm72, %v41, 0.0
  %v139 = vadd.f32 %v137, %v138
  %v140 = vsel %vm72, %v42, 0.0
  %v141 = vadd.f32 %v139, %v140
  %v142 = vsel %vm72, %v43, 0.0
  %v143 = vadd.f32 %v141, %v142
  %v144 = vsel %vm72, %v44, 0.0
  %v145 = vadd.f32 %v143, %v144
  %v146 = vsel %vm72, %v45, 0.0
  %v147 = vadd.f32 %v145, %v146
  %v148 = vsel %vm72, %v46, 0.0
  %v149 = vadd.f32 %v147, %v148
  %v150 = vsel %vm72, %v47, 0.0
  %v151 = vadd.f32 %v149, %v150
  %v152 = vsel %vm72, %v48, 0.0
  %v153 = vadd.f32 %v151, %v152
  %v154 = vsel %vm72, %v49, 0.0
  %v155 = vadd.f32 %v153, %v154
  %v156 = vsel %vm72, %v50, 0.0
  %v157 = vadd.f32 %v155, %v156
  %v158 = vsel %vm72, %v51, 0.0
  %v159 = vadd.f32 %v157, %v158
  %v160 = vsel %vm72, %v52, 0.0
  %v161 = vadd.f32 %v159, %v160
  %v162 = vsel %vm72, %v53, 0.0
  %v163 = vadd.f32 %v161, %v162
  %v164 = vsel %vm72, %v54, 0.0
  %v165 = vadd.f32 %v163, %v164
  %v166 = vsel %vm72, %v55, 0.0
  %v167 = vadd.f32 %v165, %v166
  %v168 = vsel %vm72, %v56, 0.0
  %v169 = vadd.f32 %v167, %v168
  %v170 = vsel %vm72, %v57, 0.0
  %v171 = vadd.f32 %v169, %v170
  %v172 = vsel %vm72, %v58, 0.0
  %v173 = vadd.f32 %v171, %v172
  %v174 = vsel %vm72, %v59, 0.0
  %v175 = vadd.f32 %v173, %v174
  %v176 = vsel %vm72, %v60, 0.0
  %v177 = vadd.f32 %v175, %v176
  %v178 = vsel %vm72, %v61, 0.0
  %v179 = vadd.f32 %v177, %v178
  %v180 = vsel %vm72, %v62, 0.0
  %v181 = vadd.f32 %v179, %v180
  %v182 = vsel %vm72, %v63, 0.0
  %v183 = vadd.f32 %v181, %v182
  %v184 = vsel %vm72, %v64, 0.0
  %v185 = vadd.f32 %v183, %v184
  %v186 = vsel %vm72, %v65, 0.0
  %v187 = vadd.f32 %v185, %v186
  %v188 = vsel %vm72, %v66, 0.0
  %v189 = vadd.f32 %v187, %v188
  %v190 = vsel %vm72, %v67, 0.0
  %v191 = vadd.f32 %v189, %v190
  %v192 = vsel %vm72, %v68, 0.0
  %v193 = vadd.f32 %v191, %v192
  %v194 = vsel %vm72, %v69, 0.0
  %v195 = vadd.f32 %v193, %v194
  %v196 = vsel %vm72, %v70, 0.0
  %v197 = vadd.f32 %v195, %v196
  %v198 = vsel %vm72, %v71, 0.0
  %v199 = vadd.f32 %v197, %v198
  %v200 = vrot.slane %v199, 4
  %v201 = vadd.f32 %v199, %v200
  %v202 = vrot.slane %v201, 2
  %v203 = vadd.f32 %v201, %v202
  %v204 = vrot.slane %v203, 1
  %v205 = vadd.f32 %v203, %v204
  %v206 = vmul.f32 %v8, %v8
  %v207 = vmul.f32 %v9, %v9
  %v208 = vmul.f32 %v10, %v10
  %v209 = vmul.f32 %v11, %v11
  %v210 = vmul.f32 %v12, %v12
  %v211 = vmul.f32 %v13, %v13
  %v212 = vmul.f32 %v14, %v14
  %v213 = vmul.f32 %v15, %v15
  %v214 = vmul.f32 %v16, %v16
  %v215 = vmul.f32 %v17, %v17
  %v216 = vmul.f32 %v18, %v18
  %v217 = vmul.f32 %v19, %v19
  %v218 = vmul.f32 %v20, %v20
  %v219 = vmul.f32 %v21, %v21
  %v220 = vmul.f32 %v22, %v22
  %v221 = vmul.f32 %v23, %v23
  %v222 = vmul.f32 %v24, %v24
  %v223 = vmul.f32 %v25, %v25
  %v224 = vmul.f32 %v26, %v26
  %v225 = vmul.f32 %v27, %v27
  %v226 = vmul.f32 %v28, %v28
  %v227 = vmul.f32 %v29, %v29
  %v228 = vmul.f32 %v30, %v30
  %v229 = vmul.f32 %v31, %v31
  %v230 = vmul.f32 %v32, %v32
  %v231 = vmul.f32 %v33, %v33
  %v232 = vmul.f32 %v34, %v34
  %v233 = vmul.f32 %v35, %v35
  %v234 = vmul.f32 %v36, %v36
  %v235 = vmul.f32 %v37, %v37
  %v236 = vmul.f32 %v38, %v38
  %v237 = vmul.f32 %v39, %v39
  %v238 = vmul.f32 %v40, %v40
  %v239 = vmul.f32 %v41, %v41
  %v240 = vmul.f32 %v42, %v42
  %v241 = vmul.f32 %v43, %v43
  %v242 = vmul.f32 %v44, %v44
  %v243 = vmul.f32 %v45, %v45
  %v244 = vmul.f32 %v46, %v46
  %v245 = vmul.f32 %v47, %v47
  %v246 = vmul.f32 %v48, %v48
  %v247 = vmul.f32 %v49, %v49
  %v248 = vmul.f32 %v50, %v50
  %v249 = vmul.f32 %v51, %v51
  %v250 = vmul.f32 %v52, %v52
  %v251 = vmul.f32 %v53, %v53
  %v252 = vmul.f32 %v54, %v54
  %v253 = vmul.f32 %v55, %v55
  %v254 = vmul.f32 %v56, %v56
  %v255 = vmul.f32 %v57, %v57
  %v256 = vmul.f32 %v58, %v58
  %v257 = vmul.f32 %v59, %v59
  %v258 = vmul.f32 %v60, %v60
  %v259 = vmul.f32 %v61, %v61
  %v260 = vmul.f32 %v62, %v62
  %v261 = vmul.f32 %v63, %v63
  %v262 = vmul.f32 %v64, %v64
  %v263 = vmul.f32 %v65, %v65
  %v264 = vmul.f32 %v66, %v66
  %v265 = vmul.f32 %v67, %v67
  %v266 = vmul.f32 %v68, %v68
  %v267 = vmul.f32 %v69, %v69
  %v268 = vmul.f32 %v70, %v70
  %v269 = vmul.f32 %v71, %v71
  %v270 = vsel %vm72, %v206, 0.0
  %v271 = vsel %vm72, %v207, 0.0
  %v272 = vadd.f32 %v270, %v271
  %v273 = vsel %vm72, %v208, 0.0
  %v274 = vadd.f32 %v272, %v273
  %v275 = vsel %vm72, %v209, 0.0
  %v276 = vadd.f32 %v274, %v275
  %v277 = vsel %vm72, %v210, 0.0
  %v278 = vadd.f32 %v276, %v277
  %v279 = vsel %vm72, %v211, 0.0
  %v280 = vadd.f32 %v278, %v279
  %v281 = vsel %vm72, %v212, 0.0
  %v282 = vadd.f32 %v280, %v281
  %v283 = vsel %vm72, %v213, 0.0
  %v284 = vadd.f32 %v282, %v283
  %v285 = vsel %vm72, %v214, 0.0
  %v286 = vadd.f32 %v284, %v285
  %v287 = vsel %vm72, %v215, 0.0
  %v288 = vadd.f32 %v286, %v287
  %v289 = vsel %vm72, %v216, 0.0
  %v290 = vadd.f32 %v288, %v289
  %v291 = vsel %vm72, %v217, 0.0
  %v292 = vadd.f32 %v290, %v291
  %v293 = vsel %vm72, %v218, 0.0
  %v294 = vadd.f32 %v292, %v293
  %v295 = vsel %vm72, %v219, 0.0
  %v296 = vadd.f32 %v294, %v295
  %v297 = vsel %vm72, %v220, 0.0
  %v298 = vadd.f32 %v296, %v297
  %v299 = vsel %vm72, %v221, 0.0
  %v300 = vadd.f32 %v298, %v299
  %v301 = vsel %vm72, %v222, 0.0
  %v302 = vadd.f32 %v300, %v301
  %v303 = vsel %vm72, %v223, 0.0
  %v304 = vadd.f32 %v302, %v303
  %v305 = vsel %vm72, %v224, 0.0
  %v306 = vadd.f32 %v304, %v305
  %v307 = vsel %vm72, %v225, 0.0
  %v308 = vadd.f32 %v306, %v307
  %v309 = vsel %vm72, %v226, 0.0
  %v310 = vadd.f32 %v308, %v309
  %v311 = vsel %vm72, %v227, 0.0
  %v312 = vadd.f32 %v310, %v311
  %v313 = vsel %vm72, %v228, 0.0
  %v314 = vadd.f32 %v312, %v313
  %v315 = vsel %vm72, %v229, 0.0
  %v316 = vadd.f32 %v314, %v315
  %v317 = vsel %vm72, %v230, 0.0
  %v318 = vadd.f32 %v316, %v317
  %v319 = vsel %vm72, %v231, 0.0
  %v320 = vadd.f32 %v318, %v319
  %v321 = vsel %vm72, %v232, 0.0
  %v322 = vadd.f32 %v320, %v321
  %v323 = vsel %vm72, %v233, 0.0
  %v324 = vadd.f32 %v322, %v323
  %v325 = vsel %vm72, %v234, 0.0
  %v326 = vadd.f32 %v324, %v325
  %v327 = vsel %vm72, %v235, 0.0
  %v328 = vadd.f32 %v326, %v327
  %v329 = vsel %vm72, %v236, 0.0
  %v330 = vadd.f32 %v328, %v329
  %v331 = vsel %vm72, %v237, 0.0
  %v332 = vadd.f32 %v330, %v331
  %v333 = vsel %vm72, %v238, 0.0
  %v334 = vadd.f32 %v332, %v333
  %v335 = vsel %vm72, %v239, 0.0
  %v336 = vadd.f32 %v334, %v335
  %v337 = vsel %vm72, %v240, 0.0
  %v338 = vadd.f32 %v336, %v337
  %v339 = vsel %vm72, %v241, 0.0
  %v340 = vadd.f32 %v338, %v339
  %v341 = vsel %vm72, %v242, 0.0
  %v342 = vadd.f32 %v340, %v341
  %v343 = vsel %vm72, %v243, 0.0
  %v344 = vadd.f32 %v342, %v343
  %v345 = vsel %vm72, %v244, 0.0
  %v346 = vadd.f32 %v344, %v345
  %v347 = vsel %vm72, %v245, 0.0
  %v348 = vadd.f32 %v346, %v347
  %v349 = vsel %vm72, %v246, 0.0
  %v350 = vadd.f32 %v348, %v349
  %v351 = vsel %vm72, %v247, 0.0
  %v352 = vadd.f32 %v350, %v351
  %v353 = vsel %vm72, %v248, 0.0
  %v354 = vadd.f32 %v352, %v353
  %v355 = vsel %vm72, %v249, 0.0
  %v356 = vadd.f32 %v354, %v355
  %v357 = vsel %vm72, %v250, 0.0
  %v358 = vadd.f32 %v356, %v357
  %v359 = vsel %vm72, %v251, 0.0
  %v360 = vadd.f32 %v358, %v359
  %v361 = vsel %vm72, %v252, 0.0
  %v362 = vadd.f32 %v360, %v361
  %v363 = vsel %vm72, %v253, 0.0
  %v364 = vadd.f32 %v362, %v363
  %v365 = vsel %vm72, %v254, 0.0
  %v366 = vadd.f32 %v364, %v365
  %v367 = vsel %vm72, %v255, 0.0
  %v368 = vadd.f32 %v366, %v367
  %v369 = vsel %vm72, %v256, 0.0
  %v370 = vadd.f32 %v368, %v369
  %v371 = vsel %vm72, %v257, 0.0
  %v372 = vadd.f32 %v370, %v371
  %v373 = vsel %vm72, %v258, 0.0
  %v374 = vadd.f32 %v372, %v373
  %v375 = vsel %vm72, %v259, 0.0
  %v376 = vadd.f32 %v374, %v375
  %v377 = vsel %vm72, %v260, 0.0
  %v378 = vadd.f32 %v376, %v377
  %v379 = vsel %vm72, %v261, 0.0
  %v380 = vadd.f32 %v378, %v379
  %v381 = vsel %vm72, %v262, 0.0
  %v382 = vadd.f32 %v380, %v381
  %v383 = vsel %vm72, %v263, 0.0
  %v384 = vadd.f32 %v382, %v383
  %v385 = vsel %vm72, %v264, 0.0
  %v386 = vadd.f32 %v384, %v385
  %v387 = vsel %vm72, %v265, 0.0
  %v388 = vadd.f32 %v386, %v387
  %v389 = vsel %vm72, %v266, 0.0
  %v390 = vadd.f32 %v388, %v389
  %v391 = vsel %vm72, %v267, 0.0
  %v392 = vadd.f32 %v390, %v391
  %v393 = vsel %vm72, %v268, 0.0
  %v394 = vadd.f32 %v392, %v393
  %v395 = vsel %vm72, %v269, 0.0
  %v396 = vadd.f32 %v394, %v395
  %v397 = vrot.slane %v396, 4
  %v398 = vadd.f32 %v396, %v397
  %v399 = vrot.slane %v398, 2
  %v400 = vadd.f32 %v398, %v399
  %v401 = vrot.slane %v400, 1
  %v402 = vadd.f32 %v400, %v401
  %vm403 = vcmask 1040384
  %v404 = vsel %vm403, %v205, %v402
  %vm405 = vcmask 25600
  %406 = vst.msk [vmem:[%s1] sm:$0x3] %vm405, %v404
  // Predicated region
  $region6: #{res_block_forward.3} parent=0 // pred_check
    _
  $region7: #{res_block_forward.3} parent=0 // pred_check_branch
    %408 = sbr.rel (0) target = $region9
  $region8: #{res_block_forward.3} parent=0 // pred_region
    _
  $region9: #{res_block_forward.3} parent=0 // pred_fallthru
    _
  // Predicated region
  $region10: #{res_block_forward.3} parent=0 // pred_check
    _
  $region11: #{res_block_forward.3} parent=0 // pred_check_branch
    %410 = sbr.rel (0) target = $region13
  $region12: #{res_block_forward.3} parent=0 // pred_region
    _
  $region13: #{res_block_forward.3} parent=0 // pred_fallthru
    _

// kernel: res_block_forward.4
$region0: #{res_block_forward.4}
  #allocation0 [shape = 'u32[]', space=smem, size = 0x4, offset = 0x4, fixed_abs, tag = 'smem constant byte address 0x4 - core index']
  #allocation1 [shape = 'u32[144,128]{1,0:T(1,128)}', space=vmem, size = 0x12000, scoped, tag = 'internal scratch']
  %s0 = inlined_call_operand.vmem [shape: bf16[2,1,20,18,4], index: 0, kind: input, shape index: {}]
  %s1 = inlined_call_operand.vmem [shape: bf16[3,12,8], index: 1, kind: input, shape index: {}]
  %s2 = inlined_call_operand.vmem [shape: bf16[1,4], index: 2, kind: input, shape index: {}]
  %s3 = inlined_call_operand.vmem [shape: bf16[1,4], index: 3, kind: input, shape index: {}]
  %s4 = inlined_call_operand.vmem [shape: bf16[2,1,18,18,8], index: 4, kind: output, shape index: {0}]
  %s5 = inlined_call_operand.vmem [shape: f32[2,2,8], index: 5, kind: output, shape index: {1}]
  %6 = xla_tuple %s4, %s5
  %s7 = sld [smem:[#allocation0]]
  $region61: #{res_block_forward.4} parent=0
    _
  %s9 = ssub.s32 1, %s7
  %s10 = scalar_select 0, %s9, %s7
  loop: start=0, step=1, limit=4
  $region2: #{res_block_forward.4} parent=0 // loop_pre_header
    _
  $region3: #{res_block_forward.4} parent=0 // loop_header
    %s12 = sphi 0, %s16
    %p13 = scmp.ge.s32.totalorder %s12, 4
    %s19 = sphi 0, %s31
    %s20 = sphi 0, %s27
    %s21 = sphi 0, %s19
    %s22 = sphi 0, %s20
    %s23 = sphi 0, %s21
    %s24 = sphi 0, %s22
    %s36 = sphi 0, %s38
    %s39 = sphi 0, %s36
    %s40 = sphi 0, %s39
    %s56 = sphi 0, %s40
    %s60 = sphi 0, %s60
    %s62 = sphi 0, %s60
    %s63 = sphi 0, %s62
    %s77 = sphi 0, %s63
    %s81 = sphi 0, %s81
    %s83 = sphi 0, %s81
    %s84 = sphi 0, %s83
    %s98 = sphi 0, %s84
    %s102 = sphi 0, %s102
    %s104 = sphi 0, %s102
    %s105 = sphi 0, %s104
    %s119 = sphi 0, %s105
    %s127 = sphi 0, %s129
    %s130 = sphi 0, %s127
    %s131 = sphi 0, %s130
    %s147 = sphi 0, %s131
    %s153 = sphi 0, %s155
    %s156 = sphi 0, %s153
    %s157 = sphi 0, %s156
    %s173 = sphi 0, %s157
  $region4: #{res_block_forward.4} parent=0 // loop_header_branch
    %15 = sbr.rel (%p13) target = $region8
  $region5: #{res_block_forward.4} parent=0 // loop_body
    %s17 = ssub.s32 %s12, 1
    %s18 = ssub.s32 %s12, 2
    %s25 = sadd.s32 1, %s20
    %p26 = scmp.ge.s32.totalorder %s25, 1
    %s27 = scalar_select %p26, 0, %s25
    %s28 = sadd.s32 1, %s19
    %s29 = scalar_select %p26, %s28, %s19
    %p30 = scmp.ge.s32.totalorder %s29, 2
    %s31 = scalar_select %p30, 0, %s29
    %s32 = ssub.s32 %s19, %s31
    %s33 = ssub.s32 %s20, %s27
    %s34 = sor.u32 %s32, %s33
    %p35 = scmp.eq.s32.totalorder %s34, 0
    %s37 = sadd.s32 %s36, 1
    %s38 = scalar_select %p35, %s36, %s37
    %p41 = pneg %p35
    %p42 = scmp.eq.s32.totalorder %s12, 1
    %p43 = por %p41, %p42
    %p44 = scmp.ne.s32.totalorder %s36, %s39
    %p45 = scmp.eq.s32.totalorder %s12, 0
    %p46 = por %p44, %p45
    %p47 = scmp.ne.s32.totalorder %s36, %s39
    %p48 = scmp.eq.s32.totalorder %s17, 1
    %p49 = por %p47, %p48
    %p50 = scmp.ne.s32.totalorder %s39, %s40
    %p51 = scmp.eq.s32.totalorder %s17, 0
    %p52 = por %p50, %p51
    %p53 = scmp.ne.s32.totalorder %s39, %s40
    %p54 = scmp.eq.s32.totalorder %s18, 1
    %p55 = por %p53, %p54
    %p57 = scmp.ne.s32.totalorder %s40, %s56
    %p58 = scmp.eq.s32.totalorder %s18, 0
    %p59 = por %p57, %p58
    %s61 = sadd.s32 %s60, 1
    %p64 = scmp.eq.s32.totalorder %s12, 1
    %p65 = scmp.ne.s32.totalorder %s60, %s62
    %p66 = scmp.eq.s32.totalorder %s12, 0
    %p67 = por %p65, %p66
    %p68 = scmp.ne.s32.totalorder %s60, %s62
    %p69 = scmp.eq.s32.totalorder %s17, 1
    %p70 = por %p68, %p69
    %p71 = scmp.ne.s32.totalorder %s62, %s63
    %p72 = scmp.eq.s32.totalorder %s17, 0
    %p73 = por %p71, %p72
    %p74 = scmp.ne.s32.totalorder %s62, %s63
    %p75 = scmp.eq.s32.totalorder %s18, 1
    %p76 = por %p74, %p75
    %p78 = scmp.ne.s32.totalorder %s63, %s77
    %p79 = scmp.eq.s32.totalorder %s18, 0
    %p80 = por %p78, %p79
    %s82 = sadd.s32 %s81, 1
    %p85 = scmp.eq.s32.totalorder %s12, 1
    %p86 = scmp.ne.s32.totalorder %s81, %s83
    %p87 = scmp.eq.s32.totalorder %s12, 0
    %p88 = por %p86, %p87
    %p89 = scmp.ne.s32.totalorder %s81, %s83
    %p90 = scmp.eq.s32.totalorder %s17, 1
    %p91 = por %p89, %p90
    %p92 = scmp.ne.s32.totalorder %s83, %s84
    %p93 = scmp.eq.s32.totalorder %s17, 0
    %p94 = por %p92, %p93
    %p95 = scmp.ne.s32.totalorder %s83, %s84
    %p96 = scmp.eq.s32.totalorder %s18, 1
    %p97 = por %p95, %p96
    %p99 = scmp.ne.s32.totalorder %s84, %s98
    %p100 = scmp.eq.s32.totalorder %s18, 0
    %p101 = por %p99, %p100
    %s103 = sadd.s32 %s102, 1
    %p106 = scmp.eq.s32.totalorder %s12, 1
    %p107 = scmp.ne.s32.totalorder %s102, %s104
    %p108 = scmp.eq.s32.totalorder %s12, 0
    %p109 = por %p107, %p108
    %p110 = scmp.ne.s32.totalorder %s102, %s104
    %p111 = scmp.eq.s32.totalorder %s17, 1
    %p112 = por %p110, %p111
    %p113 = scmp.ne.s32.totalorder %s104, %s105
    %p114 = scmp.eq.s32.totalorder %s17, 0
    %p115 = por %p113, %p114
    %p116 = scmp.ne.s32.totalorder %s104, %s105
    %p117 = scmp.eq.s32.totalorder %s18, 1
    %p118 = por %p116, %p117
    %p120 = scmp.ne.s32.totalorder %s105, %s119
    %p121 = scmp.eq.s32.totalorder %s18, 0
    %p122 = por %p120, %p121
    %s123 = ssub.s32 %s19, %s31
    %s124 = ssub.s32 %s20, %s27
    %s125 = sor.u32 %s123, %s124
    %p126 = scmp.eq.s32.totalorder %s125, 0
    %s128 = sadd.s32 %s127, 1
    %s129 = scalar_select %p126, %s127, %s128
    %p132 = pneg %p126
    %p133 = scmp.eq.s32.totalorder %s12, 1
    %p134 = por %p132, %p133
    %p135 = scmp.ne.s32.totalorder %s127, %s130
    %p136 = scmp.eq.s32.totalorder %s12, 0
    %p137 = por %p135, %p136
    %p138 = scmp.ne.s32.totalorder %s127, %s130
    %p139 = scmp.eq.s32.totalorder %s17, 1
    %p140 = por %p138, %p139
    %p141 = scmp.ne.s32.totalorder %s130, %s131
    %p142 = scmp.eq.s32.totalorder %s17, 0
    %p143 = por %p141, %p142
    %p144 = scmp.ne.s32.totalorder %s130, %s131
    %p145 = scmp.eq.s32.totalorder %s18, 1
    %p146 = por %p144, %p145
    %p148 = scmp.ne.s32.totalorder %s131, %s147
    %p149 = scmp.eq.s32.totalorder %s18, 0
    %p150 = por %p148, %p149
    %s151 = ssub.s32 %s19, %s31
    %p152 = scmp.eq.s32.totalorder %s151, 0
    %s154 = sadd.s32 %s153, 1
    %s155 = scalar_select %p152, %s153, %s154
    %p158 = pneg %p152
    %p159 = scmp.eq.s32.totalorder %s12, 1
    %p160 = por %p158, %p159
    %p161 = scmp.ne.s32.totalorder %s153, %s156
    %p162 = scmp.eq.s32.totalorder %s12, 0
    %p163 = por %p161, %p162
    %p164 = scmp.ne.s32.totalorder %s153, %s156
    %p165 = scmp.eq.s32.totalorder %s17, 1
    %p166 = por %p164, %p165
    %p167 = scmp.ne.s32.totalorder %s156, %s157
    %p168 = scmp.eq.s32.totalorder %s17, 0
    %p169 = por %p167, %p168
    %p170 = scmp.ne.s32.totalorder %s156, %s157
    %p171 = scmp.eq.s32.totalorder %s18, 1
    %p172 = por %p170, %p171
    %p174 = scmp.ne.s32.totalorder %s157, %s173
    %p175 = scmp.eq.s32.totalorder %s18, 0
    %p176 = por %p174, %p175
    %p177 = scmp.le.s32.totalorder 1, %s12
    %p178 = scmp.lt.s32.totalorder %s12, 3
    %p179 = pnand %p177, %p178
    %p180 = pneg %p179
    // Predicated region
    $region9: #{res_block_forward.4} parent=5 // pred_check
      _
    $region10: #{res_block_forward.4} parent=5 // pred_check_branch
      %182 = sbr.rel (%p179) target = $region12
    $region11: #{res_block_forward.4} parent=5 // pred_region
      %s183 = ssub.s32 %s12, 1
      // Predicated region
      $region13: #{res_block_forward.4} parent=11 // pred_check
        %p184 = pneg %p73
      $region14: #{res_block_forward.4} parent=11 // pred_check_branch
        %186 = sbr.rel (%p184) target = $region16
      $region15: #{res_block_forward.4} parent=11 // pred_region
        _
      $region16: #{res_block_forward.4} parent=11 // pred_fallthru
        _
      // Predicated region
      $region17: #{res_block_forward.4} parent=11 // pred_check
        %p187 = pneg %p94
      $region18: #{res_block_forward.4} parent=11 // pred_check_branch
        %189 = sbr.rel (%p187) target = $region20
      $region19: #{res_block_forward.4} parent=11 // pred_region
        _
      $region20: #{res_block_forward.4} parent=11 // pred_fallthru
        _
      // Predicated region
      $region21: #{res_block_forward.4} parent=11 // pred_check
        %p190 = pneg %p115
      $region22: #{res_block_forward.4} parent=11 // pred_check_branch
        %192 = sbr.rel (%p190) target = $region24
      $region23: #{res_block_forward.4} parent=11 // pred_region
        _
      $region24: #{res_block_forward.4} parent=11 // pred_fallthru
        _
    $region12: #{res_block_forward.4} parent=5 // pred_fallthru
      _
    %p193 = scmp.lt.s32.totalorder %s12, 2
    // Predicated region
    $region25: #{res_block_forward.4} parent=5 // pred_check
      %p194 = pneg %p193
    $region26: #{res_block_forward.4} parent=5 // pred_check_branch
      %196 = sbr.rel (%p194) target = $region28
    $region27: #{res_block_forward.4} parent=5 // pred_region
      // Predicated region
      $region29: #{res_block_forward.4} parent=27 // pred_check
        %p197 = pneg %p46
      $region30: #{res_block_forward.4} parent=27 // pred_check_branch
        %199 = sbr.rel (%p197) target = $region32
      $region31: #{res_block_forward.4} parent=27 // pred_region
        %p200 = scmp.lt.s32.totalorder %s19, 1
        %s201 = scalar_select %p200, %s19, 1
        %p202 = scmp.lt.s32.totalorder %s20, 0
        %s203 = scalar_select %p202, %s20, 0
        %s204 = smul.addr %s203, 60
        %s205 = smul.addr %s201, 60
        %s206 = sadd.s32 %s204, %s205
        %s207 = smul.addr %s206, 4
        %s208 = scalar_lea.vmem %s0, %s207
      $region32: #{res_block_forward.4} parent=27 // pred_fallthru
        _
    $region28: #{res_block_forward.4} parent=5 // pred_fallthru
      _
    %p209 = scmp.le.s32.totalorder 1, %s12
    %p210 = scmp.lt.s32.totalorder %s12, 3
    %p211 = pnand %p209, %p210
    %p212 = pneg %p211
    // Predicated region
    $region33: #{res_block_forward.4} parent=5 // pred_check
      _
    $region34: #{res_block_forward.4} parent=5 // pred_check_branch
      %214 = sbr.rel (%p211) target = $region36
    $region35: #{res_block_forward.4} parent=5 // pred_region
      %s215 = ssub.s32 %s12, 1
      %p216 = scmp.lt.s32.totalorder %s21, 1
      %s217 = scalar_select %p216, %s21, 1
      %p218 = scmp.lt.s32.totalorder %s22, 0
      %s219 = scalar_select %p218, %s22, 0
      %s220 = smul.addr %s219, 60
      %s221 = smul.addr %s217, 60
      %s222 = sadd.s32 %s220, %s221
      %s223 = smul.addr %s222, 4
      %s224 = scalar_lea.vmem %s0, %s223
      %p225 = pneg %p52
      %p226 = pneg %p49
      %p227 = pneg %p73
      %p228 = pneg %p70
      %p229 = pneg %p94
      %p230 = pneg %p91
      %p231 = pneg %p115
      %p232 = pneg %p112
      %p233 = pneg %p143
      %p234 = pneg %p140
      %p235 = scmp.lt.s32.totalorder %s21, 1
      %s236 = scalar_select %p235, %s21, 1
      %p237 = scmp.lt.s32.totalorder %s22, 0
      %s238 = scalar_select %p237, %s22, 0
      %s239 = smul.addr %s238, 54
      %s240 = smul.addr %s236, 54
      %s241 = sadd.s32 %s239, %s240
      %s242 = smul.addr %s241, 4
      %s243 = scalar_lea.vmem %s4, %s242
      %p244 = pneg %p169
      %p245 = pneg %p166
      %p246 = scmp.lt.s32.totalorder %s21, 1
      %s247 = scalar_select %p246, %s21, 1
      %s248 = smul.addr %s247, 2
      %s249 = scalar_lea.vmem %s5, %s248
      %p250 = scmp.lt.s32.totalorder %s21, 1
      %s251 = scalar_select %p250, %s21, 1
      %p252 = scmp.lt.s32.totalorder %s22, 0
      %s253 = scalar_select %p252, %s22, 0
      %s254 = smul.addr %s253, 60
      %s255 = smul.addr %s251, 60
      %s256 = sadd.s32 %s254, %s255
      %s257 = smul.addr %s256, 4
      %s258 = scalar_lea.vmem %s0, %s257
      %p259 = scmp.lt.s32.totalorder %s21, 1
      %s260 = scalar_select %p259, %s21, 1
      %p261 = scmp.lt.s32.totalorder %s22, 0
      %s262 = scalar_select %p261, %s22, 0
      %s263 = smul.addr %s262, 54
      %s264 = smul.addr %s260, 54
      %s265 = sadd.s32 %s263, %s264
      %s266 = smul.addr %s265, 4
      %s267 = scalar_lea.vmem %s4, %s266
      %p268 = scmp.lt.s32.totalorder %s21, 1
      %s269 = scalar_select %p268, %s21, 1
      %s270 = smul.addr %s269, 2
      %s271 = scalar_lea.vmem %s5, %s270
      %v274 = vld [vmem:[%s258] sm:$0xf]
      %v275 = vld [vmem:[%s258 + $0x4] sm:$0xf]
      %v276 = vld [vmem:[%s258 + $0x8] sm:$0x1]
      %v277 = vld [vmem:[%s258 + $0xc] sm:$0xf]
      %v278 = vld [vmem:[%s258 + $0x10] sm:$0xf]
      %v279 = vld [vmem:[%s258 + $0x14] sm:$0x1]
      %v280 = vld [vmem:[%s258 + $0x18] sm:$0xf]
      %v281 = vld [vmem:[%s258 + $0x1c] sm:$0xf]
      %v282 = vld [vmem:[%s258 + $0x20] sm:$0x1]
      %v283 = vld [vmem:[%s258 + $0x24] sm:$0xf]
      %v284 = vld [vmem:[%s258 + $0x28] sm:$0xf]
      %v285 = vld [vmem:[%s258 + $0x2c] sm:$0x1]
      %v286 = vld [vmem:[%s258 + $0x30] sm:$0xf]
      %v287 = vld [vmem:[%s258 + $0x34] sm:$0xf]
      %v288 = vld [vmem:[%s258 + $0x38] sm:$0x1]
      %v289 = vld [vmem:[%s258 + $0x3c] sm:$0xf]
      %v290 = vld [vmem:[%s258 + $0x40] sm:$0xf]
      %v291 = vld [vmem:[%s258 + $0x44] sm:$0x1]
      %v292 = vld [vmem:[%s258 + $0x48] sm:$0xf]
      %v293 = vld [vmem:[%s258 + $0x4c] sm:$0xf]
      %v294 = vld [vmem:[%s258 + $0x50] sm:$0x1]
      %v295 = vld [vmem:[%s258 + $0x54] sm:$0xf]
      %v296 = vld [vmem:[%s258 + $0x58] sm:$0xf]
      %v297 = vld [vmem:[%s258 + $0x5c] sm:$0x1]
      %v298 = vld [vmem:[%s258 + $0x60] sm:$0xf]
      %v299 = vld [vmem:[%s258 + $0x64] sm:$0xf]
      %v300 = vld [vmem:[%s258 + $0x68] sm:$0x1]
      %v301 = vld [vmem:[%s258 + $0x6c] sm:$0xf]
      %v302 = vld [vmem:[%s258 + $0x70] sm:$0xf]
      %v303 = vld [vmem:[%s258 + $0x74] sm:$0x1]
      %v304 = vld [vmem:[%s258 + $0x78] sm:$0xf]
      %v305 = vld [vmem:[%s258 + $0x7c] sm:$0xf]
      %v306 = vld [vmem:[%s258 + $0x80] sm:$0x1]
      %v307 = vld [vmem:[%s258 + $0x84] sm:$0xf]
      %v308 = vld [vmem:[%s258 + $0x88] sm:$0xf]
      %v309 = vld [vmem:[%s258 + $0x8c] sm:$0x1]
      %v310 = vld [vmem:[%s258 + $0x90] sm:$0xf]
      %v311 = vld [vmem:[%s258 + $0x94] sm:$0xf]
      %v312 = vld [vmem:[%s258 + $0x98] sm:$0x1]
      %v313 = vld [vmem:[%s258 + $0x9c] sm:$0xf]
      %v314 = vld [vmem:[%s258 + $0xa0] sm:$0xf]
      %v315 = vld [vmem:[%s258 + $0xa4] sm:$0x1]
      %v316 = vld [vmem:[%s258 + $0xa8] sm:$0xf]
      %v317 = vld [vmem:[%s258 + $0xac] sm:$0xf]
      %v318 = vld [vmem:[%s258 + $0xb0] sm:$0x1]
      %v319 = vld [vmem:[%s258 + $0xb4] sm:$0xf]
      %v320 = vld [vmem:[%s258 + $0xb8] sm:$0xf]
      %v321 = vld [vmem:[%s258 + $0xbc] sm:$0x1]
      %v322 = vld [vmem:[%s258 + $0xc0] sm:$0xf]
      %v323 = vld [vmem:[%s258 + $0xc4] sm:$0xf]
      %v324 = vld [vmem:[%s258 + $0xc8] sm:$0x1]
      %v325 = vld [vmem:[%s258 + $0xcc] sm:$0xf]
      %v326 = vld [vmem:[%s258 + $0xd0] sm:$0xf]
      %v327 = vld [vmem:[%s258 + $0xd4] sm:$0x1]
      %v328 = vld [vmem:[%s258 + $0xd8] sm:$0xf]
      %v329 = vld [vmem:[%s258 + $0xdc] sm:$0xf]
      %v330 = vld [vmem:[%s258 + $0xe0] sm:$0x1]
      %v331 = vld [vmem:[%s258 + $0xe4] sm:$0xf]
      %v332 = vld [vmem:[%s258 + $0xe8] sm:$0xf]
      %v333 = vld [vmem:[%s258 + $0xec] sm:$0x1]
      %v334 = vld [vmem:[%s2] sm:$0x1]
      %v336 = vpack.i.b16 %v334, %v334
      %v338 = vlaneseq
      %v339 = vshrl.u32 %v338, 7
      %v340 = vsub.s32 0, %v339
      %v341 = vrot.slane %v336, %v340
      %v343 = vunpack.c.l.b16 %v341
      %v344 = vpack.c.b16 %v343, %v343
      %v346 = vmul.bf16 %v274, %v344
      %v347 = vmul.bf16 %v275, %v344
      %v348 = vmul.bf16 %v276, %v344
      %v349 = vmul.bf16 %v277, %v344
      %v350 = vmul.bf16 %v278, %v344
      %v351 = vmul.bf16 %v279, %v344
      %v352 = vmul.bf16 %v280, %v344
      %v353 = vmul.bf16 %v281, %v344
      %v354 = vmul.bf16 %v282, %v344
      %v355 = vmul.bf16 %v283, %v344
      %v356 = vmul.bf16 %v284, %v344
      %v357 = vmul.bf16 %v285, %v344
      %v358 = vmul.bf16 %v286, %v344
      %v359 = vmul.bf16 %v287, %v344
      %v360 = vmul.bf16 %v288, %v344
      %v361 = vmul.bf16 %v289, %v344
      %v362 = vmul.bf16 %v290, %v344
      %v363 = vmul.bf16 %v291, %v344
      %v364 = vmul.bf16 %v292, %v344
      %v365 = vmul.bf16 %v293, %v344
      %v366 = vmul.bf16 %v294, %v344
      %v367 = vmul.bf16 %v295, %v344
      %v368 = vmul.bf16 %v296, %v344
      %v369 = vmul.bf16 %v297, %v344
      %v370 = vmul.bf16 %v298, %v344
      %v371 = vmul.bf16 %v299, %v344
      %v372 = vmul.bf16 %v300, %v344
      %v373 = vmul.bf16 %v301, %v344
      %v374 = vmul.bf16 %v302, %v344
      %v375 = vmul.bf16 %v303, %v344
      %v376 = vmul.bf16 %v304, %v344
      %v377 = vmul.bf16 %v305, %v344
      %v378 = vmul.bf16 %v306, %v344
      %v379 = vmul.bf16 %v307, %v344
      %v380 = vmul.bf16 %v308, %v344
      %v381 = vmul.bf16 %v309, %v344
      %v382 = vmul.bf16 %v310, %v344
      %v383 = vmul.bf16 %v311, %v344
      %v384 = vmul.bf16 %v312, %v344
      %v385 = vmul.bf16 %v313, %v344
      %v386 = vmul.bf16 %v314, %v344
      %v387 = vmul.bf16 %v315, %v344
      %v388 = vmul.bf16 %v316, %v344
      %v389 = vmul.bf16 %v317, %v344
      %v390 = vmul.bf16 %v318, %v344
      %v391 = vmul.bf16 %v319, %v344
      %v392 = vmul.bf16 %v320, %v344
      %v393 = vmul.bf16 %v321, %v344
      %v394 = vmul.bf16 %v322, %v344
      %v395 = vmul.bf16 %v323, %v344
      %v396 = vmul.bf16 %v324, %v344
      %v397 = vmul.bf16 %v325, %v344
      %v398 = vmul.bf16 %v326, %v344
      %v399 = vmul.bf16 %v327, %v344
      %v400 = vmul.bf16 %v328, %v344
      %v401 = vmul.bf16 %v329, %v344
      %v402 = vmul.bf16 %v330, %v344
      %v403 = vmul.bf16 %v331, %v344
      %v404 = vmul.bf16 %v332, %v344
      %v405 = vmul.bf16 %v333, %v344
      %v406 = vld [vmem:[%s3] sm:$0x1]
      %v408 = vpack.i.b16 %v406, %v406
      %v410 = vlaneseq
      %v411 = vshrl.u32 %v410, 7
      %v412 = vsub.s32 0, %v411
      %v413 = vrot.slane %v408, %v412
      %v415 = vunpack.c.l.b16 %v413
      %v416 = vpack.c.b16 %v415, %v415
      %v418 = vadd.bf16 %v346, %v416
      %v419 = vadd.bf16 %v347, %v416
      %v420 = vadd.bf16 %v348, %v416
      %v421 = vadd.bf16 %v349, %v416
      %v422 = vadd.bf16 %v350, %v416
      %v423 = vadd.bf16 %v351, %v416
      %v424 = vadd.bf16 %v352, %v416
      %v425 = vadd.bf16 %v353, %v416
      %v426 = vadd.bf16 %v354, %v416
      %v427 = vadd.bf16 %v355, %v416
      %v428 = vadd.bf16 %v356, %v416
      %v429 = vadd.bf16 %v357, %v416
      %v430 = vadd.bf16 %v358, %v416
      %v431 = vadd.bf16 %v359, %v416
      %v432 = vadd.bf16 %v360, %v416
      %v433 = vadd.bf16 %v361, %v416
      %v434 = vadd.bf16 %v362, %v416
      %v435 = vadd.bf16 %v363, %v416
      %v436 = vadd.bf16 %v364, %v416
      %v437 = vadd.bf16 %v365, %v416
      %v438 = vadd.bf16 %v366, %v416
      %v439 = vadd.bf16 %v367, %v416
      %v440 = vadd.bf16 %v368, %v416
      %v441 = vadd.bf16 %v369, %v416
      %v442 = vadd.bf16 %v370, %v416
      %v443 = vadd.bf16 %v371, %v416
      %v444 = vadd.bf16 %v372, %v416
      %v445 = vadd.bf16 %v373, %v416
      %v446 = vadd.bf16 %v374, %v416
      %v447 = vadd.bf16 %v375, %v416
      %v448 = vadd.bf16 %v376, %v416
      %v449 = vadd.bf16 %v377, %v416
      %v450 = vadd.bf16 %v378, %v416
      %v451 = vadd.bf16 %v379, %v416
      %v452 = vadd.bf16 %v380, %v416
      %v453 = vadd.bf16 %v381, %v416
      %v454 = vadd.bf16 %v382, %v416
      %v455 = vadd.bf16 %v383, %v416
      %v456 = vadd.bf16 %v384, %v416
      %v457 = vadd.bf16 %v385, %v416
      %v458 = vadd.bf16 %v386, %v416
      %v459 = vadd.bf16 %v387, %v416
      %v460 = vadd.bf16 %v388, %v416
      %v461 = vadd.bf16 %v389, %v416
      %v462 = vadd.bf16 %v390, %v416
      %v463 = vadd.bf16 %v391, %v416
      %v464 = vadd.bf16 %v392, %v416
      %v465 = vadd.bf16 %v393, %v416
      %v466 = vadd.bf16 %v394, %v416
      %v467 = vadd.bf16 %v395, %v416
      %v468 = vadd.bf16 %v396, %v416
      %v469 = vadd.bf16 %v397, %v416
      %v470 = vadd.bf16 %v398, %v416
      %v471 = vadd.bf16 %v399, %v416
      %v472 = vadd.bf16 %v400, %v416
      %v473 = vadd.bf16 %v401, %v416
      %v474 = vadd.bf16 %v402, %v416
      %v475 = vadd.bf16 %v403, %v416
      %v476 = vadd.bf16 %v404, %v416
      %v477 = vadd.bf16 %v405, %v416
      %vm478 = vcmp.ge.bf16.partialorder %v418, 0
      %vm479 = vcmp.ge.bf16.partialorder %v419, 0
      %vm480 = vcmp.ge.bf16.partialorder %v420, 0
      %vm481 = vcmp.ge.bf16.partialorder %v421, 0
      %vm482 = vcmp.ge.bf16.partialorder %v422, 0
      %vm483 = vcmp.ge.bf16.partialorder %v423, 0
      %vm484 = vcmp.ge.bf16.partialorder %v424, 0
      %vm485 = vcmp.ge.bf16.partialorder %v425, 0
      %vm486 = vcmp.ge.bf16.partialorder %v426, 0
      %vm487 = vcmp.ge.bf16.partialorder %v427, 0
      %vm488 = vcmp.ge.bf16.partialorder %v428, 0
      %vm489 = vcmp.ge.bf16.partialorder %v429, 0
      %vm490 = vcmp.ge.bf16.partialorder %v430, 0
      %vm491 = vcmp.ge.bf16.partialorder %v431, 0
      %vm492 = vcmp.ge.bf16.partialorder %v432, 0
      %vm493 = vcmp.ge.bf16.partialorder %v433, 0
      %vm494 = vcmp.ge.bf16.partialorder %v434, 0
      %vm495 = vcmp.ge.bf16.partialorder %v435, 0
      %vm496 = vcmp.ge.bf16.partialorder %v436, 0
      %vm497 = vcmp.ge.bf16.partialorder %v437, 0
      %vm498 = vcmp.ge.bf16.partialorder %v438, 0
      %vm499 = vcmp.ge.bf16.partialorder %v439, 0
      %vm500 = vcmp.ge.bf16.partialorder %v440, 0
      %vm501 = vcmp.ge.bf16.partialorder %v441, 0
      %vm502 = vcmp.ge.bf16.partialorder %v442, 0
      %vm503 = vcmp.ge.bf16.partialorder %v443, 0
      %vm504 = vcmp.ge.bf16.partialorder %v444, 0
      %vm505 = vcmp.ge.bf16.partialorder %v445, 0
      %vm506 = vcmp.ge.bf16.partialorder %v446, 0
      %vm507 = vcmp.ge.bf16.partialorder %v447, 0
      %vm508 = vcmp.ge.bf16.partialorder %v448, 0
      %vm509 = vcmp.ge.bf16.partialorder %v449, 0
      %vm510 = vcmp.ge.bf16.partialorder %v450, 0
      %vm511 = vcmp.ge.bf16.partialorder %v451, 0
      %vm512 = vcmp.ge.bf16.partialorder %v452, 0
      %vm513 = vcmp.ge.bf16.partialorder %v453, 0
      %vm514 = vcmp.ge.bf16.partialorder %v454, 0
      %vm515 = vcmp.ge.bf16.partialorder %v455, 0
      %vm516 = vcmp.ge.bf16.partialorder %v456, 0
      %vm517 = vcmp.ge.bf16.partialorder %v457, 0
      %vm518 = vcmp.ge.bf16.partialorder %v458, 0
      %vm519 = vcmp.ge.bf16.partialorder %v459, 0
      %vm520 = vcmp.ge.bf16.partialorder %v460, 0
      %vm521 = vcmp.ge.bf16.partialorder %v461, 0
      %vm522 = vcmp.ge.bf16.partialorder %v462, 0
      %vm523 = vcmp.ge.bf16.partialorder %v463, 0
      %vm524 = vcmp.ge.bf16.partialorder %v464, 0
      %vm525 = vcmp.ge.bf16.partialorder %v465, 0
      %vm526 = vcmp.ge.bf16.partialorder %v466, 0
      %vm527 = vcmp.ge.bf16.partialorder %v467, 0
      %vm528 = vcmp.ge.bf16.partialorder %v468, 0
      %vm529 = vcmp.ge.bf16.partialorder %v469, 0
      %vm530 = vcmp.ge.bf16.partialorder %v470, 0
      %vm531 = vcmp.ge.bf16.partialorder %v471, 0
      %vm532 = vcmp.ge.bf16.partialorder %v472, 0
      %vm533 = vcmp.ge.bf16.partialorder %v473, 0
      %vm534 = vcmp.ge.bf16.partialorder %v474, 0
      %vm535 = vcmp.ge.bf16.partialorder %v475, 0
      %vm536 = vcmp.ge.bf16.partialorder %v476, 0
      %vm537 = vcmp.ge.bf16.partialorder %v477, 0
      %v538 = vmul.bf16 %v418, 1009007652
      %v539 = vmul.bf16 %v419, 1009007652
      %v540 = vmul.bf16 %v420, 1009007652
      %v541 = vmul.bf16 %v421, 1009007652
      %v542 = vmul.bf16 %v422, 1009007652
      %v543 = vmul.bf16 %v423, 1009007652
      %v544 = vmul.bf16 %v424, 1009007652
      %v545 = vmul.bf16 %v425, 1009007652
      %v546 = vmul.bf16 %v426, 1009007652
      %v547 = vmul.bf16 %v427, 1009007652
      %v548 = vmul.bf16 %v428, 1009007652
      %v549 = vmul.bf16 %v429, 1009007652
      %v550 = vmul.bf16 %v430, 1009007652
      %v551 = vmul.bf16 %v431, 1009007652
      %v552 = vmul.bf16 %v432, 1009007652
      %v553 = vmul.bf16 %v433, 1009007652
      %v554 = vmul.bf16 %v434, 1009007652
      %v555 = vmul.bf16 %v435, 1009007652
      %v556 = vmul.bf16 %v436, 1009007652
      %v557 = vmul.bf16 %v437, 1009007652
      %v558 = vmul.bf16 %v438, 1009007652
      %v559 = vmul.bf16 %v439, 1009007652
      %v560 = vmul.bf16 %v440, 1009007652
      %v561 = vmul.bf16 %v441, 1009007652
      %v562 = vmul.bf16 %v442, 1009007652
      %v563 = vmul.bf16 %v443, 1009007652
      %v564 = vmul.bf16 %v444, 1009007652
      %v565 = vmul.bf16 %v445, 1009007652
      %v566 = vmul.bf16 %v446, 1009007652
      %v567 = vmul.bf16 %v447, 1009007652
      %v568 = vmul.bf16 %v448, 1009007652
      %v569 = vmul.bf16 %v449, 1009007652
      %v570 = vmul.bf16 %v450, 1009007652
      %v571 = vmul.bf16 %v451, 1009007652
      %v572 = vmul.bf16 %v452, 1009007652
      %v573 = vmul.bf16 %v453, 1009007652
      %v574 = vmul.bf16 %v454, 1009007652
      %v575 = vmul.bf16 %v455, 1009007652
      %v576 = vmul.bf16 %v456, 1009007652
      %v577 = vmul.bf16 %v457, 1009007652
      %v578 = vmul.bf16 %v458, 1009007652
      %v579 = vmul.bf16 %v459, 1009007652
      %v580 = vmul.bf16 %v460, 1009007652
      %v581 = vmul.bf16 %v461, 1009007652
      %v582 = vmul.bf16 %v462, 1009007652
      %v583 = vmul.bf16 %v463, 1009007652
      %v584 = vmul.bf16 %v464, 1009007652
      %v585 = vmul.bf16 %v465, 1009007652
      %v586 = vmul.bf16 %v466, 1009007652
      %v587 = vmul.bf16 %v467, 1009007652
      %v588 = vmul.bf16 %v468, 1009007652
      %v589 = vmul.bf16 %v469, 1009007652
      %v590 = vmul.bf16 %v470, 1009007652
      %v591 = vmul.bf16 %v471, 1009007652
      %v592 = vmul.bf16 %v472, 1009007652
      %v593 = vmul.bf16 %v473, 1009007652
      %v594 = vmul.bf16 %v474, 1009007652
      %v595 = vmul.bf16 %v475, 1009007652
      %v596 = vmul.bf16 %v476, 1009007652
      %v597 = vmul.bf16 %v477, 1009007652
      %v598 = vsel %vm478, %v418, %v538
      %v599 = vsel %vm479, %v419, %v539
      %v600 = vsel %vm480, %v420, %v540
      %v601 = vsel %vm481, %v421, %v541
      %v602 = vsel %vm482, %v422, %v542
      %v603 = vsel %vm483, %v423, %v543
      %v604 = vsel %vm484, %v424, %v544
      %v605 = vsel %vm485, %v425, %v545
      %v606 = vsel %vm486, %v426, %v546
      %v607 = vsel %vm487, %v427, %v547
      %v608 = vsel %vm488, %v428, %v548
      %v609 = vsel %vm489, %v429, %v549
      %v610 = vsel %vm490, %v430, %v550
      %v611 = vsel %vm491, %v431, %v551
      %v612 = vsel %vm492, %v432, %v552
      %v613 = vsel %vm493, %v433, %v553
      %v614 = vsel %vm494, %v434, %v554
      %v615 = vsel %vm495, %v435, %v555
      %v616 = vsel %vm496, %v436, %v556
      %v617 = vsel %vm497, %v437, %v557
      %v618 = vsel %vm498, %v438, %v558
      %v619 = vsel %vm499, %v439, %v559
      %v620 = vsel %vm500, %v440, %v560
      %v621 = vsel %vm501, %v441, %v561
      %v622 = vsel %vm502, %v442, %v562
      %v623 = vsel %vm503, %v443, %v563
      %v624 = vsel %vm504, %v444, %v564
      %v625 = vsel %vm505, %v445, %v565
      %v626 = vsel %vm506, %v446, %v566
      %v627 = vsel %vm507, %v447, %v567
      %v628 = vsel %vm508, %v448, %v568
      %v629 = vsel %vm509, %v449, %v569
      %v630 = vsel %vm510, %v450, %v570
      %v631 = vsel %vm511, %v451, %v571
      %v632 = vsel %vm512, %v452, %v572
      %v633 = vsel %vm513, %v453, %v573
      %v634 = vsel %vm514, %v454, %v574
      %v635 = vsel %vm515, %v455, %v575
      %v636 = vsel %vm516, %v456, %v576
      %v637 = vsel %vm517, %v457, %v577
      %v638 = vsel %vm518, %v458, %v578
      %v639 = vsel %vm519, %v459, %v579
      %v640 = vsel %vm520, %v460, %v580
      %v641 = vsel %vm521, %v461, %v581
      %v642 = vsel %vm522, %v462, %v582
      %v643 = vsel %vm523, %v463, %v583
      %v644 = vsel %vm524, %v464, %v584
      %v645 = vsel %vm525, %v465, %v585
      %v646 = vsel %vm526, %v466, %v586
      %v647 = vsel %vm527, %v467, %v587
      %v648 = vsel %vm528, %v468, %v588
      %v649 = vsel %vm529, %v469, %v589
      %v650 = vsel %vm530, %v470, %v590
      %v651 = vsel %vm531, %v471, %v591
      %v652 = vsel %vm532, %v472, %v592
      %v653 = vsel %vm533, %v473, %v593
      %v654 = vsel %vm534, %v474, %v594
      %v655 = vsel %vm535, %v475, %v595
      %v656 = vsel %vm536, %v476, %v596
      %v657 = vsel %vm537, %v477, %v597
      %v658 = vlaneseq
      %v659 = vshrl.u32 %v658, 7
      %v660 = vadd.s32 %v659, 8
      %v661 = vadd.s32 %v659, 16
      %s662 = smul.u32 %s22, 16
      %v663 = vstv %s662
      %v664 = vadd.s32 %v663, 1
      %v665 = vadd.s32 %v663, 3
      %v666 = vadd.s32 %v663, 4
      %v667 = vadd.s32 %v663, 5
      %v668 = vadd.s32 %v663, 6
      %v669 = vadd.s32 %v663, 7
      %v670 = vadd.s32 %v663, 8
      %v671 = vadd.s32 %v663, 9
      %v672 = vadd.s32 %v663, 10
      %v673 = vadd.s32 %v663, 11
      %v674 = vadd.s32 %v663, 12
      %v675 = vadd.s32 %v663, 13
      %v676 = vadd.s32 %v663, 14
      %v677 = vadd.s32 %v663, 15
      %v678 = vadd.s32 %v663, 16
      %v679 = vadd.s32 %v663, 17
      %v680 = vadd.s32 %v663, 18
      %v681 = vadd.s32 %v663, 19
      %v682 = vsub.s32 %v663, 2
      %v683 = vsub.s32 %v664, 2
      %v684 = vsub.s32 %v665, 2
      %v685 = vsub.s32 %v666, 2
      %v686 = vsub.s32 %v667, 2
      %v687 = vsub.s32 %v668, 2
      %v688 = vsub.s32 %v669, 2
      %v689 = vsub.s32 %v670, 2
      %v690 = vsub.s32 %v671, 2
      %v691 = vsub.s32 %v672, 2
      %v692 = vsub.s32 %v673, 2
      %v693 = vsub.s32 %v674, 2
      %v694 = vsub.s32 %v675, 2
      %v695 = vsub.s32 %v676, 2
      %v696 = vsub.s32 %v677, 2
      %v697 = vsub.s32 %v678, 2
      %v698 = vsub.s32 %v679, 2
      %v699 = vsub.s32 %v680, 2
      %v700 = vsub.s32 %v681, 2
      %vm701 = vcmp.ge.s32.totalorder %v682, 0
      %vm702 = vcmp.ge.s32.totalorder %v683, 0
      %vm703 = vcmp.ge.s32.totalorder %v663, 0
      %vm704 = vcmp.ge.s32.totalorder %v684, 0
      %vm705 = vcmp.ge.s32.totalorder %v685, 0
      %vm706 = vcmp.ge.s32.totalorder %v686, 0
      %vm707 = vcmp.ge.s32.totalorder %v687, 0
      %vm708 = vcmp.ge.s32.totalorder %v688, 0
      %vm709 = vcmp.ge.s32.totalorder %v689, 0
      %vm710 = vcmp.ge.s32.totalorder %v690, 0
      %vm711 = vcmp.ge.s32.totalorder %v691, 0
      %vm712 = vcmp.ge.s32.totalorder %v692, 0
      %vm713 = vcmp.ge.s32.totalorder %v693, 0
      %vm714 = vcmp.ge.s32.totalorder %v694, 0
      %vm715 = vcmp.ge.s32.totalorder %v695, 0
      %vm716 = vcmp.ge.s32.totalorder %v696, 0
      %vm717 = vcmp.ge.s32.totalorder %v697, 0
      %vm718 = vcmp.ge.s32.totalorder %v698, 0
      %vm719 = vcmp.ge.s32.totalorder %v699, 0
      %vm720 = vcmp.ge.s32.totalorder %v700, 0
      %vm721 = vcmp.lt.s32.totalorder %v682, 16
      %vm722 = vcmp.lt.s32.totalorder %v683, 16
      %vm723 = vcmp.lt.s32.totalorder %v663, 16
      %vm724 = vcmp.lt.s32.totalorder %v684, 16
      %vm725 = vcmp.lt.s32.totalorder %v685, 16
      %vm726 = vcmp.lt.s32.totalorder %v686, 16
      %vm727 = vcmp.lt.s32.totalorder %v687, 16
      %vm728 = vcmp.lt.s32.totalorder %v688, 16
      %vm729 = vcmp.lt.s32.totalorder %v689, 16
      %vm730 = vcmp.lt.s32.totalorder %v690, 16
      %vm731 = vcmp.lt.s32.totalorder %v691, 16
      %vm732 = vcmp.lt.s32.totalorder %v692, 16
      %vm733 = vcmp.lt.s32.totalorder %v693, 16
      %vm734 = vcmp.lt.s32.totalorder %v694, 16
      %vm735 = vcmp.lt.s32.totalorder %v695, 16
      %vm736 = vcmp.lt.s32.totalorder %v696, 16
      %vm737 = vcmp.lt.s32.totalorder %v697, 16
      %vm738 = vcmp.lt.s32.totalorder %v698, 16
      %vm739 = vcmp.lt.s32.totalorder %v699, 16
      %vm740 = vcmp.lt.s32.totalorder %v700, 16
      %vm741 = vmand %vm701, %vm721
      %vm742 = vmand %vm702, %vm722
      %vm743 = vmand %vm703, %vm723
      %vm744 = vmand %vm704, %vm724
      %vm745 = vmand %vm705, %vm725
      %vm746 = vmand %vm706, %vm726
      %vm747 = vmand %vm707, %vm727
      %vm748 = vmand %vm708, %vm728
      %vm749 = vmand %vm709, %vm729
      %vm750 = vmand %vm710, %vm730
      %vm751 = vmand %vm711, %vm731
      %vm752 = vmand %vm712, %vm732
      %vm753 = vmand %vm713, %vm733
      %vm754 = vmand %vm714, %vm734
      %vm755 = vmand %vm715, %vm735
      %vm756 = vmand %vm716, %vm736
      %vm757 = vmand %vm717, %vm737
      %vm758 = vmand %vm718, %vm738
      %vm759 = vmand %vm719, %vm739
      %vm760 = vmand %vm720, %vm740
      %vm761 = vcmp.ge.s32.totalorder %v659, 1
      %vm762 = vcmp.ge.s32.totalorder %v660, 1
      %vm763 = vcmp.ge.s32.totalorder %v661, 1
      %vm764 = vmand %vm741, %vm761
      %vm765 = vmand %vm741, %vm762
      %vm766 = vmand %vm741, %vm763
      %vm767 = vmand %vm742, %vm761
      %vm768 = vmand %vm742, %vm762
      %vm769 = vmand %vm742, %vm763
      %vm770 = vmand %vm743, %vm761
      %vm771 = vmand %vm743, %vm762
      %vm772 = vmand %vm743, %vm763
      %vm773 = vmand %vm744, %vm761
      %vm774 = vmand %vm744, %vm762
      %vm775 = vmand %vm744, %vm763
      %vm776 = vmand %vm745, %vm761
      %vm777 = vmand %vm745, %vm762
      %vm778 = vmand %vm745, %vm763
      %vm779 = vmand %vm746, %vm761
      %vm780 = vmand %vm746, %vm762
      %vm781 = vmand %vm746, %vm763
      %vm782 = vmand %vm747, %vm761
      %vm783 = vmand %vm747, %vm762
      %vm784 = vmand %vm747, %vm763
      %vm785 = vmand %vm748, %vm761
      %vm786 = vmand %vm748, %vm762
      %vm787 = vmand %vm748, %vm763
      %vm788 = vmand %vm749, %vm761
      %vm789 = vmand %vm749, %vm762
      %vm790 = vmand %vm749, %vm763
      %vm791 = vmand %vm750, %vm761
      %vm792 = vmand %vm750, %vm762
      %vm793 = vmand %vm750, %vm763
      %vm794 = vmand %vm751, %vm761
      %vm795 = vmand %vm751, %vm762
      %vm796 = vmand %vm751, %vm763
      %vm797 = vmand %vm752, %vm761
      %vm798 = vmand %vm752, %vm762
      %vm799 = vmand %vm752, %vm763
      %vm800 = vmand %vm753, %vm761
      %vm801 = vmand %vm753, %vm762
      %vm802 = vmand %vm753, %vm763
      %vm803 = vmand %vm754, %vm761
      %vm804 = vmand %vm754, %vm762
      %vm805 = vmand %vm754, %vm763
      %vm806 = vmand %vm755, %vm761
      %vm807 = vmand %vm755, %vm762
      %vm808 = vmand %vm755, %vm763
      %vm809 = vmand %vm756, %vm761
      %vm810 = vmand %vm756, %vm762
      %vm811 = vmand %vm756, %vm763
      %vm812 = vmand %vm757, %vm761
      %vm813 = vmand %vm757, %vm762
      %vm814 = vmand %vm757, %vm763
      %vm815 = vmand %vm758, %vm761
      %vm816 = vmand %vm758, %vm762
      %vm817 = vmand %vm758, %vm763
      %vm818 = vmand %vm759, %vm761
      %vm819 = vmand %vm759, %vm762
      %vm820 = vmand %vm759, %vm763
      %vm821 = vmand %vm760, %vm761
      %vm822 = vmand %vm760, %vm762
      %vm823 = vmand %vm760, %vm763
      %vm824 = vcmp.le.s32.totalorder %v659, 16
      %vm825 = vcmp.le.s32.totalorder %v660, 16
      %vm826 = vcmp.le.s32.totalorder %v661, 16
      %vm827 = vmand %vm764, %vm824
      %vm828 = vmand %vm765, %vm825
      %vm829 = vmand %vm766, %vm826
      %vm830 = vmand %vm767, %vm824
      %vm831 = vmand %vm768, %vm825
      %vm832 = vmand %vm769, %vm826
      %vm833 = vmand %vm770, %vm824
      %vm834 = vmand %vm771, %vm825
      %vm835 = vmand %vm772, %vm826
      %vm836 = vmand %vm773, %vm824
      %vm837 = vmand %vm774, %vm825
      %vm838 = vmand %vm775, %vm826
      %vm839 = vmand %vm776, %vm824
      %vm840 = vmand %vm777, %vm825
      %vm841 = vmand %vm778, %vm826
      %vm842 = vmand %vm779, %vm824
      %vm843 = vmand %vm780, %vm825
      %vm844 = vmand %vm781, %vm826
      %vm845 = vmand %vm782, %vm824
      %vm846 = vmand %vm783, %vm825
      %vm847 = vmand %vm784, %vm826
      %vm848 = vmand %vm785, %vm824
      %vm849 = vmand %vm786, %vm825
      %vm850 = vmand %vm787, %vm826
      %vm851 = vmand %vm788, %vm824
      %vm852 = vmand %vm789, %vm825
      %vm853 = vmand %vm790, %vm826
      %vm854 = vmand %vm791, %vm824
      %vm855 = vmand %vm792, %vm825
      %vm856 = vmand %vm793, %vm826
      %vm857 = vmand %vm794, %vm824
      %vm858 = vmand %vm795, %vm825
      %vm859 = vmand %vm796, %vm826
      %vm860 = vmand %vm797, %vm824
      %vm861 = vmand %vm798, %vm825
      %vm862 = vmand %vm799, %vm826
      %vm863 = vmand %vm800, %vm824
      %vm864 = vmand %vm801, %vm825
      %vm865 = vmand %vm802, %vm826
      %vm866 = vmand %vm803, %vm824
      %vm867 = vmand %vm804, %vm825
      %vm868 = vmand %vm805, %vm826
      %vm869 = vmand %vm806, %vm824
      %vm870 = vmand %vm807, %vm825
      %vm871 = vmand %vm808, %vm826
      %vm872 = vmand %vm809, %vm824
      %vm873 = vmand %vm810, %vm825
      %vm874 = vmand %vm811, %vm826
      %vm875 = vmand %vm812, %vm824
      %vm876 = vmand %vm813, %vm825
      %vm877 = vmand %vm814, %vm826
      %vm878 = vmand %vm815, %vm824
      %vm879 = vmand %vm816, %vm825
      %vm880 = vmand %vm817, %vm826
      %vm881 = vmand %vm818, %vm824
      %vm882 = vmand %vm819, %vm825
      %vm883 = vmand %vm820, %vm826
      %vm884 = vmand %vm821, %vm824
      %vm885 = vmand %vm822, %vm825
      %vm886 = vmand %vm823, %vm826
      %v887 = vsel %vm827, 1, 0
      %v888 = vsel %vm828, 1, 0
      %v889 = vsel %vm829, 1, 0
      %v890 = vsel %vm830, 1, 0
      %v891 = vsel %vm831, 1, 0
      %v892 = vsel %vm832, 1, 0
      %v893 = vsel %vm833, 1, 0
      %v894 = vsel %vm834, 1, 0
      %v895 = vsel %vm835, 1, 0
      %v896 = vsel %vm836, 1, 0
      %v897 = vsel %vm837, 1, 0
      %v898 = vsel %vm838, 1, 0
      %v899 = vsel %vm839, 1, 0
      %v900 = vsel %vm840, 1, 0
      %v901 = vsel %vm841, 1, 0
      %v902 = vsel %vm842, 1, 0
      %v903 = vsel %vm843, 1, 0
      %v904 = vsel %vm844, 1, 0
      %v905 = vsel %vm845, 1, 0
      %v906 = vsel %vm846, 1, 0
      %v907 = vsel %vm847, 1, 0
      %v908 = vsel %vm848, 1, 0
      %v909 = vsel %vm849, 1, 0
      %v910 = vsel %vm850, 1, 0
      %v911 = vsel %vm851, 1, 0
      %v912 = vsel %vm852, 1, 0
      %v913 = vsel %vm853, 1, 0
      %v914 = vsel %vm854, 1, 0
      %v915 = vsel %vm855, 1, 0
      %v916 = vsel %vm856, 1, 0
      %v917 = vsel %vm857, 1, 0
      %v918 = vsel %vm858, 1, 0
      %v919 = vsel %vm859, 1, 0
      %v920 = vsel %vm860, 1, 0
      %v921 = vsel %vm861, 1, 0
      %v922 = vsel %vm862, 1, 0
      %v923 = vsel %vm863, 1, 0
      %v924 = vsel %vm864, 1, 0
      %v925 = vsel %vm865, 1, 0
      %v926 = vsel %vm866, 1, 0
      %v927 = vsel %vm867, 1, 0
      %v928 = vsel %vm868, 1, 0
      %v929 = vsel %vm869, 1, 0
      %v930 = vsel %vm870, 1, 0
      %v931 = vsel %vm871, 1, 0
      %v932 = vsel %vm872, 1, 0
      %v933 = vsel %vm873, 1, 0
      %v934 = vsel %vm874, 1, 0
      %v935 = vsel %vm875, 1, 0
      %v936 = vsel %vm876, 1, 0
      %v937 = vsel %vm877, 1, 0
      %v938 = vsel %vm878, 1, 0
      %v939 = vsel %vm879, 1, 0
      %v940 = vsel %vm880, 1, 0
      %v941 = vsel %vm881, 1, 0
      %v942 = vsel %vm882, 1, 0
      %v943 = vsel %vm883, 1, 0
      %v944 = vsel %vm884, 1, 0
      %v945 = vsel %vm885, 1, 0
      %v946 = vsel %vm886, 1, 0
      %vm947 = vcmp.eq.s32.totalorder %v887, 1
      %vm948 = vcmp.eq.s32.totalorder %v888, 1
      %vm949 = vcmp.eq.s32.totalorder %v889, 1
      %vm950 = vcmp.eq.s32.totalorder %v890, 1
      %vm951 = vcmp.eq.s32.totalorder %v891, 1
      %vm952 = vcmp.eq.s32.totalorder %v892, 1
      %vm953 = vcmp.eq.s32.totalorder %v893, 1
      %vm954 = vcmp.eq.s32.totalorder %v894, 1
      %vm955 = vcmp.eq.s32.totalorder %v895, 1
      %vm956 = vcmp.eq.s32.totalorder %v896, 1
      %vm957 = vcmp.eq.s32.totalorder %v897, 1
      %vm958 = vcmp.eq.s32.totalorder %v898, 1
      %vm959 = vcmp.eq.s32.totalorder %v899, 1
      %vm960 = vcmp.eq.s32.totalorder %v900, 1
      %vm961 = vcmp.eq.s32.totalorder %v901, 1
      %vm962 = vcmp.eq.s32.totalorder %v902, 1
      %vm963 = vcmp.eq.s32.totalorder %v903, 1
      %vm964 = vcmp.eq.s32.totalorder %v904, 1
      %vm965 = vcmp.eq.s32.totalorder %v905, 1
      %vm966 = vcmp.eq.s32.totalorder %v906, 1
      %vm967 = vcmp.eq.s32.totalorder %v907, 1
      %vm968 = vcmp.eq.s32.totalorder %v908, 1
      %vm969 = vcmp.eq.s32.totalorder %v909, 1
      %vm970 = vcmp.eq.s32.totalorder %v910, 1
      %vm971 = vcmp.eq.s32.totalorder %v911, 1
      %vm972 = vcmp.eq.s32.totalorder %v912, 1
      %vm973 = vcmp.eq.s32.totalorder %v913, 1
      %vm974 = vcmp.eq.s32.totalorder %v914, 1
      %vm975 = vcmp.eq.s32.totalorder %v915, 1
      %vm976 = vcmp.eq.s32.totalorder %v916, 1
      %vm977 = vcmp.eq.s32.totalorder %v917, 1
      %vm978 = vcmp.eq.s32.totalorder %v918, 1
      %vm979 = vcmp.eq.s32.totalorder %v919, 1
      %vm980 = vcmp.eq.s32.totalorder %v920, 1
      %vm981 = vcmp.eq.s32.totalorder %v921, 1
      %vm982 = vcmp.eq.s32.totalorder %v922, 1
      %vm983 = vcmp.eq.s32.totalorder %v923, 1
      %vm984 = vcmp.eq.s32.totalorder %v924, 1
      %vm985 = vcmp.eq.s32.totalorder %v925, 1
      %vm986 = vcmp.eq.s32.totalorder %v926, 1
      %vm987 = vcmp.eq.s32.totalorder %v927, 1
      %vm988 = vcmp.eq.s32.totalorder %v928, 1
      %vm989 = vcmp.eq.s32.totalorder %v929, 1
      %vm990 = vcmp.eq.s32.totalorder %v930, 1
      %vm991 = vcmp.eq.s32.totalorder %v931, 1
      %vm992 = vcmp.eq.s32.totalorder %v932, 1
      %vm993 = vcmp.eq.s32.totalorder %v933, 1
      %vm994 = vcmp.eq.s32.totalorder %v934, 1
      %vm995 = vcmp.eq.s32.totalorder %v935, 1
      %vm996 = vcmp.eq.s32.totalorder %v936, 1
      %vm997 = vcmp.eq.s32.totalorder %v937, 1
      %vm998 = vcmp.eq.s32.totalorder %v938, 1
      %vm999 = vcmp.eq.s32.totalorder %v939, 1
      %vm1000 = vcmp.eq.s32.totalorder %v940, 1
      %vm1001 = vcmp.eq.s32.totalorder %v941, 1
      %vm1002 = vcmp.eq.s32.totalorder %v942, 1
      %vm1003 = vcmp.eq.s32.totalorder %v943, 1
      %vm1004 = vcmp.eq.s32.totalorder %v944, 1
      %vm1005 = vcmp.eq.s32.totalorder %v945, 1
      %vm1006 = vcmp.eq.s32.totalorder %v946, 1
      %vm1007 = vmpackc.low %vm947, %vm947
      %vm1008 = vmpackc.low %vm948, %vm948
      %vm1009 = vmpackc.low %vm949, %vm949
      %vm1010 = vmpackc.low %vm950, %vm950
      %vm1011 = vmpackc.low %vm951, %vm951
      %vm1012 = vmpackc.low %vm952, %vm952
      %vm1013 = vmpackc.low %vm953, %vm953
      %vm1014 = vmpackc.low %vm954, %vm954
      %vm1015 = vmpackc.low %vm955, %vm955
      %vm1016 = vmpackc.low %vm956, %vm956
      %vm1017 = vmpackc.low %vm957, %vm957
      %vm1018 = vmpackc.low %vm958, %vm958
      %vm1019 = vmpackc.low %vm959, %vm959
      %vm1020 = vmpackc.low %vm960, %vm960
      %vm1021 = vmpackc.low %vm961, %vm961
      %vm1022 = vmpackc.low %vm962, %vm962
      %vm1023 = vmpackc.low %vm963, %vm963
      %vm1024 = vmpackc.low %vm964, %vm964
      %vm1025 = vmpackc.low %vm965, %vm965
      %vm1026 = vmpackc.low %vm966, %vm966
      %vm1027 = vmpackc.low %vm967, %vm967
      %vm1028 = vmpackc.low %vm968, %vm968
      %vm1029 = vmpackc.low %vm969, %vm969
      %vm1030 = vmpackc.low %vm970, %vm970
      %vm1031 = vmpackc.low %vm971, %vm971
      %vm1032 = vmpackc.low %vm972, %vm972
      %vm1033 = vmpackc.low %vm973, %vm973
      %vm1034 = vmpackc.low %vm974, %vm974
      %vm1035 = vmpackc.low %vm975, %vm975
      %vm1036 = vmpackc.low %vm976, %vm976
      %vm1037 = vmpackc.low %vm977, %vm977
      %vm1038 = vmpackc.low %vm978, %vm978
      %vm1039 = vmpackc.low %vm979, %vm979
      %vm1040 = vmpackc.low %vm980, %vm980
      %vm1041 = vmpackc.low %vm981, %vm981
      %vm1042 = vmpackc.low %vm982, %vm982
      %vm1043 = vmpackc.low %vm983, %vm983
      %vm1044 = vmpackc.low %vm984, %vm984
      %vm1045 = vmpackc.low %vm985, %vm985
      %vm1046 = vmpackc.low %vm986, %vm986
      %vm1047 = vmpackc.low %vm987, %vm987
      %vm1048 = vmpackc.low %vm988, %vm988
      %vm1049 = vmpackc.low %vm989, %vm989
      %vm1050 = vmpackc.low %vm990, %vm990
      %vm1051 = vmpackc.low %vm991, %vm991
      %vm1052 = vmpackc.low %vm992, %vm992
      %vm1053 = vmpackc.low %vm993, %vm993
      %vm1054 = vmpackc.low %vm994, %vm994
      %vm1055 = vmpackc.low %vm995, %vm995
      %vm1056 = vmpackc.low %vm996, %vm996
      %vm1057 = vmpackc.low %vm997, %vm997
      %vm1058 = vmpackc.low %vm998, %vm998
      %vm1059 = vmpackc.low %vm999, %vm999
      %vm1060 = vmpackc.low %vm1000, %vm1000
      %vm1061 = vmpackc.low %vm1001, %vm1001
      %vm1062 = vmpackc.low %vm1002, %vm1002
      %vm1063 = vmpackc.low %vm1003, %vm1003
      %vm1064 = vmpackc.low %vm1004, %vm1004
      %vm1065 = vmpackc.low %vm1005, %vm1005
      %vm1066 = vmpackc.low %vm1006, %vm1006
      %v1067 = vsel %vm1007, %v598, 0
      %v1068 = vsel %vm1008, %v599, 0
      %v1069 = vsel %vm1009, %v600, 0
      %v1070 = vsel %vm1010, %v601, 0
      %v1071 = vsel %vm1011, %v602, 0
      %v1072 = vsel %vm1012, %v603, 0
      %v1073 = vsel %vm1013, %v604, 0
      %v1074 = vsel %vm1014, %v605, 0
      %v1075 = vsel %vm1015, %v606, 0
      %v1076 = vsel %vm1016, %v607, 0
      %v1077 = vsel %vm1017, %v608, 0
      %v1078 = vsel %vm1018, %v609, 0
      %v1079 = vsel %vm1019, %v610, 0
      %v1080 = vsel %vm1020, %v611, 0
      %v1081 = vsel %vm1021, %v612, 0
      %v1082 = vsel %vm1022, %v613, 0
      %v1083 = vsel %vm1023, %v614, 0
      %v1084 = vsel %vm1024, %v615, 0
      %v1085 = vsel %vm1025, %v616, 0
      %v1086 = vsel %vm1026, %v617, 0
      %v1087 = vsel %vm1027, %v618, 0
      %v1088 = vsel %vm1028, %v619, 0
      %v1089 = vsel %vm1029, %v620, 0
      %v1090 = vsel %vm1030, %v621, 0
      %v1091 = vsel %vm1031, %v622, 0
      %v1092 = vsel %vm1032, %v623, 0
      %v1093 = vsel %vm1033, %v624, 0
      %v1094 = vsel %vm1034, %v625, 0
      %v1095 = vsel %vm1035, %v626, 0
      %v1096 = vsel %vm1036, %v627, 0
      %v1097 = vsel %vm1037, %v628, 0
      %v1098 = vsel %vm1038, %v629, 0
      %v1099 = vsel %vm1039, %v630, 0
      %v1100 = vsel %vm1040, %v631, 0
      %v1101 = vsel %vm1041, %v632, 0
      %v1102 = vsel %vm1042, %v633, 0
      %v1103 = vsel %vm1043, %v634, 0
      %v1104 = vsel %vm1044, %v635, 0
      %v1105 = vsel %vm1045, %v636, 0
      %v1106 = vsel %vm1046, %v637, 0
      %v1107 = vsel %vm1047, %v638, 0
      %v1108 = vsel %vm1048, %v639, 0
      %v1109 = vsel %vm1049, %v640, 0
      %v1110 = vsel %vm1050, %v641, 0
      %v1111 = vsel %vm1051, %v642, 0
      %v1112 = vsel %vm1052, %v643, 0
      %v1113 = vsel %vm1053, %v644, 0
      %v1114 = vsel %vm1054, %v645, 0
      %v1115 = vsel %vm1055, %v646, 0
      %v1116 = vsel %vm1056, %v647, 0
      %v1117 = vsel %vm1057, %v648, 0
      %v1118 = vsel %vm1058, %v649, 0
      %v1119 = vsel %vm1059, %v650, 0
      %v1120 = vsel %vm1060, %v651, 0
      %v1121 = vsel %vm1061, %v652, 0
      %v1122 = vsel %vm1062, %v653, 0
      %v1123 = vsel %vm1063, %v654, 0
      %v1124 = vsel %vm1064, %v655, 0
      %v1125 = vsel %vm1065, %v656, 0
      %v1126 = vsel %vm1066, %v657, 0
      %v1167 = vunpack.c.l.b16 %v1067
      %v1168 = vunpack.c.l.b16 %v1068
      %v1169 = vunpack.c.l.b16 %v1070
      %v1170 = vunpack.c.l.b16 %v1071
      %v1171 = vunpack.c.l.b16 %v1073
      %v1172 = vunpack.c.l.b16 %v1074
      %v1173 = vunpack.c.l.b16 %v1076
      %v1174 = vunpack.c.l.b16 %v1077
      %v1175 = vunpack.c.l.b16 %v1079
      %v1176 = vunpack.c.l.b16 %v1080
      %v1177 = vunpack.c.l.b16 %v1082
      %v1178 = vunpack.c.l.b16 %v1083
      %v1179 = vunpack.c.l.b16 %v1085
      %v1180 = vunpack.c.l.b16 %v1086
      %v1181 = vunpack.c.l.b16 %v1088
      %v1182 = vunpack.c.l.b16 %v1089
      %v1183 = vunpack.c.l.b16 %v1091
      %v1184 = vunpack.c.l.b16 %v1092
      %v1185 = vunpack.c.l.b16 %v1094
      %v1186 = vunpack.c.l.b16 %v1095
      %v1187 = vunpack.c.l.b16 %v1097
      %v1188 = vunpack.c.l.b16 %v1098
      %v1189 = vunpack.c.l.b16 %v1100
      %v1190 = vunpack.c.l.b16 %v1101
      %v1191 = vunpack.c.l.b16 %v1103
      %v1192 = vunpack.c.l.b16 %v1104
      %v1193 = vunpack.c.l.b16 %v1106
      %v1194 = vunpack.c.l.b16 %v1107
      %v1195 = vunpack.c.l.b16 %v1109
      %v1196 = vunpack.c.l.b16 %v1110
      %v1197 = vunpack.c.l.b16 %v1112
      %v1198 = vunpack.c.l.b16 %v1113
      %v1199 = vunpack.c.l.b16 %v1115
      %v1200 = vunpack.c.l.b16 %v1116
      %v1201 = vunpack.c.l.b16 %v1118
      %v1202 = vunpack.c.l.b16 %v1119
      %v1203 = vunpack.c.l.b16 %v1121
      %v1204 = vunpack.c.l.b16 %v1122
      %v1205 = vunpack.c.l.b16 %v1124
      %v1206 = vunpack.c.l.b16 %v1125
      %v1207 = vpack.c.b16 %v1168, %v1167
      %v1208 = vpack.c.b16 %v1170, %v1169
      %v1209 = vpack.c.b16 %v1172, %v1171
      %v1210 = vpack.c.b16 %v1174, %v1173
      %v1211 = vpack.c.b16 %v1176, %v1175
      %v1212 = vpack.c.b16 %v1178, %v1177
      %v1213 = vpack.c.b16 %v1180, %v1179
      %v1214 = vpack.c.b16 %v1182, %v1181
      %v1215 = vpack.c.b16 %v1184, %v1183
      %v1216 = vpack.c.b16 %v1186, %v1185
      %v1217 = vpack.c.b16 %v1188, %v1187
      %v1218 = vpack.c.b16 %v1190, %v1189
      %v1219 = vpack.c.b16 %v1192, %v1191
      %v1220 = vpack.c.b16 %v1194, %v1193
      %v1221 = vpack.c.b16 %v1196, %v1195
      %v1222 = vpack.c.b16 %v1198, %v1197
      %v1223 = vpack.c.b16 %v1200, %v1199
      %v1224 = vpack.c.b16 %v1202, %v1201
      %v1225 = vpack.c.b16 %v1204, %v1203
      %v1226 = vpack.c.b16 %v1206, %v1205
      %v1247 = vunpack.c.l.b16 %v1069
      %v1248 = vunpack.c.l.b16 %v1072
      %v1249 = vunpack.c.l.b16 %v1075
      %v1250 = vunpack.c.l.b16 %v1078
      %v1251 = vunpack.c.l.b16 %v1081
      %v1252 = vunpack.c.l.b16 %v1084
      %v1253 = vunpack.c.l.b16 %v1087
      %v1254 = vunpack.c.l.b16 %v1090
      %v1255 = vunpack.c.l.b16 %v1093
      %v1256 = vunpack.c.l.b16 %v1096
      %v1257 = vunpack.c.l.b16 %v1099
      %v1258 = vunpack.c.l.b16 %v1102
      %v1259 = vunpack.c.l.b16 %v1105
      %v1260 = vunpack.c.l.b16 %v1108
      %v1261 = vunpack.c.l.b16 %v1111
      %v1262 = vunpack.c.l.b16 %v1114
      %v1263 = vunpack.c.l.b16 %v1117
      %v1264 = vunpack.c.l.b16 %v1120
      %v1265 = vunpack.c.l.b16 %v1123
      %v1266 = vunpack.c.l.b16 %v1126
      %v1267 = vpack.c.b16 %v1247, %v1247
      %v1268 = vpack.c.b16 %v1248, %v1248
      %v1269 = vpack.c.b16 %v1249, %v1249
      %v1270 = vpack.c.b16 %v1250, %v1250
      %v1271 = vpack.c.b16 %v1251, %v1251
      %v1272 = vpack.c.b16 %v1252, %v1252
      %v1273 = vpack.c.b16 %v1253, %v1253
      %v1274 = vpack.c.b16 %v1254, %v1254
      %v1275 = vpack.c.b16 %v1255, %v1255
      %v1276 = vpack.c.b16 %v1256, %v1256
      %v1277 = vpack.c.b16 %v1257, %v1257
      %v1278 = vpack.c.b16 %v1258, %v1258
      %v1279 = vpack.c.b16 %v1259, %v1259
      %v1280 = vpack.c.b16 %v1260, %v1260
      %v1281 = vpack.c.b16 %v1261, %v1261
      %v1282 = vpack.c.b16 %v1262, %v1262
      %v1283 = vpack.c.b16 %v1263, %v1263
      %v1284 = vpack.c.b16 %v1264, %v1264
      %v1285 = vpack.c.b16 %v1265, %v1265
      %v1286 = vpack.c.b16 %v1266, %v1266
      %vm1287 = vsmask.f32 7424
      %v1289 = vshrl.u32 %v1207, 16
      %v1291 = vshll.u32 %v1207, 16
      %v1293 = vrot.slane %v1291, 1
      %v1294 = vor.u32 %v1289, %v1293
      %v1296 = vshll.u32 %v1267, 16
      %v1298 = vrot.slane %v1296, 1
      %v1299 = vsel %vm1287, %v1294, %v1298
      %v1301 = vshrl.u32 %v1208, 16
      %v1303 = vshll.u32 %v1208, 16
      %v1305 = vrot.slane %v1303, 1
      %v1306 = vor.u32 %v1301, %v1305
      %v1308 = vshll.u32 %v1268, 16
      %v1310 = vrot.slane %v1308, 1
      %v1311 = vsel %vm1287, %v1306, %v1310
      %v1313 = vshrl.u32 %v1209, 16
      %v1315 = vshll.u32 %v1209, 16
      %v1317 = vrot.slane %v1315, 1
      %v1318 = vor.u32 %v1313, %v1317
      %v1320 = vshll.u32 %v1269, 16
      %v1322 = vrot.slane %v1320, 1
      %v1323 = vsel %vm1287, %v1318, %v1322
      %v1325 = vshrl.u32 %v1210, 16
      %v1327 = vshll.u32 %v1210, 16
      %v1329 = vrot.slane %v1327, 1
      %v1330 = vor.u32 %v1325, %v1329
      %v1332 = vshll.u32 %v1270, 16
      %v1334 = vrot.slane %v1332, 1
      %v1335 = vsel %vm1287, %v1330, %v1334
      %v1337 = vshrl.u32 %v1211, 16
      %v1339 = vshll.u32 %v1211, 16
      %v1341 = vrot.slane %v1339, 1
      %v1342 = vor.u32 %v1337, %v1341
      %v1344 = vshll.u32 %v1271, 16
      %v1346 = vrot.slane %v1344, 1
      %v1347 = vsel %vm1287, %v1342, %v1346
      %v1349 = vshrl.u32 %v1212, 16
      %v1351 = vshll.u32 %v1212, 16
      %v1353 = vrot.slane %v1351, 1
      %v1354 = vor.u32 %v1349, %v1353
      %v1356 = vshll.u32 %v1272, 16
      %v1358 = vrot.slane %v1356, 1
      %v1359 = vsel %vm1287, %v1354, %v1358
      %v1361 = vshrl.u32 %v1213, 16
      %v1363 = vshll.u32 %v1213, 16
      %v1365 = vrot.slane %v1363, 1
      %v1366 = vor.u32 %v1361, %v1365
      %v1368 = vshll.u32 %v1273, 16
      %v1370 = vrot.slane %v1368, 1
      %v1371 = vsel %vm1287, %v1366, %v1370
      %v1373 = vshrl.u32 %v1214, 16
      %v1375 = vshll.u32 %v1214, 16
      %v1377 = vrot.slane %v1375, 1
      %v1378 = vor.u32 %v1373, %v1377
      %v1380 = vshll.u32 %v1274, 16
      %v1382 = vrot.slane %v1380, 1
      %v1383 = vsel %vm1287, %v1378, %v1382
      %v1385 = vshrl.u32 %v1215, 16
      %v1387 = vshll.u32 %v1215, 16
      %v1389 = vrot.slane %v1387, 1
      %v1390 = vor.u32 %v1385, %v1389
      %v1392 = vshll.u32 %v1275, 16
      %v1394 = vrot.slane %v1392, 1
      %v1395 = vsel %vm1287, %v1390, %v1394
      %v1397 = vshrl.u32 %v1216, 16
      %v1399 = vshll.u32 %v1216, 16
      %v1401 = vrot.slane %v1399, 1
      %v1402 = vor.u32 %v1397, %v1401
      %v1404 = vshll.u32 %v1276, 16
      %v1406 = vrot.slane %v1404, 1
      %v1407 = vsel %vm1287, %v1402, %v1406
      %v1409 = vshrl.u32 %v1217, 16
      %v1411 = vshll.u32 %v1217, 16
      %v1413 = vrot.slane %v1411, 1
      %v1414 = vor.u32 %v1409, %v1413
      %v1416 = vshll.u32 %v1277, 16
      %v1418 = vrot.slane %v1416, 1
      %v1419 = vsel %vm1287, %v1414, %v1418
      %v1421 = vshrl.u32 %v1218, 16
      %v1423 = vshll.u32 %v1218, 16
      %v1425 = vrot.slane %v1423, 1
      %v1426 = vor.u32 %v1421, %v1425
      %v1428 = vshll.u32 %v1278, 16
      %v1430 = vrot.slane %v1428, 1
      %v1431 = vsel %vm1287, %v1426, %v1430
      %v1433 = vshrl.u32 %v1219, 16
      %v1435 = vshll.u32 %v1219, 16
      %v1437 = vrot.slane %v1435, 1
      %v1438 = vor.u32 %v1433, %v1437
      %v1440 = vshll.u32 %v1279, 16
      %v1442 = vrot.slane %v1440, 1
      %v1443 = vsel %vm1287, %v1438, %v1442
      %v1445 = vshrl.u32 %v1220, 16
      %v1447 = vshll.u32 %v1220, 16
      %v1449 = vrot.slane %v1447, 1
      %v1450 = vor.u32 %v1445, %v1449
      %v1452 = vshll.u32 %v1280, 16
      %v1454 = vrot.slane %v1452, 1
      %v1455 = vsel %vm1287, %v1450, %v1454
      %v1457 = vshrl.u32 %v1221, 16
      %v1459 = vshll.u32 %v1221, 16
      %v1461 = vrot.slane %v1459, 1
      %v1462 = vor.u32 %v1457, %v1461
      %v1464 = vshll.u32 %v1281, 16
      %v1466 = vrot.slane %v1464, 1
      %v1467 = vsel %vm1287, %v1462, %v1466
      %v1469 = vshrl.u32 %v1222, 16
      %v1471 = vshll.u32 %v1222, 16
      %v1473 = vrot.slane %v1471, 1
      %v1474 = vor.u32 %v1469, %v1473
      %v1476 = vshll.u32 %v1282, 16
      %v1478 = vrot.slane %v1476, 1
      %v1479 = vsel %vm1287, %v1474, %v1478
      %v1481 = vshrl.u32 %v1223, 16
      %v1483 = vshll.u32 %v1223, 16
      %v1485 = vrot.slane %v1483, 1
      %v1486 = vor.u32 %v1481, %v1485
      %v1488 = vshll.u32 %v1283, 16
      %v1490 = vrot.slane %v1488, 1
      %v1491 = vsel %vm1287, %v1486, %v1490
      %v1493 = vshrl.u32 %v1224, 16
      %v1495 = vshll.u32 %v1224, 16
      %v1497 = vrot.slane %v1495, 1
      %v1498 = vor.u32 %v1493, %v1497
      %v1500 = vshll.u32 %v1284, 16
      %v1502 = vrot.slane %v1500, 1
      %v1503 = vsel %vm1287, %v1498, %v1502
      %v1505 = vshrl.u32 %v1225, 16
      %v1507 = vshll.u32 %v1225, 16
      %v1509 = vrot.slane %v1507, 1
      %v1510 = vor.u32 %v1505, %v1509
      %v1512 = vshll.u32 %v1285, 16
      %v1514 = vrot.slane %v1512, 1
      %v1515 = vsel %vm1287, %v1510, %v1514
      %v1517 = vshrl.u32 %v1226, 16
      %v1519 = vshll.u32 %v1226, 16
      %v1521 = vrot.slane %v1519, 1
      %v1522 = vor.u32 %v1517, %v1521
      %v1524 = vshll.u32 %v1286, 16
      %v1526 = vrot.slane %v1524, 1
      %v1527 = vsel %vm1287, %v1522, %v1526
      %1528 = vrot.lane.b32.xlu0 %v1299, 4
      %v1529 = vpop.permute.xlu0 %1528
      %1530 = vrot.lane.b32.xlu0 %v1311, 4
      %v1531 = vpop.permute.xlu0 %1530
      %1532 = vrot.lane.b32.xlu0 %v1323, 4
      %v1533 = vpop.permute.xlu0 %1532
      %1534 = vrot.lane.b32.xlu0 %v1335, 4
      %v1535 = vpop.permute.xlu0 %1534
      %1536 = vrot.lane.b32.xlu0 %v1347, 4
      %v1537 = vpop.permute.xlu0 %1536
      %1538 = vrot.lane.b32.xlu0 %v1359, 4
      %v1539 = vpop.permute.xlu0 %1538
      %1540 = vrot.lane.b32.xlu0 %v1371, 4
      %v1541 = vpop.permute.xlu0 %1540
      %1542 = vrot.lane.b32.xlu0 %v1383, 4
      %v1543 = vpop.permute.xlu0 %1542
      %1544 = vrot.lane.b32.xlu0 %v1395, 4
      %v1545 = vpop.permute.xlu0 %1544
      %1546 = vrot.lane.b32.xlu0 %v1407, 4
      %v1547 = vpop.permute.xlu0 %1546
      %1548 = vrot.lane.b32.xlu0 %v1419, 4
      %v1549 = vpop.permute.xlu0 %1548
      %1550 = vrot.lane.b32.xlu0 %v1431, 4
      %v1551 = vpop.permute.xlu0 %1550
      %1552 = vrot.lane.b32.xlu0 %v1443, 4
      %v1553 = vpop.permute.xlu0 %1552
      %1554 = vrot.lane.b32.xlu0 %v1455, 4
      %v1555 = vpop.permute.xlu0 %1554
      %1556 = vrot.lane.b32.xlu0 %v1467, 4
      %v1557 = vpop.permute.xlu0 %1556
      %1558 = vrot.lane.b32.xlu0 %v1479, 4
      %v1559 = vpop.permute.xlu0 %1558
      %1560 = vrot.lane.b32.xlu0 %v1491, 4
      %v1561 = vpop.permute.xlu0 %1560
      %1562 = vrot.lane.b32.xlu0 %v1503, 4
      %v1563 = vpop.permute.xlu0 %1562
      %1564 = vrot.lane.b32.xlu0 %v1515, 4
      %v1565 = vpop.permute.xlu0 %1564
      %1566 = vrot.lane.b32.xlu0 %v1527, 4
      %v1567 = vpop.permute.xlu0 %1566
      %vm1568 = vcmask 1046528
      %v1569 = vrot.slane %v1207, 1
      %v1570 = vrot.slane %v1267, 1
      %v1571 = vsel %vm1568, %v1569, %v1570
      %v1572 = vrot.slane %v1208, 1
      %v1573 = vrot.slane %v1268, 1
      %v1574 = vsel %vm1568, %v1572, %v1573
      %v1575 = vrot.slane %v1209, 1
      %v1576 = vrot.slane %v1269, 1
      %v1577 = vsel %vm1568, %v1575, %v1576
      %v1578 = vrot.slane %v1210, 1
      %v1579 = vrot.slane %v1270, 1
      %v1580 = vsel %vm1568, %v1578, %v1579
      %v1581 = vrot.slane %v1211, 1
      %v1582 = vrot.slane %v1271, 1
      %v1583 = vsel %vm1568, %v1581, %v1582
      %v1584 = vrot.slane %v1212, 1
      %v1585 = vrot.slane %v1272, 1
      %v1586 = vsel %vm1568, %v1584, %v1585
      %v1587 = vrot.slane %v1213, 1
      %v1588 = vrot.slane %v1273, 1
      %v1589 = vsel %vm1568, %v1587, %v1588
      %v1590 = vrot.slane %v1214, 1
      %v1591 = vrot.slane %v1274, 1
      %v1592 = vsel %vm1568, %v1590, %v1591
      %v1593 = vrot.slane %v1215, 1
      %v1594 = vrot.slane %v1275, 1
      %v1595 = vsel %vm1568, %v1593, %v1594
      %v1596 = vrot.slane %v1216, 1
      %v1597 = vrot.slane %v1276, 1
      %v1598 = vsel %vm1568, %v1596, %v1597
      %v1599 = vrot.slane %v1217, 1
      %v1600 = vrot.slane %v1277, 1
      %v1601 = vsel %vm1568, %v1599, %v1600
      %v1602 = vrot.slane %v1218, 1
      %v1603 = vrot.slane %v1278, 1
      %v1604 = vsel %vm1568, %v1602, %v1603
      %v1605 = vrot.slane %v1219, 1
      %v1606 = vrot.slane %v1279, 1
      %v1607 = vsel %vm1568, %v1605, %v1606
      %v1608 = vrot.slane %v1220, 1
      %v1609 = vrot.slane %v1280, 1
      %v1610 = vsel %vm1568, %v1608, %v1609
      %v1611 = vrot.slane %v1221, 1
      %v1612 = vrot.slane %v1281, 1
      %v1613 = vsel %vm1568, %v1611, %v1612
      %v1614 = vrot.slane %v1222, 1
      %v1615 = vrot.slane %v1282, 1
      %v1616 = vsel %vm1568, %v1614, %v1615
      %v1617 = vrot.slane %v1223, 1
      %v1618 = vrot.slane %v1283, 1
      %v1619 = vsel %vm1568, %v1617, %v1618
      %v1620 = vrot.slane %v1224, 1
      %v1621 = vrot.slane %v1284, 1
      %v1622 = vsel %vm1568, %v1620, %v1621
      %v1623 = vrot.slane %v1225, 1
      %v1624 = vrot.slane %v1285, 1
      %v1625 = vsel %vm1568, %v1623, %v1624
      %v1626 = vrot.slane %v1226, 1
      %v1627 = vrot.slane %v1286, 1
      %v1628 = vsel %vm1568, %v1626, %v1627
      %1629 = vrot.lane.b32.xlu0 %v1571, 8
      %v1630 = vpop.permute.xlu0 %1629
      %1631 = vrot.lane.b32.xlu0 %v1574, 8
      %v1632 = vpop.permute.xlu0 %1631
      %1633 = vrot.lane.b32.xlu0 %v1577, 8
      %v1634 = vpop.permute.xlu0 %1633
      %1635 = vrot.lane.b32.xlu0 %v1580, 8
      %v1636 = vpop.permute.xlu0 %1635
      %1637 = vrot.lane.b32.xlu0 %v1583, 8
      %v1638 = vpop.permute.xlu0 %1637
      %1639 = vrot.lane.b32.xlu0 %v1586, 8
      %v1640 = vpop.permute.xlu0 %1639
      %1641 = vrot.lane.b32.xlu0 %v1589, 8
      %v1642 = vpop.permute.xlu0 %1641
      %1643 = vrot.lane.b32.xlu0 %v1592, 8
      %v1644 = vpop.permute.xlu0 %1643
      %1645 = vrot.lane.b32.xlu0 %v1595, 8
      %v1646 = vpop.permute.xlu0 %1645
      %1647 = vrot.lane.b32.xlu0 %v1598, 8
      %v1648 = vpop.permute.xlu0 %1647
      %1649 = vrot.lane.b32.xlu0 %v1601, 8
      %v1650 = vpop.permute.xlu0 %1649
      %1651 = vrot.lane.b32.xlu0 %v1604, 8
      %v1652 = vpop.permute.xlu0 %1651
      %1653 = vrot.lane.b32.xlu0 %v1607, 8
      %v1654 = vpop.permute.xlu0 %1653
      %1655 = vrot.lane.b32.xlu0 %v1610, 8
      %v1656 = vpop.permute.xlu0 %1655
      %1657 = vrot.lane.b32.xlu0 %v1613, 8
      %v1658 = vpop.permute.xlu0 %1657
      %1659 = vrot.lane.b32.xlu0 %v1616, 8
      %v1660 = vpop.permute.xlu0 %1659
      %1661 = vrot.lane.b32.xlu0 %v1619, 8
      %v1662 = vpop.permute.xlu0 %1661
      %1663 = vrot.lane.b32.xlu0 %v1622, 8
      %v1664 = vpop.permute.xlu0 %1663
      %1665 = vrot.lane.b32.xlu0 %v1625, 8
      %v1666 = vpop.permute.xlu0 %1665
      %1667 = vrot.lane.b32.xlu0 %v1628, 8
      %v1668 = vpop.permute.xlu0 %1667
      %vm1669 = vcmask 31744
      %v1671 = vsel %vm1669, %v1207, %v1529
      %v1673 = vsel %vm1669, %v1208, %v1531
      %v1675 = vsel %vm1669, %v1209, %v1533
      %v1677 = vsel %vm1669, %v1210, %v1535
      %v1679 = vsel %vm1669, %v1211, %v1537
      %v1681 = vsel %vm1669, %v1212, %v1539
      %v1683 = vsel %vm1669, %v1213, %v1541
      %v1685 = vsel %vm1669, %v1214, %v1543
      %v1687 = vsel %vm1669, %v1215, %v1545
      %v1689 = vsel %vm1669, %v1216, %v1547
      %v1691 = vsel %vm1669, %v1217, %v1549
      %v1693 = vsel %vm1669, %v1218, %v1551
      %v1695 = vsel %vm1669, %v1219, %v1553
      %v1697 = vsel %vm1669, %v1220, %v1555
      %v1699 = vsel %vm1669, %v1221, %v1557
      %v1701 = vsel %vm1669, %v1222, %v1559
      %v1703 = vsel %vm1669, %v1223, %v1561
      %v1705 = vsel %vm1669, %v1224, %v1563
      %v1707 = vsel %vm1669, %v1225, %v1565
      %v1709 = vsel %vm1669, %v1226, %v1567
      %vm1710 = vcmask 64512
      %v1712 = vsel %vm1710, %v1671, %v1630
      %v1714 = vsel %vm1710, %v1673, %v1632
      %v1716 = vsel %vm1710, %v1675, %v1634
      %v1718 = vsel %vm1710, %v1677, %v1636
      %v1720 = vsel %vm1710, %v1679, %v1638
      %v1722 = vsel %vm1710, %v1681, %v1640
      %v1724 = vsel %vm1710, %v1683, %v1642
      %v1726 = vsel %vm1710, %v1685, %v1644
      %v1728 = vsel %vm1710, %v1687, %v1646
      %v1730 = vsel %vm1710, %v1689, %v1648
      %v1732 = vsel %vm1710, %v1691, %v1650
      %v1734 = vsel %vm1710, %v1693, %v1652
      %v1736 = vsel %vm1710, %v1695, %v1654
      %v1738 = vsel %vm1710, %v1697, %v1656
      %v1740 = vsel %vm1710, %v1699, %v1658
      %v1742 = vsel %vm1710, %v1701, %v1660
      %v1744 = vsel %vm1710, %v1703, %v1662
      %v1746 = vsel %vm1710, %v1705, %v1664
      %v1748 = vsel %vm1710, %v1707, %v1666
      %v1750 = vsel %vm1710, %v1709, %v1668
      %v1751 = vld [vmem:[%s1] sm:$0xf]
      %v1752 = vld [vmem:[%s1 + $0x4] sm:$0x3]
      %s1753 = scalar_lea.vmem %s1, 8
      %v1754 = vld [vmem:[%s1753] sm:$0xf]
      %v1755 = vld [vmem:[%s1753 + $0x4] sm:$0x3]
      %v1758 = vunpack.c.l.b16 %v1754
      %v1759 = vunpack.c.l.b16 %v1755
      %v1760 = vpack.c.b16 %v1759, %v1758
      %vm1761 = vcmask 97280
      %v1762 = vsel %vm1761, %v1714, 0
      %v1764 = vsel %vm1761, %v1716, 0
      %v1766 = vsel %vm1761, %v1718, 0
      %v1768 = vsel %vm1761, %v1720, 0
      %v1770 = vsel %vm1761, %v1722, 0
      %v1772 = vsel %vm1761, %v1724, 0
      %v1774 = vsel %vm1761, %v1726, 0
      %v1776 = vsel %vm1761, %v1728, 0
      %v1778 = vsel %vm1761, %v1730, 0
      %v1780 = vsel %vm1761, %v1732, 0
      %v1782 = vsel %vm1761, %v1734, 0
      %v1784 = vsel %vm1761, %v1736, 0
      %v1786 = vsel %vm1761, %v1738, 0
      %v1788 = vsel %vm1761, %v1740, 0
      %v1790 = vsel %vm1761, %v1742, 0
      %v1792 = vsel %vm1761, %v1744, 0
      %v1794 = vsel %vm1761, %v1746, 0
      %v1796 = vsel %vm1761, %v1748, 0
      %vm1798 = vcmask 1045504
      %v1800 = vsel %vm1798, %v1760, 0
      %1802 = vmatprep.subr.bf16.mxu0 0
      %1803 = vmatpush1.bf16.msra.mxu0 %v1800
      %1804 = vmatprep.subr.bf16.mxu0 0
      %1805 = vmatpush1.bf16.msra.mxu0 0
      %1806 = vmatprep.subr.bf16.mxu0 0
      %1807 = vmatpush1.bf16.msra.mxu0 0
      %1808 = vmatprep.subr.bf16.mxu0 0
      %1809 = vmatpush1.bf16.msra.mxu0 0
      %1810 = vmatprep.subr.bf16.mxu0 0
      %1811 = vmatpush1.bf16.msra.mxu0 0
      %1812 = vmatprep.subr.bf16.mxu0 0
      %1813 = vmatpush1.bf16.msra.mxu0 0
      %1814 = vmatprep.subr.bf16.mxu0 0
      %1815 = vmatpush1.bf16.msra.mxu0 0
      %1816 = vmatprep.subr.bf16.mxu0 0
      %1817 = vmatpush1.bf16.msra.mxu0 0
      %1818 = vmatprep.subr.bf16.mxu0 0
      %1819 = vmatpush1.bf16.msra.mxu0 0
      %1820 = vmatprep.subr.bf16.mxu0 0
      %1821 = vmatpush1.bf16.msra.mxu0 0
      %1822 = vmatprep.subr.bf16.mxu0 0
      %1823 = vmatpush1.bf16.msra.mxu0 0
      %1824 = vmatprep.subr.bf16.mxu0 0
      %1825 = vmatpush1.bf16.msra.mxu0 0
      %1826 = vmatprep.subr.bf16.mxu0 0
      %1827 = vmatpush1.bf16.msra.mxu0 0
      %1828 = vmatprep.subr.bf16.mxu0 0
      %1829 = vmatpush1.bf16.msra.mxu0 0
      %1830 = vmatprep.subr.bf16.mxu0 0
      %1831 = vmatpush1.bf16.msra.mxu0 0
      %1832 = vmatprep.subr.bf16.mxu0 0
      %1833 = vmatpush1.bf16.msra.mxu0 0
      %1834 = vmatprep.mubr.bf16.mxu0 0
      %1835 = vmatmul.mubr.bf16.gmra.mrb[0].mxu0 %v1762
      %v1836 = vpop.f32.mrb[0].mxu0
      %v1837 = vadd.f32 0.0, %v1836
      %v1838 = vpop.f32.mrb[0].mxu0
      %v1839 = vpop.f32.mrb[0].mxu0
      %v1840 = vadd.f32 0.0, %v1839
      %v1841 = vpop.f32.mrb[0].mxu0
      %1842 = vmatprep.mubr.bf16.mxu0 0
      %1843 = vmatmul.mubr.bf16.gmra.mrb[0].mxu0 %v1764
      %v1844 = vpop.f32.mrb[0].mxu0
      %v1845 = vadd.f32 0.0, %v1844
      %v1846 = vpop.f32.mrb[0].mxu0
      %v1847 = vpop.f32.mrb[0].mxu0
      %v1848 = vadd.f32 0.0, %v1847
      %v1849 = vpop.f32.mrb[0].mxu0
      %1850 = vmatprep.mubr.bf16.mxu0 0
      %1851 = vmatmul.mubr.bf16.gmra.mrb[0].mxu0 %v1766
      %v1852 = vpop.f32.mrb[0].mxu0
      %v1853 = vadd.f32 0.0, %v1852
      %v1854 = vpop.f32.mrb[0].mxu0
      %v1855 = vpop.f32.mrb[0].mxu0
      %v1856 = vadd.f32 0.0, %v1855
      %v1857 = vpop.f32.mrb[0].mxu0
      %1858 = vmatprep.mubr.bf16.mxu0 0
      %1859 = vmatmul.mubr.bf16.gmra.mrb[0].mxu0 %v1768
      %v1860 = vpop.f32.mrb[0].mxu0
      %v1861 = vadd.f32 0.0, %v1860
      %v1862 = vpop.f32.mrb[0].mxu0
      %v1863 = vpop.f32.mrb[0].mxu0
      %v1864 = vadd.f32 0.0, %v1863
      %v1865 = vpop.f32.mrb[0].mxu0
      %1866 = vmatprep.mubr.bf16.mxu0 0
      %1867 = vmatmul.mubr.bf16.gmra.mrb[0].mxu0 %v1770
      %v1868 = vpop.f32.mrb[0].mxu0
      %v1869 = vadd.f32 0.0, %v1868
      %v1870 = vpop.f32.mrb[0].mxu0
      %v1871 = vpop.f32.mrb[0].mxu0
      %v1872 = vadd.f32 0.0, %v1871
      %v1873 = vpop.f32.mrb[0].mxu0
      %1874 = vmatprep.mubr.bf16.mxu0 0
      %1875 = vmatmul.mubr.bf16.gmra.mrb[0].mxu0 %v1772
      %v1876 = vpop.f32.mrb[0].mxu0
      %v1877 = vadd.f32 0.0, %v1876
      %v1878 = vpop.f32.mrb[0].mxu0
      %v1879 = vpop.f32.mrb[0].mxu0
      %v1880 = vadd.f32 0.0, %v1879
      %v1881 = vpop.f32.mrb[0].mxu0
      %1882 = vmatprep.mubr.bf16.mxu0 0
      %1883 = vmatmul.mubr.bf16.gmra.mrb[0].mxu0 %v1774
      %v1884 = vpop.f32.mrb[0].mxu0
      %v1885 = vadd.f32 0.0, %v1884
      %v1886 = vpop.f32.mrb[0].mxu0
      %v1887 = vpop.f32.mrb[0].mxu0
      %v1888 = vadd.f32 0.0, %v1887
      %v1889 = vpop.f32.mrb[0].mxu0
      %1890 = vmatprep.mubr.bf16.mxu0 0
      %1891 = vmatmul.mubr.bf16.gmra.mrb[0].mxu0 %v1776
      %v1892 = vpop.f32.mrb[0].mxu0
      %v1893 = vadd.f32 0.0, %v1892
      %v1894 = vpop.f32.mrb[0].mxu0
      %v1895 = vpop.f32.mrb[0].mxu0
      %v1896 = vadd.f32 0.0, %v1895
      %v1897 = vpop.f32.mrb[0].mxu0
      %1898 = vmatprep.mubr.bf16.mxu0 0
      %1899 = vmatmul.mubr.bf16.gmra.mrb[0].mxu0 %v1778
      %v1900 = vpop.f32.mrb[0].mxu0
      %v1901 = vadd.f32 0.0, %v1900
      %v1902 = vpop.f32.mrb[0].mxu0
      %v1903 = vpop.f32.mrb[0].mxu0
      %v1904 = vadd.f32 0.0, %v1903
      %v1905 = vpop.f32.mrb[0].mxu0
      %1906 = vmatprep.mubr.bf16.mxu0 0
      %1907 = vmatmul.mubr.bf16.gmra.mrb[0].mxu0 %v1780
      %v1908 = vpop.f32.mrb[0].mxu0
      %v1909 = vadd.f32 0.0, %v1908
      %v1910 = vpop.f32.mrb[0].mxu0
      %v1911 = vpop.f32.mrb[0].mxu0
      %v1912 = vadd.f32 0.0, %v1911
      %v1913 = vpop.f32.mrb[0].mxu0
      %1914 = vmatprep.mubr.bf16.mxu0 0
      %1915 = vmatmul.mubr.bf16.gmra.mrb[0].mxu0 %v1782
      %v1916 = vpop.f32.mrb[0].mxu0
      %v1917 = vadd.f32 0.0, %v1916
      %v1918 = vpop.f32.mrb[0].mxu0
      %v1919 = vpop.f32.mrb[0].mxu0
      %v1920 = vadd.f32 0.0, %v1919
      %v1921 = vpop.f32.mrb[0].mxu0
      %1922 = vmatprep.mubr.bf16.mxu0 0
      %1923 = vmatmul.mubr.bf16.gmra.mrb[0].mxu0 %v1784
      %v1924 = vpop.f32.mrb[0].mxu0
      %v1925 = vadd.f32 0.0, %v1924
      %v1926 = vpop.f32.mrb[0].mxu0
      %v1927 = vpop.f32.mrb[0].mxu0
      %v1928 = vadd.f32 0.0, %v1927
      %v1929 = vpop.f32.mrb[0].mxu0
      %1930 = vmatprep.mubr.bf16.mxu0 0
      %1931 = vmatmul.mubr.bf16.gmra.mrb[0].mxu0 %v1786
      %v1932 = vpop.f32.mrb[0].mxu0
      %v1933 = vadd.f32 0.0, %v1932
      %v1934 = vpop.f32.mrb[0].mxu0
      %v1935 = vpop.f32.mrb[0].mxu0
      %v1936 = vadd.f32 0.0, %v1935
      %v1937 = vpop.f32.mrb[0].mxu0
      %1938 = vmatprep.mubr.bf16.mxu0 0
      %1939 = vmatmul.mubr.bf16.gmra.mrb[0].mxu0 %v1788
      %v1940 = vpop.f32.mrb[0].mxu0
      %v1941 = vadd.f32 0.0, %v1940
      %v1942 = vpop.f32.mrb[0].mxu0
      %v1943 = vpop.f32.mrb[0].mxu0
      %v1944 = vadd.f32 0.0, %v1943
      %v1945 = vpop.f32.mrb[0].mxu0
      %1946 = vmatprep.mubr.bf16.mxu0 0
      %1947 = vmatmul.mubr.bf16.gmra.mrb[0].mxu0 %v1790
      %v1948 = vpop.f32.mrb[0].mxu0
      %v1949 = vadd.f32 0.0, %v1948
      %v1950 = vpop.f32.mrb[0].mxu0
      %v1951 = vpop.f32.mrb[0].mxu0
      %v1952 = vadd.f32 0.0, %v1951
      %v1953 = vpop.f32.mrb[0].mxu0
      %1954 = vmatprep.mubr.bf16.mxu0 0
      %1955 = vmatmul.mubr.bf16.gmra.mrb[0].mxu0 %v1792
      %v1956 = vpop.f32.mrb[0].mxu0
      %v1957 = vadd.f32 0.0, %v1956
      %v1958 = vpop.f32.mrb[0].mxu0
      %v1959 = vpop.f32.mrb[0].mxu0
      %v1960 = vadd.f32 0.0, %v1959
      %v1961 = vpop.f32.mrb[0].mxu0
      %1962 = vmatprep.mubr.bf16.mxu0 0
      %1963 = vmatmul.mubr.bf16.gmra.mrb[0].mxu0 %v1794
      %v1964 = vpop.f32.mrb[0].mxu0
      %v1965 = vadd.f32 0.0, %v1964
      %v1966 = vpop.f32.mrb[0].mxu0
      %v1967 = vpop.f32.mrb[0].mxu0
      %v1968 = vadd.f32 0.0, %v1967
      %v1969 = vpop.f32.mrb[0].mxu0
      %1970 = vmatprep.mubr.bf16.mxu0 0
      %1971 = vmatmul.mubr.bf16.gmra.mrb[0].mxu0 %v1796
      %v1972 = vpop.f32.mrb[0].mxu0
      %v1973 = vadd.f32 0.0, %v1972
      %v1974 = vpop.f32.mrb[0].mxu0
      %v1975 = vpop.f32.mrb[0].mxu0
      %v1976 = vadd.f32 0.0, %v1975
      %v1977 = vpop.f32.mrb[0].mxu0
      %1978 = vdwg.mxu0
      %v1981 = vunpack.c.l.b16 %v1751
      %v1982 = vunpack.c.l.b16 %v1752
      %v1983 = vpack.c.b16 %v1982, %v1981
      %v1984 = vsel %vm1761, %v1712, 0
      %v1987 = vsel %vm1798, %v1983, 0
      %1989 = vmatprep.subr.bf16.mxu0 0
      %1990 = vmatpush1.bf16.msra.mxu0 %v1987
      %1991 = vmatprep.subr.bf16.mxu0 0
      %1992 = vmatpush1.bf16.msra.mxu0 0
      %1993 = vmatprep.subr.bf16.mxu0 0
      %1994 = vmatpush1.bf16.msra.mxu0 0
      %1995 = vmatprep.subr.bf16.mxu0 0
      %1996 = vmatpush1.bf16.msra.mxu0 0
      %1997 = vmatprep.subr.bf16.mxu0 0
      %1998 = vmatpush1.bf16.msra.mxu0 0
      %1999 = vmatprep.subr.bf16.mxu0 0
      %2000 = vmatpush1.bf16.msra.mxu0 0
      %2001 = vmatprep.subr.bf16.mxu0 0
      %2002 = vmatpush1.bf16.msra.mxu0 0
      %2003 = vmatprep.subr.bf16.mxu0 0
      %2004 = vmatpush1.bf16.msra.mxu0 0
      %2005 = vmatprep.subr.bf16.mxu0 0
      %2006 = vmatpush1.bf16.msra.mxu0 0
      %2007 = vmatprep.subr.bf16.mxu0 0
      %2008 = vmatpush1.bf16.msra.mxu0 0
      %2009 = vmatprep.subr.bf16.mxu0 0
      %2010 = vmatpush1.bf16.msra.mxu0 0
      %2011 = vmatprep.subr.bf16.mxu0 0
      %2012 = vmatpush1.bf16.msra.mxu0 0
      %2013 = vmatprep.subr.bf16.mxu0 0
      %2014 = vmatpush1.bf16.msra.mxu0 0
      %2015 = vmatprep.subr.bf16.mxu0 0
      %2016 = vmatpush1.bf16.msra.mxu0 0
      %2017 = vmatprep.subr.bf16.mxu0 0
      %2018 = vmatpush1.bf16.msra.mxu0 0
      %2019 = vmatprep.subr.bf16.mxu0 0
      %2020 = vmatpush1.bf16.msra.mxu0 0
      %2021 = vmatprep.mubr.bf16.mxu0 0
      %2022 = vmatmul.mubr.bf16.gmra.mrb[0].mxu0 %v1984
      %v2023 = vpop.f32.mrb[0].mxu0
      %v2024 = vadd.f32 %v1837, %v2023
      %v2025 = vpop.f32.mrb[0].mxu0
      %v2026 = vpop.f32.mrb[0].mxu0
      %v2027 = vadd.f32 %v1840, %v2026
      %v2028 = vpop.f32.mrb[0].mxu0
      %2029 = vmatprep.mubr.bf16.mxu0 0
      %2030 = vmatmul.mubr.bf16.gmra.mrb[0].mxu0 %v1762
      %v2031 = vpop.f32.mrb[0].mxu0
      %v2032 = vadd.f32 %v1845, %v2031
      %v2033 = vpop.f32.mrb[0].mxu0
      %v2034 = vpop.f32.mrb[0].mxu0
      %v2035 = vadd.f32 %v1848, %v2034
      %v2036 = vpop.f32.mrb[0].mxu0
      %2037 = vmatprep.mubr.bf16.mxu0 0
      %2038 = vmatmul.mubr.bf16.gmra.mrb[0].mxu0 %v1764
      %v2039 = vpop.f32.mrb[0].mxu0
      %v2040 = vadd.f32 %v1853, %v2039
      %v2041 = vpop.f32.mrb[0].mxu0
      %v2042 = vpop.f32.mrb[0].mxu0
      %v2043 = vadd.f32 %v1856, %v2042
      %v2044 = vpop.f32.mrb[0].mxu0
      %2045 = vmatprep.mubr.bf16.mxu0 0
      %2046 = vmatmul.mubr.bf16.gmra.mrb[0].mxu0 %v1766
      %v2047 = vpop.f32.mrb[0].mxu0
      %v2048 = vadd.f32 %v1861, %v2047
      %v2049 = vpop.f32.mrb[0].mxu0
      %v2050 = vpop.f32.mrb[0].mxu0
      %v2051 = vadd.f32 %v1864, %v2050
      %v2052 = vpop.f32.mrb[0].mxu0
      %2053 = vmatprep.mubr.bf16.mxu0 0
      %2054 = vmatmul.mubr.bf16.gmra.mrb[0].mxu0 %v1768
      %v2055 = vpop.f32.mrb[0].mxu0
      %v2056 = vadd.f32 %v1869, %v2055
      %v2057 = vpop.f32.mrb[0].mxu0
      %v2058 = vpop.f32.mrb[0].mxu0
      %v2059 = vadd.f32 %v1872, %v2058
      %v2060 = vpop.f32.mrb[0].mxu0
      %2061 = vmatprep.mubr.bf16.mxu0 0
      %2062 = vmatmul.mubr.bf16.gmra.mrb[0].mxu0 %v1770
      %v2063 = vpop.f32.mrb[0].mxu0
      %v2064 = vadd.f32 %v1877, %v2063
      %v2065 = vpop.f32.mrb[0].mxu0
      %v2066 = vpop.f32.mrb[0].mxu0
      %v2067 = vadd.f32 %v1880, %v2066
      %v2068 = vpop.f32.mrb[0].mxu0
      %2069 = vmatprep.mubr.bf16.mxu0 0
      %2070 = vmatmul.mubr.bf16.gmra.mrb[0].mxu0 %v1772
      %v2071 = vpop.f32.mrb[0].mxu0
      %v2072 = vadd.f32 %v1885, %v2071
      %v2073 = vpop.f32.mrb[0].mxu0
      %v2074 = vpop.f32.mrb[0].mxu0
      %v2075 = vadd.f32 %v1888, %v2074
      %v2076 = vpop.f32.mrb[0].mxu0
      %2077 = vmatprep.mubr.bf16.mxu0 0
      %2078 = vmatmul.mubr.bf16.gmra.mrb[0].mxu0 %v1774
      %v2079 = vpop.f32.mrb[0].mxu0
      %v2080 = vadd.f32 %v1893, %v2079
      %v2081 = vpop.f32.mrb[0].mxu0
      %v2082 = vpop.f32.mrb[0].mxu0
      %v2083 = vadd.f32 %v1896, %v2082
      %v2084 = vpop.f32.mrb[0].mxu0
      %2085 = vmatprep.mubr.bf16.mxu0 0
      %2086 = vmatmul.mubr.bf16.gmra.mrb[0].mxu0 %v1776
      %v2087 = vpop.f32.mrb[0].mxu0
      %v2088 = vadd.f32 %v1901, %v2087
      %v2089 = vpop.f32.mrb[0].mxu0
      %v2090 = vpop.f32.mrb[0].mxu0
      %v2091 = vadd.f32 %v1904, %v2090
      %v2092 = vpop.f32.mrb[0].mxu0
      %2093 = vmatprep.mubr.bf16.mxu0 0
      %2094 = vmatmul.mubr.bf16.gmra.mrb[0].mxu0 %v1778
      %v2095 = vpop.f32.mrb[0].mxu0
      %v2096 = vadd.f32 %v1909, %v2095
      %v2097 = vpop.f32.mrb[0].mxu0
      %v2098 = vpop.f32.mrb[0].mxu0
      %v2099 = vadd.f32 %v1912, %v2098
      %v2100 = vpop.f32.mrb[0].mxu0
      %2101 = vmatprep.mubr.bf16.mxu0 0
      %2102 = vmatmul.mubr.bf16.gmra.mrb[0].mxu0 %v1780
      %v2103 = vpop.f32.mrb[0].mxu0
      %v2104 = vadd.f32 %v1917, %v2103
      %v2105 = vpop.f32.mrb[0].mxu0
      %v2106 = vpop.f32.mrb[0].mxu0
      %v2107 = vadd.f32 %v1920, %v2106
      %v2108 = vpop.f32.mrb[0].mxu0
      %2109 = vmatprep.mubr.bf16.mxu0 0
      %2110 = vmatmul.mubr.bf16.gmra.mrb[0].mxu0 %v1782
      %v2111 = vpop.f32.mrb[0].mxu0
      %v2112 = vadd.f32 %v1925, %v2111
      %v2113 = vpop.f32.mrb[0].mxu0
      %v2114 = vpop.f32.mrb[0].mxu0
      %v2115 = vadd.f32 %v1928, %v2114
      %v2116 = vpop.f32.mrb[0].mxu0
      %2117 = vmatprep.mubr.bf16.mxu0 0
      %2118 = vmatmul.mubr.bf16.gmra.mrb[0].mxu0 %v1784
      %v2119 = vpop.f32.mrb[0].mxu0
      %v2120 = vadd.f32 %v1933, %v2119
      %v2121 = vpop.f32.mrb[0].mxu0
      %v2122 = vpop.f32.mrb[0].mxu0
      %v2123 = vadd.f32 %v1936, %v2122
      %v2124 = vpop.f32.mrb[0].mxu0
      %2125 = vmatprep.mubr.bf16.mxu0 0
      %2126 = vmatmul.mubr.bf16.gmra.mrb[0].mxu0 %v1786
      %v2127 = vpop.f32.mrb[0].mxu0
      %v2128 = vadd.f32 %v1941, %v2127
      %v2129 = vpop.f32.mrb[0].mxu0
      %v2130 = vpop.f32.mrb[0].mxu0
      %v2131 = vadd.f32 %v1944, %v2130
      %v2132 = vpop.f32.mrb[0].mxu0
      %2133 = vmatprep.mubr.bf16.mxu0 0
      %2134 = vmatmul.mubr.bf16.gmra.mrb[0].mxu0 %v1788
      %v2135 = vpop.f32.mrb[0].mxu0
      %v2136 = vadd.f32 %v1949, %v2135
      %v2137 = vpop.f32.mrb[0].mxu0
      %v2138 = vpop.f32.mrb[0].mxu0
      %v2139 = vadd.f32 %v1952, %v2138
      %v2140 = vpop.f32.mrb[0].mxu0
      %2141 = vmatprep.mubr.bf16.mxu0 0
      %2142 = vmatmul.mubr.bf16.gmra.mrb[0].mxu0 %v1790
      %v2143 = vpop.f32.mrb[0].mxu0
      %v2144 = vadd.f32 %v1957, %v2143
      %v2145 = vpop.f32.mrb[0].mxu0
      %v2146 = vpop.f32.mrb[0].mxu0
      %v2147 = vadd.f32 %v1960, %v2146
      %v2148 = vpop.f32.mrb[0].mxu0
      %2149 = vmatprep.mubr.bf16.mxu0 0
      %2150 = vmatmul.mubr.bf16.gmra.mrb[0].mxu0 %v1792
      %v2151 = vpop.f32.mrb[0].mxu0
      %v2152 = vadd.f32 %v1965, %v2151
      %v2153 = vpop.f32.mrb[0].mxu0
      %v2154 = vpop.f32.mrb[0].mxu0
      %v2155 = vadd.f32 %v1968, %v2154
      %v2156 = vpop.f32.mrb[0].mxu0
      %2157 = vmatprep.mubr.bf16.mxu0 0
      %2158 = vmatmul.mubr.bf16.gmra.mrb[0].mxu0 %v1794
      %v2159 = vpop.f32.mrb[0].mxu0
      %v2160 = vadd.f32 %v1973, %v2159
      %v2161 = vpop.f32.mrb[0].mxu0
      %v2162 = vpop.f32.mrb[0].mxu0
      %v2163 = vadd.f32 %v1976, %v2162
      %v2164 = vpop.f32.mrb[0].mxu0
      %2165 = vdwg.mxu0
      %s2166 = scalar_lea.vmem %s1, 16
      %v2167 = vld [vmem:[%s2166] sm:$0xf]
      %v2168 = vld [vmem:[%s2166 + $0x4] sm:$0x3]
      %v2171 = vunpack.c.l.b16 %v2167
      %v2172 = vunpack.c.l.b16 %v2168
      %v2173 = vpack.c.b16 %v2172, %v2171
      %v2174 = vsel %vm1761, %v1750, 0
      %v2177 = vsel %vm1798, %v2173, 0
      %2179 = vmatprep.subr.bf16.mxu0 0
      %2180 = vmatpush1.bf16.msra.mxu0 %v2177
      %2181 = vmatprep.subr.bf16.mxu0 0
      %2182 = vmatpush1.bf16.msra.mxu0 0
      %2183 = vmatprep.subr.bf16.mxu0 0
      %2184 = vmatpush1.bf16.msra.mxu0 0
      %2185 = vmatprep.subr.bf16.mxu0 0
      %2186 = vmatpush1.bf16.msra.mxu0 0
      %2187 = vmatprep.subr.bf16.mxu0 0
      %2188 = vmatpush1.bf16.msra.mxu0 0
      %2189 = vmatprep.subr.bf16.mxu0 0
      %2190 = vmatpush1.bf16.msra.mxu0 0
      %2191 = vmatprep.subr.bf16.mxu0 0
      %2192 = vmatpush1.bf16.msra.mxu0 0
      %2193 = vmatprep.subr.bf16.mxu0 0
      %2194 = vmatpush1.bf16.msra.mxu0 0
      %2195 = vmatprep.subr.bf16.mxu0 0
      %2196 = vmatpush1.bf16.msra.mxu0 0
      %2197 = vmatprep.subr.bf16.mxu0 0
      %2198 = vmatpush1.bf16.msra.mxu0 0
      %2199 = vmatprep.subr.bf16.mxu0 0
      %2200 = vmatpush1.bf16.msra.mxu0 0
      %2201 = vmatprep.subr.bf16.mxu0 0
      %2202 = vmatpush1.bf16.msra.mxu0 0
      %2203 = vmatprep.subr.bf16.mxu0 0
      %2204 = vmatpush1.bf16.msra.mxu0 0
      %2205 = vmatprep.subr.bf16.mxu0 0
      %2206 = vmatpush1.bf16.msra.mxu0 0
      %2207 = vmatprep.subr.bf16.mxu0 0
      %2208 = vmatpush1.bf16.msra.mxu0 0
      %2209 = vmatprep.subr.bf16.mxu0 0
      %2210 = vmatpush1.bf16.msra.mxu0 0
      %2211 = vmatprep.mubr.bf16.mxu0 0
      %2212 = vmatmul.mubr.bf16.gmra.mrb[0].mxu0 %v1764
      %v2213 = vpop.f32.mrb[0].mxu0
      %v2214 = vadd.f32 0.0, %v2213
      %v2215 = vpop.f32.mrb[0].mxu0
      %v2216 = vpop.f32.mrb[0].mxu0
      %v2217 = vadd.f32 0.0, %v2216
      %v2218 = vpop.f32.mrb[0].mxu0
      %2219 = vmatprep.mubr.bf16.mxu0 0
      %2220 = vmatmul.mubr.bf16.gmra.mrb[0].mxu0 %v1766
      %v2221 = vpop.f32.mrb[0].mxu0
      %v2222 = vadd.f32 0.0, %v2221
      %v2223 = vpop.f32.mrb[0].mxu0
      %v2224 = vpop.f32.mrb[0].mxu0
      %v2225 = vadd.f32 0.0, %v2224
      %v2226 = vpop.f32.mrb[0].mxu0
      %2227 = vmatprep.mubr.bf16.mxu0 0
      %2228 = vmatmul.mubr.bf16.gmra.mrb[0].mxu0 %v1768
      %v2229 = vpop.f32.mrb[0].mxu0
      %v2230 = vadd.f32 0.0, %v2229
      %v2231 = vpop.f32.mrb[0].mxu0
      %v2232 = vpop.f32.mrb[0].mxu0
      %v2233 = vadd.f32 0.0, %v2232
      %v2234 = vpop.f32.mrb[0].mxu0
      %2235 = vmatprep.mubr.bf16.mxu0 0
      %2236 = vmatmul.mubr.bf16.gmra.mrb[0].mxu0 %v1770
      %v2237 = vpop.f32.mrb[0].mxu0
      %v2238 = vadd.f32 0.0, %v2237
      %v2239 = vpop.f32.mrb[0].mxu0
      %v2240 = vpop.f32.mrb[0].mxu0
      %v2241 = vadd.f32 0.0, %v2240
      %v2242 = vpop.f32.mrb[0].mxu0
      %2243 = vmatprep.mubr.bf16.mxu0 0
      %2244 = vmatmul.mubr.bf16.gmra.mrb[0].mxu0 %v1772
      %v2245 = vpop.f32.mrb[0].mxu0
      %v2246 = vadd.f32 0.0, %v2245
      %v2247 = vpop.f32.mrb[0].mxu0
      %v2248 = vpop.f32.mrb[0].mxu0
      %v2249 = vadd.f32 0.0, %v2248
      %v2250 = vpop.f32.mrb[0].mxu0
      %2251 = vmatprep.mubr.bf16.mxu0 0
      %2252 = vmatmul.mubr.bf16.gmra.mrb[0].mxu0 %v1774
      %v2253 = vpop.f32.mrb[0].mxu0
      %v2254 = vadd.f32 0.0, %v2253
      %v2255 = vpop.f32.mrb[0].mxu0
      %v2256 = vpop.f32.mrb[0].mxu0
      %v2257 = vadd.f32 0.0, %v2256
      %v2258 = vpop.f32.mrb[0].mxu0
      %2259 = vmatprep.mubr.bf16.mxu0 0
      %2260 = vmatmul.mubr.bf16.gmra.mrb[0].mxu0 %v1776
      %v2261 = vpop.f32.mrb[0].mxu0
      %v2262 = vadd.f32 0.0, %v2261
      %v2263 = vpop.f32.mrb[0].mxu0
      %v2264 = vpop.f32.mrb[0].mxu0
      %v2265 = vadd.f32 0.0, %v2264
      %v2266 = vpop.f32.mrb[0].mxu0
      %2267 = vmatprep.mubr.bf16.mxu0 0
      %2268 = vmatmul.mubr.bf16.gmra.mrb[0].mxu0 %v1778
      %v2269 = vpop.f32.mrb[0].mxu0
      %v2270 = vadd.f32 0.0, %v2269
      %v2271 = vpop.f32.mrb[0].mxu0
      %v2272 = vpop.f32.mrb[0].mxu0
      %v2273 = vadd.f32 0.0, %v2272
      %v2274 = vpop.f32.mrb[0].mxu0
      %2275 = vmatprep.mubr.bf16.mxu0 0
      %2276 = vmatmul.mubr.bf16.gmra.mrb[0].mxu0 %v1780
      %v2277 = vpop.f32.mrb[0].mxu0
      %v2278 = vadd.f32 0.0, %v2277
      %v2279 = vpop.f32.mrb[0].mxu0
      %v2280 = vpop.f32.mrb[0].mxu0
      %v2281 = vadd.f32 0.0, %v2280
      %v2282 = vpop.f32.mrb[0].mxu0
      %2283 = vmatprep.mubr.bf16.mxu0 0
      %2284 = vmatmul.mubr.bf16.gmra.mrb[0].mxu0 %v1782
      %v2285 = vpop.f32.mrb[0].mxu0
      %v2286 = vadd.f32 0.0, %v2285
      %v2287 = vpop.f32.mrb[0].mxu0
      %v2288 = vpop.f32.mrb[0].mxu0
      %v2289 = vadd.f32 0.0, %v2288
      %v2290 = vpop.f32.mrb[0].mxu0
      %2291 = vmatprep.mubr.bf16.mxu0 0
      %2292 = vmatmul.mubr.bf16.gmra.mrb[0].mxu0 %v1784
      %v2293 = vpop.f32.mrb[0].mxu0
      %v2294 = vadd.f32 0.0, %v2293
      %v2295 = vpop.f32.mrb[0].mxu0
      %v2296 = vpop.f32.mrb[0].mxu0
      %v2297 = vadd.f32 0.0, %v2296
      %v2298 = vpop.f32.mrb[0].mxu0
      %2299 = vmatprep.mubr.bf16.mxu0 0
      %2300 = vmatmul.mubr.bf16.gmra.mrb[0].mxu0 %v1786
      %v2301 = vpop.f32.mrb[0].mxu0
      %v2302 = vadd.f32 0.0, %v2301
      %v2303 = vpop.f32.mrb[0].mxu0
      %v2304 = vpop.f32.mrb[0].mxu0
      %v2305 = vadd.f32 0.0, %v2304
      %v2306 = vpop.f32.mrb[0].mxu0
      %2307 = vmatprep.mubr.bf16.mxu0 0
      %2308 = vmatmul.mubr.bf16.gmra.mrb[0].mxu0 %v1788
      %v2309 = vpop.f32.mrb[0].mxu0
      %v2310 = vadd.f32 0.0, %v2309
      %v2311 = vpop.f32.mrb[0].mxu0
      %v2312 = vpop.f32.mrb[0].mxu0
      %v2313 = vadd.f32 0.0, %v2312
      %v2314 = vpop.f32.mrb[0].mxu0
      %2315 = vmatprep.mubr.bf16.mxu0 0
      %2316 = vmatmul.mubr.bf16.gmra.mrb[0].mxu0 %v1790
      %v2317 = vpop.f32.mrb[0].mxu0
      %v2318 = vadd.f32 0.0, %v2317
      %v2319 = vpop.f32.mrb[0].mxu0
      %v2320 = vpop.f32.mrb[0].mxu0
      %v2321 = vadd.f32 0.0, %v2320
      %v2322 = vpop.f32.mrb[0].mxu0
      %2323 = vmatprep.mubr.bf16.mxu0 0
      %2324 = vmatmul.mubr.bf16.gmra.mrb[0].mxu0 %v1792
      %v2325 = vpop.f32.mrb[0].mxu0
      %v2326 = vadd.f32 0.0, %v2325
      %v2327 = vpop.f32.mrb[0].mxu0
      %v2328 = vpop.f32.mrb[0].mxu0
      %v2329 = vadd.f32 0.0, %v2328
      %v2330 = vpop.f32.mrb[0].mxu0
      %2331 = vmatprep.mubr.bf16.mxu0 0
      %2332 = vmatmul.mubr.bf16.gmra.mrb[0].mxu0 %v1794
      %v2333 = vpop.f32.mrb[0].mxu0
      %v2334 = vadd.f32 0.0, %v2333
      %v2335 = vpop.f32.mrb[0].mxu0
      %v2336 = vpop.f32.mrb[0].mxu0
      %v2337 = vadd.f32 0.0, %v2336
      %v2338 = vpop.f32.mrb[0].mxu0
      %2339 = vmatprep.mubr.bf16.mxu0 0
      %2340 = vmatmul.mubr.bf16.gmra.mrb[0].mxu0 %v1796
      %v2341 = vpop.f32.mrb[0].mxu0
      %v2342 = vadd.f32 0.0, %v2341
      %v2343 = vpop.f32.mrb[0].mxu0
      %v2344 = vpop.f32.mrb[0].mxu0
      %v2345 = vadd.f32 0.0, %v2344
      %v2346 = vpop.f32.mrb[0].mxu0
      %2347 = vmatprep.mubr.bf16.mxu0 0
      %2348 = vmatmul.mubr.bf16.gmra.mrb[0].mxu0 %v2174
      %v2349 = vpop.f32.mrb[0].mxu0
      %v2350 = vadd.f32 0.0, %v2349
      %v2351 = vpop.f32.mrb[0].mxu0
      %v2352 = vpop.f32.mrb[0].mxu0
      %v2353 = vadd.f32 0.0, %v2352
      %v2354 = vpop.f32.mrb[0].mxu0
      %2355 = vdwg.mxu0
      %v2356 = vadd.f32 %v2024, %v2214
      %v2357 = vadd.f32 %v2027, %v2217
      %v2358 = vadd.f32 %v2032, %v2222
      %v2359 = vadd.f32 %v2035, %v2225
      %v2360 = vadd.f32 %v2040, %v2230
      %v2361 = vadd.f32 %v2043, %v2233
      %v2362 = vadd.f32 %v2048, %v2238
      %v2363 = vadd.f32 %v2051, %v2241
      %v2364 = vadd.f32 %v2056, %v2246
      %v2365 = vadd.f32 %v2059, %v2249
      %v2366 = vadd.f32 %v2064, %v2254
      %v2367 = vadd.f32 %v2067, %v2257
      %v2368 = vadd.f32 %v2072, %v2262
      %v2369 = vadd.f32 %v2075, %v2265
      %v2370 = vadd.f32 %v2080, %v2270
      %v2371 = vadd.f32 %v2083, %v2273
      %v2372 = vadd.f32 %v2088, %v2278
      %v2373 = vadd.f32 %v2091, %v2281
      %v2374 = vadd.f32 %v2096, %v2286
      %v2375 = vadd.f32 %v2099, %v2289
      %v2376 = vadd.f32 %v2104, %v2294
      %v2377 = vadd.f32 %v2107, %v2297
      %v2378 = vadd.f32 %v2112, %v2302
      %v2379 = vadd.f32 %v2115, %v2305
      %v2380 = vadd.f32 %v2120, %v2310
      %v2381 = vadd.f32 %v2123, %v2313
      %v2382 = vadd.f32 %v2128, %v2318
      %v2383 = vadd.f32 %v2131, %v2321
      %v2384 = vadd.f32 %v2136, %v2326
      %v2385 = vadd.f32 %v2139, %v2329
      %v2386 = vadd.f32 %v2144, %v2334
      %v2387 = vadd.f32 %v2147, %v2337
      %v2388 = vadd.f32 %v2152, %v2342
      %v2389 = vadd.f32 %v2155, %v2345
      %v2390 = vadd.f32 %v2160, %v2350
      %v2391 = vadd.f32 %v2163, %v2353
      %v2392 = vpack.c.bf16 %v2357, %v2356
      %v2393 = vpack.c.bf16 %v2359, %v2358
      %v2394 = vpack.c.bf16 %v2361, %v2360
      %v2395 = vpack.c.bf16 %v2363, %v2362
      %v2396 = vpack.c.bf16 %v2365, %v2364
      %v2397 = vpack.c.bf16 %v2367, %v2366
      %v2398 = vpack.c.bf16 %v2369, %v2368
      %v2399 = vpack.c.bf16 %v2371, %v2370
      %v2400 = vpack.c.bf16 %v2373, %v2372
      %v2401 = vpack.c.bf16 %v2375, %v2374
      %v2402 = vpack.c.bf16 %v2377, %v2376
      %v2403 = vpack.c.bf16 %v2379, %v2378
      %v2404 = vpack.c.bf16 %v2381, %v2380
      %v2405 = vpack.c.bf16 %v2383, %v2382
      %v2406 = vpack.c.bf16 %v2385, %v2384
      %v2407 = vpack.c.bf16 %v2387, %v2386
      %v2408 = vpack.c.bf16 %v2389, %v2388
      %v2409 = vpack.c.bf16 %v2391, %v2390
      %v2411 = vshrl.u32 %v2392, 16
      %v2413 = vrot.slane %v2411, 7
      %v2414 = vshll.u32 %v2392, 16
      %v2416 = vor.u32 %v2413, %v2414
      %v2418 = vshrl.u32 %v2393, 16
      %v2420 = vrot.slane %v2418, 7
      %v2421 = vshll.u32 %v2393, 16
      %v2423 = vor.u32 %v2420, %v2421
      %v2425 = vshrl.u32 %v2394, 16
      %v2427 = vrot.slane %v2425, 7
      %v2428 = vshll.u32 %v2394, 16
      %v2430 = vor.u32 %v2427, %v2428
      %v2432 = vshrl.u32 %v2395, 16
      %v2434 = vrot.slane %v2432, 7
      %v2435 = vshll.u32 %v2395, 16
      %v2437 = vor.u32 %v2434, %v2435
      %v2439 = vshrl.u32 %v2396, 16
      %v2441 = vrot.slane %v2439, 7
      %v2442 = vshll.u32 %v2396, 16
      %v2444 = vor.u32 %v2441, %v2442
      %v2446 = vshrl.u32 %v2397, 16
      %v2448 = vrot.slane %v2446, 7
      %v2449 = vshll.u32 %v2397, 16
      %v2451 = vor.u32 %v2448, %v2449
      %v2453 = vshrl.u32 %v2398, 16
      %v2455 = vrot.slane %v2453, 7
      %v2456 = vshll.u32 %v2398, 16
      %v2458 = vor.u32 %v2455, %v2456
      %v2460 = vshrl.u32 %v2399, 16
      %v2462 = vrot.slane %v2460, 7
      %v2463 = vshll.u32 %v2399, 16
      %v2465 = vor.u32 %v2462, %v2463
      %v2467 = vshrl.u32 %v2400, 16
      %v2469 = vrot.slane %v2467, 7
      %v2470 = vshll.u32 %v2400, 16
      %v2472 = vor.u32 %v2469, %v2470
      %v2474 = vshrl.u32 %v2401, 16
      %v2476 = vrot.slane %v2474, 7
      %v2477 = vshll.u32 %v2401, 16
      %v2479 = vor.u32 %v2476, %v2477
      %v2481 = vshrl.u32 %v2402, 16
      %v2483 = vrot.slane %v2481, 7
      %v2484 = vshll.u32 %v2402, 16
      %v2486 = vor.u32 %v2483, %v2484
      %v2488 = vshrl.u32 %v2403, 16
      %v2490 = vrot.slane %v2488, 7
      %v2491 = vshll.u32 %v2403, 16
      %v2493 = vor.u32 %v2490, %v2491
      %v2495 = vshrl.u32 %v2404, 16
      %v2497 = vrot.slane %v2495, 7
      %v2498 = vshll.u32 %v2404, 16
      %v2500 = vor.u32 %v2497, %v2498
      %v2502 = vshrl.u32 %v2405, 16
      %v2504 = vrot.slane %v2502, 7
      %v2505 = vshll.u32 %v2405, 16
      %v2507 = vor.u32 %v2504, %v2505
      %v2509 = vshrl.u32 %v2406, 16
      %v2511 = vrot.slane %v2509, 7
      %v2512 = vshll.u32 %v2406, 16
      %v2514 = vor.u32 %v2511, %v2512
      %v2516 = vshrl.u32 %v2407, 16
      %v2518 = vrot.slane %v2516, 7
      %v2519 = vshll.u32 %v2407, 16
      %v2521 = vor.u32 %v2518, %v2519
      %v2523 = vshrl.u32 %v2408, 16
      %v2525 = vrot.slane %v2523, 7
      %v2526 = vshll.u32 %v2408, 16
      %v2528 = vor.u32 %v2525, %v2526
      %v2530 = vshrl.u32 %v2409, 16
      %v2532 = vrot.slane %v2530, 7
      %v2533 = vshll.u32 %v2409, 16
      %v2535 = vor.u32 %v2532, %v2533
      %vm2572 = vcmask 1040384
      %vm2573 = vsmask.f32 256
      %vm2574 = vmand %vm2572, %vm2573
      %v2575 = vsel %vm2574, 0, %v2416
      %v2576 = vsel %vm2574, 0, %v2423
      %v2577 = vsel %vm2574, 0, %v2430
      %v2578 = vsel %vm2574, 0, %v2437
      %v2579 = vsel %vm2574, 0, %v2444
      %v2580 = vsel %vm2574, 0, %v2451
      %v2581 = vsel %vm2574, 0, %v2458
      %v2582 = vsel %vm2574, 0, %v2465
      %v2583 = vsel %vm2574, 0, %v2472
      %v2584 = vsel %vm2574, 0, %v2479
      %v2585 = vsel %vm2574, 0, %v2486
      %v2586 = vsel %vm2574, 0, %v2493
      %v2587 = vsel %vm2574, 0, %v2500
      %v2588 = vsel %vm2574, 0, %v2507
      %v2589 = vsel %vm2574, 0, %v2514
      %v2590 = vsel %vm2574, 0, %v2521
      %v2591 = vsel %vm2574, 0, %v2528
      %v2592 = vsel %vm2574, 0, %v2535
      %v2593 = vsel %vm2574, %v2413, 0
      %v2594 = vsel %vm2574, %v2420, 0
      %v2595 = vsel %vm2574, %v2427, 0
      %v2596 = vsel %vm2574, %v2434, 0
      %v2597 = vsel %vm2574, %v2441, 0
      %v2598 = vsel %vm2574, %v2448, 0
      %v2599 = vsel %vm2574, %v2455, 0
      %v2600 = vsel %vm2574, %v2462, 0
      %v2601 = vsel %vm2574, %v2469, 0
      %v2602 = vsel %vm2574, %v2476, 0
      %v2603 = vsel %vm2574, %v2483, 0
      %v2604 = vsel %vm2574, %v2490, 0
      %v2605 = vsel %vm2574, %v2497, 0
      %v2606 = vsel %vm2574, %v2504, 0
      %v2607 = vsel %vm2574, %v2511, 0
      %v2608 = vsel %vm2574, %v2518, 0
      %v2609 = vsel %vm2574, %v2525, 0
      %v2610 = vsel %vm2574, %v2532, 0
      %v2647 = vunpack.c.l.b16 %v2575
      %v2648 = vunpack.c.h.b16 %v2575
      %v2649 = vunpack.c.l.b16 %v2593
      %v2650 = vunpack.c.l.b16 %v2576
      %v2651 = vunpack.c.h.b16 %v2576
      %v2652 = vunpack.c.l.b16 %v2594
      %v2653 = vunpack.c.l.b16 %v2577
      %v2654 = vunpack.c.h.b16 %v2577
      %v2655 = vunpack.c.l.b16 %v2595
      %v2656 = vunpack.c.l.b16 %v2578
      %v2657 = vunpack.c.h.b16 %v2578
      %v2658 = vunpack.c.l.b16 %v2596
      %v2659 = vunpack.c.l.b16 %v2579
      %v2660 = vunpack.c.h.b16 %v2579
      %v2661 = vunpack.c.l.b16 %v2597
      %v2662 = vunpack.c.l.b16 %v2580
      %v2663 = vunpack.c.h.b16 %v2580
      %v2664 = vunpack.c.l.b16 %v2598
      %v2665 = vunpack.c.l.b16 %v2581
      %v2666 = vunpack.c.h.b16 %v2581
      %v2667 = vunpack.c.l.b16 %v2599
      %v2668 = vunpack.c.l.b16 %v2582
      %v2669 = vunpack.c.h.b16 %v2582
      %v2670 = vunpack.c.l.b16 %v2600
      %v2671 = vunpack.c.l.b16 %v2583
      %v2672 = vunpack.c.h.b16 %v2583
      %v2673 = vunpack.c.l.b16 %v2601
      %v2674 = vunpack.c.l.b16 %v2584
      %v2675 = vunpack.c.h.b16 %v2584
      %v2676 = vunpack.c.l.b16 %v2602
      %v2677 = vunpack.c.l.b16 %v2585
      %v2678 = vunpack.c.h.b16 %v2585
      %v2679 = vunpack.c.l.b16 %v2603
      %v2680 = vunpack.c.l.b16 %v2586
      %v2681 = vunpack.c.h.b16 %v2586
      %v2682 = vunpack.c.l.b16 %v2604
      %v2683 = vunpack.c.l.b16 %v2587
      %v2684 = vunpack.c.h.b16 %v2587
      %v2685 = vunpack.c.l.b16 %v2605
      %v2686 = vunpack.c.l.b16 %v2588
      %v2687 = vunpack.c.h.b16 %v2588
      %v2688 = vunpack.c.l.b16 %v2606
      %v2689 = vunpack.c.l.b16 %v2589
      %v2690 = vunpack.c.h.b16 %v2589
      %v2691 = vunpack.c.l.b16 %v2607
      %v2692 = vunpack.c.l.b16 %v2590
      %v2693 = vunpack.c.h.b16 %v2590
      %v2694 = vunpack.c.l.b16 %v2608
      %v2695 = vunpack.c.l.b16 %v2591
      %v2696 = vunpack.c.h.b16 %v2591
      %v2697 = vunpack.c.l.b16 %v2609
      %v2698 = vunpack.c.l.b16 %v2592
      %v2699 = vunpack.c.h.b16 %v2592
      %v2700 = vunpack.c.l.b16 %v2610
      %v2701 = vpack.c.b16 %v2647, %v2647
      %v2702 = vpack.c.b16 %v2648, %v2648
      %v2703 = vpack.c.b16 %v2649, %v2649
      %v2704 = vpack.c.b16 %v2650, %v2650
      %v2705 = vpack.c.b16 %v2651, %v2651
      %v2706 = vpack.c.b16 %v2652, %v2652
      %v2707 = vpack.c.b16 %v2653, %v2653
      %v2708 = vpack.c.b16 %v2654, %v2654
      %v2709 = vpack.c.b16 %v2655, %v2655
      %v2710 = vpack.c.b16 %v2656, %v2656
      %v2711 = vpack.c.b16 %v2657, %v2657
      %v2712 = vpack.c.b16 %v2658, %v2658
      %v2713 = vpack.c.b16 %v2659, %v2659
      %v2714 = vpack.c.b16 %v2660, %v2660
      %v2715 = vpack.c.b16 %v2661, %v2661
      %v2716 = vpack.c.b16 %v2662, %v2662
      %v2717 = vpack.c.b16 %v2663, %v2663
      %v2718 = vpack.c.b16 %v2664, %v2664
      %v2719 = vpack.c.b16 %v2665, %v2665
      %v2720 = vpack.c.b16 %v2666, %v2666
      %v2721 = vpack.c.b16 %v2667, %v2667
      %v2722 = vpack.c.b16 %v2668, %v2668
      %v2723 = vpack.c.b16 %v2669, %v2669
      %v2724 = vpack.c.b16 %v2670, %v2670
      %v2725 = vpack.c.b16 %v2671, %v2671
      %v2726 = vpack.c.b16 %v2672, %v2672
      %v2727 = vpack.c.b16 %v2673, %v2673
      %v2728 = vpack.c.b16 %v2674, %v2674
      %v2729 = vpack.c.b16 %v2675, %v2675
      %v2730 = vpack.c.b16 %v2676, %v2676
      %v2731 = vpack.c.b16 %v2677, %v2677
      %v2732 = vpack.c.b16 %v2678, %v2678
      %v2733 = vpack.c.b16 %v2679, %v2679
      %v2734 = vpack.c.b16 %v2680, %v2680
      %v2735 = vpack.c.b16 %v2681, %v2681
      %v2736 = vpack.c.b16 %v2682, %v2682
      %v2737 = vpack.c.b16 %v2683, %v2683
      %v2738 = vpack.c.b16 %v2684, %v2684
      %v2739 = vpack.c.b16 %v2685, %v2685
      %v2740 = vpack.c.b16 %v2686, %v2686
      %v2741 = vpack.c.b16 %v2687, %v2687
      %v2742 = vpack.c.b16 %v2688, %v2688
      %v2743 = vpack.c.b16 %v2689, %v2689
      %v2744 = vpack.c.b16 %v2690, %v2690
      %v2745 = vpack.c.b16 %v2691, %v2691
      %v2746 = vpack.c.b16 %v2692, %v2692
      %v2747 = vpack.c.b16 %v2693, %v2693
      %v2748 = vpack.c.b16 %v2694, %v2694
      %v2749 = vpack.c.b16 %v2695, %v2695
      %v2750 = vpack.c.b16 %v2696, %v2696
      %v2751 = vpack.c.b16 %v2697, %v2697
      %v2752 = vpack.c.b16 %v2698, %v2698
      %v2753 = vpack.c.b16 %v2699, %v2699
      %v2754 = vpack.c.b16 %v2700, %v2700
      %vm2809 = vcmask 60416
      %2810 = vst.msk [vmem:[%s267] sm:$0xf] %vm2809, %v2701
      %2811 = vst.msk [vmem:[%s267 + $0x4] sm:$0xf] %vm2809, %v2702
      %vm2812 = vcmask 57344
      %2813 = vst.msk [vmem:[%s267 + $0x8] sm:$0x1] %vm2812, %v2703
      %2814 = vst.msk [vmem:[%s267 + $0xc] sm:$0xf] %vm2809, %v2704
      %2815 = vst.msk [vmem:[%s267 + $0x10] sm:$0xf] %vm2809, %v2705
      %2816 = vst.msk [vmem:[%s267 + $0x14] sm:$0x1] %vm2812, %v2706
      %2817 = vst.msk [vmem:[%s267 + $0x18] sm:$0xf] %vm2809, %v2707
      %2818 = vst.msk [vmem:[%s267 + $0x1c] sm:$0xf] %vm2809, %v2708
      %2819 = vst.msk [vmem:[%s267 + $0x20] sm:$0x1] %vm2812, %v2709
      %2820 = vst.msk [vmem:[%s267 + $0x24] sm:$0xf] %vm2809, %v2710
      %2821 = vst.msk [vmem:[%s267 + $0x28] sm:$0xf] %vm2809, %v2711
      %2822 = vst.msk [vmem:[%s267 + $0x2c] sm:$0x1] %vm2812, %v2712
      %2823 = vst.msk [vmem:[%s267 + $0x30] sm:$0xf] %vm2809, %v2713
      %2824 = vst.msk [vmem:[%s267 + $0x34] sm:$0xf] %vm2809, %v2714
      %2825 = vst.msk [vmem:[%s267 + $0x38] sm:$0x1] %vm2812, %v2715
      %2826 = vst.msk [vmem:[%s267 + $0x3c] sm:$0xf] %vm2809, %v2716
      %2827 = vst.msk [vmem:[%s267 + $0x40] sm:$0xf] %vm2809, %v2717
      %2828 = vst.msk [vmem:[%s267 + $0x44] sm:$0x1] %vm2812, %v2718
      %2829 = vst.msk [vmem:[%s267 + $0x48] sm:$0xf] %vm2809, %v2719
      %2830 = vst.msk [vmem:[%s267 + $0x4c] sm:$0xf] %vm2809, %v2720
      %2831 = vst.msk [vmem:[%s267 + $0x50] sm:$0x1] %vm2812, %v2721
      %2832 = vst.msk [vmem:[%s267 + $0x54] sm:$0xf] %vm2809, %v2722
      %2833 = vst.msk [vmem:[%s267 + $0x58] sm:$0xf] %vm2809, %v2723
      %2834 = vst.msk [vmem:[%s267 + $0x5c] sm:$0x1] %vm2812, %v2724
      %2835 = vst.msk [vmem:[%s267 + $0x60] sm:$0xf] %vm2809, %v2725
      %2836 = vst.msk [vmem:[%s267 + $0x64] sm:$0xf] %vm2809, %v2726
      %2837 = vst.msk [vmem:[%s267 + $0x68] sm:$0x1] %vm2812, %v2727
      %2838 = vst.msk [vmem:[%s267 + $0x6c] sm:$0xf] %vm2809, %v2728
      %2839 = vst.msk [vmem:[%s267 + $0x70] sm:$0xf] %vm2809, %v2729
      %2840 = vst.msk [vmem:[%s267 + $0x74] sm:$0x1] %vm2812, %v2730
      %2841 = vst.msk [vmem:[%s267 + $0x78] sm:$0xf] %vm2809, %v2731
      %2842 = vst.msk [vmem:[%s267 + $0x7c] sm:$0xf] %vm2809, %v2732
      %2843 = vst.msk [vmem:[%s267 + $0x80] sm:$0x1] %vm2812, %v2733
      %2844 = vst.msk [vmem:[%s267 + $0x84] sm:$0xf] %vm2809, %v2734
      %2845 = vst.msk [vmem:[%s267 + $0x88] sm:$0xf] %vm2809, %v2735
      %2846 = vst.msk [vmem:[%s267 + $0x8c] sm:$0x1] %vm2812, %v2736
      %2847 = vst.msk [vmem:[%s267 + $0x90] sm:$0xf] %vm2809, %v2737
      %2848 = vst.msk [vmem:[%s267 + $0x94] sm:$0xf] %vm2809, %v2738
      %2849 = vst.msk [vmem:[%s267 + $0x98] sm:$0x1] %vm2812, %v2739
      %2850 = vst.msk [vmem:[%s267 + $0x9c] sm:$0xf] %vm2809, %v2740
      %2851 = vst.msk [vmem:[%s267 + $0xa0] sm:$0xf] %vm2809, %v2741
      %2852 = vst.msk [vmem:[%s267 + $0xa4] sm:$0x1] %vm2812, %v2742
      %2853 = vst.msk [vmem:[%s267 + $0xa8] sm:$0xf] %vm2809, %v2743
      %2854 = vst.msk [vmem:[%s267 + $0xac] sm:$0xf] %vm2809, %v2744
      %2855 = vst.msk [vmem:[%s267 + $0xb0] sm:$0x1] %vm2812, %v2745
      %2856 = vst.msk [vmem:[%s267 + $0xb4] sm:$0xf] %vm2809, %v2746
      %2857 = vst.msk [vmem:[%s267 + $0xb8] sm:$0xf] %vm2809, %v2747
      %2858 = vst.msk [vmem:[%s267 + $0xbc] sm:$0x1] %vm2812, %v2748
      %2859 = vst.msk [vmem:[%s267 + $0xc0] sm:$0xf] %vm2809, %v2749
      %2860 = vst.msk [vmem:[%s267 + $0xc4] sm:$0xf] %vm2809, %v2750
      %2861 = vst.msk [vmem:[%s267 + $0xc8] sm:$0x1] %vm2812, %v2751
      %2862 = vst.msk [vmem:[%s267 + $0xcc] sm:$0xf] %vm2809, %v2752
      %2863 = vst.msk [vmem:[%s267 + $0xd0] sm:$0xf] %vm2809, %v2753
      %2864 = vst.msk [vmem:[%s267 + $0xd4] sm:$0x1] %vm2812, %v2754
      %p2865 = scmp.eq.s32.totalorder %s22, 0
      // Predicated region
      $region37: #{res_block_forward.4} parent=35 // pred_check
        %p2866 = pneg %p2865
      $region38: #{res_block_forward.4} parent=35 // pred_check_branch
        %2868 = sbr.rel (%p2866) target = $region40
      $region39: #{res_block_forward.4} parent=35 // pred_region
        %vm2869 = vcmask 58368
        %2870 = vst.msk [vmem:[%s271] sm:$0x3] %vm2869, 0.0
      $region40: #{res_block_forward.4} parent=35 // pred_fallthru
        _
      %v2871 = vld [vmem:[%s271] sm:$0x3]
      %v2872 = vsel %vm1710, %v2358, 0.0
      %v2873 = vsel %vm1710, %v2359, 0.0
      %v2874 = vadd.f32 %v2872, %v2873
      %v2875 = vsel %vm1710, %v2360, 0.0
      %v2876 = vadd.f32 %v2874, %v2875
      %v2877 = vsel %vm1710, %v2361, 0.0
      %v2878 = vadd.f32 %v2876, %v2877
      %v2879 = vsel %vm1710, %v2362, 0.0
      %v2880 = vadd.f32 %v2878, %v2879
      %v2881 = vsel %vm1710, %v2363, 0.0
      %v2882 = vadd.f32 %v2880, %v2881
      %v2883 = vsel %vm1710, %v2364, 0.0
      %v2884 = vadd.f32 %v2882, %v2883
      %v2885 = vsel %vm1710, %v2365, 0.0
      %v2886 = vadd.f32 %v2884, %v2885
      %v2887 = vsel %vm1710, %v2366, 0.0
      %v2888 = vadd.f32 %v2886, %v2887
      %v2889 = vsel %vm1710, %v2367, 0.0
      %v2890 = vadd.f32 %v2888, %v2889
      %v2891 = vsel %vm1710, %v2368, 0.0
      %v2892 = vadd.f32 %v2890, %v2891
      %v2893 = vsel %vm1710, %v2369, 0.0
      %v2894 = vadd.f32 %v2892, %v2893
      %v2895 = vsel %vm1710, %v2370, 0.0
      %v2896 = vadd.f32 %v2894, %v2895
      %v2897 = vsel %vm1710, %v2371, 0.0
      %v2898 = vadd.f32 %v2896, %v2897
      %v2899 = vsel %vm1710, %v2372, 0.0
      %v2900 = vadd.f32 %v2898, %v2899
      %v2901 = vsel %vm1710, %v2373, 0.0
      %v2902 = vadd.f32 %v2900, %v2901
      %v2903 = vsel %vm1710, %v2374, 0.0
      %v2904 = vadd.f32 %v2902, %v2903
      %v2905 = vsel %vm1710, %v2375, 0.0
      %v2906 = vadd.f32 %v2904, %v2905
      %v2907 = vsel %vm1710, %v2376, 0.0
      %v2908 = vadd.f32 %v2906, %v2907
      %v2909 = vsel %vm1710, %v2377, 0.0
      %v2910 = vadd.f32 %v2908, %v2909
      %v2911 = vsel %vm1710, %v2378, 0.0
      %v2912 = vadd.f32 %v2910, %v2911
      %v2913 = vsel %vm1710, %v2379, 0.0
      %v2914 = vadd.f32 %v2912, %v2913
      %v2915 = vsel %vm1710, %v2380, 0.0
      %v2916 = vadd.f32 %v2914, %v2915
      %v2917 = vsel %vm1710, %v2381, 0.0
      %v2918 = vadd.f32 %v2916, %v2917
      %v2919 = vsel %vm1710, %v2382, 0.0
      %v2920 = vadd.f32 %v2918, %v2919
      %v2921 = vsel %vm1710, %v2383, 0.0
      %v2922 = vadd.f32 %v2920, %v2921
      %v2923 = vsel %vm1710, %v2384, 0.0
      %v2924 = vadd.f32 %v2922, %v2923
      %v2925 = vsel %vm1710, %v2385, 0.0
      %v2926 = vadd.f32 %v2924, %v2925
      %v2927 = vsel %vm1710, %v2386, 0.0
      %v2928 = vadd.f32 %v2926, %v2927
      %v2929 = vsel %vm1710, %v2387, 0.0
      %v2930 = vadd.f32 %v2928, %v2929
      %v2931 = vsel %vm1710, %v2388, 0.0
      %v2932 = vadd.f32 %v2930, %v2931
      %v2933 = vsel %vm1710, %v2389, 0.0
      %v2934 = vadd.f32 %v2932, %v2933
      %v2935 = vrot.slane %v2934, 4
      %v2936 = vadd.f32 %v2934, %v2935
      %v2937 = vrot.slane %v2936, 2
      %v2938 = vadd.f32 %v2936, %v2937
      %v2939 = vrot.slane %v2938, 1
      %v2940 = vadd.f32 %v2938, %v2939
      %v2941 = vmul.f32 %v2358, %v2358
      %v2942 = vmul.f32 %v2359, %v2359
      %v2943 = vmul.f32 %v2360, %v2360
      %v2944 = vmul.f32 %v2361, %v2361
      %v2945 = vmul.f32 %v2362, %v2362
      %v2946 = vmul.f32 %v2363, %v2363
      %v2947 = vmul.f32 %v2364, %v2364
      %v2948 = vmul.f32 %v2365, %v2365
      %v2949 = vmul.f32 %v2366, %v2366
      %v2950 = vmul.f32 %v2367, %v2367
      %v2951 = vmul.f32 %v2368, %v2368
      %v2952 = vmul.f32 %v2369, %v2369
      %v2953 = vmul.f32 %v2370, %v2370
      %v2954 = vmul.f32 %v2371, %v2371
      %v2955 = vmul.f32 %v2372, %v2372
      %v2956 = vmul.f32 %v2373, %v2373
      %v2957 = vmul.f32 %v2374, %v2374
      %v2958 = vmul.f32 %v2375, %v2375
      %v2959 = vmul.f32 %v2376, %v2376
      %v2960 = vmul.f32 %v2377, %v2377
      %v2961 = vmul.f32 %v2378, %v2378
      %v2962 = vmul.f32 %v2379, %v2379
      %v2963 = vmul.f32 %v2380, %v2380
      %v2964 = vmul.f32 %v2381, %v2381
      %v2965 = vmul.f32 %v2382, %v2382
      %v2966 = vmul.f32 %v2383, %v2383
      %v2967 = vmul.f32 %v2384, %v2384
      %v2968 = vmul.f32 %v2385, %v2385
      %v2969 = vmul.f32 %v2386, %v2386
      %v2970 = vmul.f32 %v2387, %v2387
      %v2971 = vmul.f32 %v2388, %v2388
      %v2972 = vmul.f32 %v2389, %v2389
      %v2973 = vsel %vm1710, %v2941, 0.0
      %v2974 = vsel %vm1710, %v2942, 0.0
      %v2975 = vadd.f32 %v2973, %v2974
      %v2976 = vsel %vm1710, %v2943, 0.0
      %v2977 = vadd.f32 %v2975, %v2976
      %v2978 = vsel %vm1710, %v2944, 0.0
      %v2979 = vadd.f32 %v2977, %v2978
      %v2980 = vsel %vm1710, %v2945, 0.0
      %v2981 = vadd.f32 %v2979, %v2980
      %v2982 = vsel %vm1710, %v2946, 0.0
      %v2983 = vadd.f32 %v2981, %v2982
      %v2984 = vsel %vm1710, %v2947, 0.0
      %v2985 = vadd.f32 %v2983, %v2984
      %v2986 = vsel %vm1710, %v2948, 0.0
      %v2987 = vadd.f32 %v2985, %v2986
      %v2988 = vsel %vm1710, %v2949, 0.0
      %v2989 = vadd.f32 %v2987, %v2988
      %v2990 = vsel %vm1710, %v2950, 0.0
      %v2991 = vadd.f32 %v2989, %v2990
      %v2992 = vsel %vm1710, %v2951, 0.0
      %v2993 = vadd.f32 %v2991, %v2992
      %v2994 = vsel %vm1710, %v2952, 0.0
      %v2995 = vadd.f32 %v2993, %v2994
      %v2996 = vsel %vm1710, %v2953, 0.0
      %v2997 = vadd.f32 %v2995, %v2996
      %v2998 = vsel %vm1710, %v2954, 0.0
      %v2999 = vadd.f32 %v2997, %v2998
      %v3000 = vsel %vm1710, %v2955, 0.0
      %v3001 = vadd.f32 %v2999, %v3000
      %v3002 = vsel %vm1710, %v2956, 0.0
      %v3003 = vadd.f32 %v3001, %v3002
      %v3004 = vsel %vm1710, %v2957, 0.0
      %v3005 = vadd.f32 %v3003, %v3004
      %v3006 = vsel %vm1710, %v2958, 0.0
      %v3007 = vadd.f32 %v3005, %v3006
      %v3008 = vsel %vm1710, %v2959, 0.0
      %v3009 = vadd.f32 %v3007, %v3008
      %v3010 = vsel %vm1710, %v2960, 0.0
      %v3011 = vadd.f32 %v3009, %v3010
      %v3012 = vsel %vm1710, %v2961, 0.0
      %v3013 = vadd.f32 %v3011, %v3012
      %v3014 = vsel %vm1710, %v2962, 0.0
      %v3015 = vadd.f32 %v3013, %v3014
      %v3016 = vsel %vm1710, %v2963, 0.0
      %v3017 = vadd.f32 %v3015, %v3016
      %v3018 = vsel %vm1710, %v2964, 0.0
      %v3019 = vadd.f32 %v3017, %v3018
      %v3020 = vsel %vm1710, %v2965, 0.0
      %v3021 = vadd.f32 %v3019, %v3020
      %v3022 = vsel %vm1710, %v2966, 0.0
      %v3023 = vadd.f32 %v3021, %v3022
      %v3024 = vsel %vm1710, %v2967, 0.0
      %v3025 = vadd.f32 %v3023, %v3024
      %v3026 = vsel %vm1710, %v2968, 0.0
      %v3027 = vadd.f32 %v3025, %v3026
      %v3028 = vsel %vm1710, %v2969, 0.0
      %v3029 = vadd.f32 %v3027, %v3028
      %v3030 = vsel %vm1710, %v2970, 0.0
      %v3031 = vadd.f32 %v3029, %v3030
      %v3032 = vsel %vm1710, %v2971, 0.0
      %v3033 = vadd.f32 %v3031, %v3032
      %v3034 = vsel %vm1710, %v2972, 0.0
      %v3035 = vadd.f32 %v3033, %v3034
      %v3036 = vrot.slane %v3035, 4
      %v3037 = vadd.f32 %v3035, %v3036
      %v3038 = vrot.slane %v3037, 2
      %v3039 = vadd.f32 %v3037, %v3038
      %v3040 = vrot.slane %v3039, 1
      %v3041 = vadd.f32 %v3039, %v3040
      %vm3042 = vcmask 1040384
      %v3043 = vsel %vm3042, %v2940, %v3041
      %v3044 = vadd.f32 %v2871, %v3043
      %vm3045 = vcmask 58368
      %3046 = vst.msk [vmem:[%s271] sm:$0x3] %vm3045, %v3044
      %p3047 = scmp.lt.s32.totalorder %s21, 1
      %s3048 = scalar_select %p3047, %s21, 1
      %p3049 = scmp.lt.s32.totalorder %s22, 0
      %s3050 = scalar_select %p3049, %s22, 0
      %s3051 = smul.addr %s3050, 54
      %s3052 = smul.addr %s3048, 54
      %s3053 = sadd.s32 %s3051, %s3052
      %s3054 = smul.addr %s3053, 4
      %s3055 = scalar_lea.vmem %s4, %s3054
      %p3056 = scmp.lt.s32.totalorder %s21, 1
      %s3057 = scalar_select %p3056, %s21, 1
      %s3058 = smul.addr %s3057, 2
      %s3059 = scalar_lea.vmem %s5, %s3058
      // Predicated region
      $region41: #{res_block_forward.4} parent=35 // pred_check
        %p3060 = pneg %p140
      $region42: #{res_block_forward.4} parent=35 // pred_check_branch
        %3062 = sbr.rel (%p3060) target = $region44
      $region43: #{res_block_forward.4} parent=35 // pred_region
        _
      $region44: #{res_block_forward.4} parent=35 // pred_fallthru
        _
      // Predicated region
      $region45: #{res_block_forward.4} parent=35 // pred_check
        %p3063 = pneg %p166
      $region46: #{res_block_forward.4} parent=35 // pred_check_branch
        %3065 = sbr.rel (%p3063) target = $region48
      $region47: #{res_block_forward.4} parent=35 // pred_region
        _
      $region48: #{res_block_forward.4} parent=35 // pred_fallthru
        _
    $region36: #{res_block_forward.4} parent=5 // pred_fallthru
      _
    %p3066 = scmp.le.s32.totalorder 2, %s12
    // Predicated region
    $region49: #{res_block_forward.4} parent=5 // pred_check
      %p3067 = pneg %p3066
    $region50: #{res_block_forward.4} parent=5 // pred_check_branch
      %3069 = sbr.rel (%p3067) target = $region52
    $region51: #{res_block_forward.4} parent=5 // pred_region
      %s3070 = ssub.s32 %s12, 2
      // Predicated region
      $region53: #{res_block_forward.4} parent=51 // pred_check
        %p3071 = pneg %p146
      $region54: #{res_block_forward.4} parent=51 // pred_check_branch
        %3073 = sbr.rel (%p3071) target = $region56
      $region55: #{res_block_forward.4} parent=51 // pred_region
        %p3074 = scmp.lt.s32.totalorder %s23, 1
        %s3075 = scalar_select %p3074, %s23, 1
        %p3076 = scmp.lt.s32.totalorder %s24, 0
        %s3077 = scalar_select %p3076, %s24, 0
        %s3078 = smul.addr %s3077, 54
        %s3079 = smul.addr %s3075, 54
        %s3080 = sadd.s32 %s3078, %s3079
        %s3081 = smul.addr %s3080, 4
        %s3082 = scalar_lea.vmem %s4, %s3081
      $region56: #{res_block_forward.4} parent=51 // pred_fallthru
        _
      // Predicated region
      $region57: #{res_block_forward.4} parent=51 // pred_check
        %p3083 = pneg %p172
      $region58: #{res_block_forward.4} parent=51 // pred_check_branch
        %3085 = sbr.rel (%p3083) target = $region60
      $region59: #{res_block_forward.4} parent=51 // pred_region
        %p3086 = scmp.lt.s32.totalorder %s23, 1
        %s3087 = scalar_select %p3086, %s23, 1
        %s3088 = smul.addr %s3087, 2
        %s3089 = scalar_lea.vmem %s5, %s3088
      $region60: #{res_block_forward.4} parent=51 // pred_fallthru
        _
    $region52: #{res_block_forward.4} parent=5 // pred_fallthru
      _
  $region6: #{res_block_forward.4} parent=0 // loop_footer
    %s16 = sadd.s32 1, %s12
  $region7: #{res_block_forward.4} parent=0 // loop_footer_branch
    %11 = sbr.rel target = $region3
  $region8: #{res_block_forward.4} parent=0 // loop_exit
    _

// kernel: res_block_forward.5
$region0: #{res_block_forward.5}
  #allocation0 [shape = 'u32[]', space=smem, size = 0x4, offset = 0x4, fixed_abs, tag = 'smem constant byte address 0x4 - core index']
  #allocation1 [shape = 'u32[144,128]{1,0:T(1,128)}', space=vmem, size = 0x12000, scoped, tag = 'internal scratch']
  %s0 = inlined_call_operand.vmem [shape: bf16[2,1,18,18,8], index: 0, kind: input, shape index: {}]
  %s1 = inlined_call_operand.vmem [shape: bf16[2,1,20,18,4], index: 1, kind: input, shape index: {}]
  %s2 = inlined_call_operand.vmem [shape: bf16[3,24,8], index: 2, kind: input, shape index: {}]
  %s3 = inlined_call_operand.vmem [shape: bf16[4,8], index: 3, kind: input, shape index: {}]
  %s4 = inlined_call_operand.vmem [shape: bf16[1,8], index: 4, kind: input, shape index: {}]
  %s5 = inlined_call_operand.vmem [shape: bf16[1,8], index: 5, kind: input, shape index: {}]
  %s6 = inlined_call_operand.vmem [shape: f32[1,8], index: 6, kind: input, shape index: {}]
  %s7 = inlined_call_operand.vmem [shape: f32[2,16,16,8], index: 7, kind: output, shape index: {}]
  %s8 = sld [smem:[#allocation0]]
  $region61: #{res_block_forward.5} parent=0
    _
  %s10 = ssub.s32 1, %s8
  %s11 = scalar_select 0, %s10, %s8
  loop: start=0, step=1, limit=4
  $region2: #{res_block_forward.5} parent=0 // loop_pre_header
    _
  $region3: #{res_block_forward.5} parent=0 // loop_header
    %s13 = sphi 0, %s17
    %p14 = scmp.ge.s32.totalorder %s13, 4
    %s20 = sphi 0, %s32
    %s21 = sphi 0, %s28
    %s22 = sphi 0, %s20
    %s23 = sphi 0, %s21
    %s24 = sphi 0, %s22
    %s25 = sphi 0, %s23
    %s37 = sphi 0, %s39
    %s40 = sphi 0, %s37
    %s41 = sphi 0, %s40
    %s57 = sphi 0, %s41
    %s65 = sphi 0, %s67
    %s68 = sphi 0, %s65
    %s69 = sphi 0, %s68
    %s85 = sphi 0, %s69
    %s89 = sphi 0, %s89
    %s91 = sphi 0, %s89
    %s92 = sphi 0, %s91
    %s106 = sphi 0, %s92
    %s110 = sphi 0, %s110
    %s112 = sphi 0, %s110
    %s113 = sphi 0, %s112
    %s127 = sphi 0, %s113
    %s131 = sphi 0, %s131
    %s133 = sphi 0, %s131
    %s134 = sphi 0, %s133
    %s148 = sphi 0, %s134
    %s152 = sphi 0, %s152
    %s154 = sphi 0, %s152
    %s155 = sphi 0, %s154
    %s169 = sphi 0, %s155
    %s173 = sphi 0, %s173
    %s175 = sphi 0, %s173
    %s176 = sphi 0, %s175
    %s190 = sphi 0, %s176
    %s198 = sphi 0, %s200
    %s201 = sphi 0, %s198
    %s202 = sphi 0, %s201
    %s218 = sphi 0, %s202
  $region4: #{res_block_forward.5} parent=0 // loop_header_branch
    %16 = sbr.rel (%p14) target = $region8
  $region5: #{res_block_forward.5} parent=0 // loop_body
    %s18 = ssub.s32 %s13, 1
    %s19 = ssub.s32 %s13, 2
    %s26 = sadd.s32 1, %s21
    %p27 = scmp.ge.s32.totalorder %s26, 1
    %s28 = scalar_select %p27, 0, %s26
    %s29 = sadd.s32 1, %s20
    %s30 = scalar_select %p27, %s29, %s20
    %p31 = scmp.ge.s32.totalorder %s30, 2
    %s32 = scalar_select %p31, 0, %s30
    %s33 = ssub.s32 %s20, %s32
    %s34 = ssub.s32 %s21, %s28
    %s35 = sor.u32 %s33, %s34
    %p36 = scmp.eq.s32.totalorder %s35, 0
    %s38 = sadd.s32 %s37, 1
    %s39 = scalar_select %p36, %s37, %s38
    %p42 = pneg %p36
    %p43 = scmp.eq.s32.totalorder %s13, 1
    %p44 = por %p42, %p43
    %p45 = scmp.ne.s32.totalorder %s37, %s40
    %p46 = scmp.eq.s32.totalorder %s13, 0
    %p47 = por %p45, %p46
    %p48 = scmp.ne.s32.totalorder %s37, %s40
    %p49 = scmp.eq.s32.totalorder %s18, 1
    %p50 = por %p48, %p49
    %p51 = scmp.ne.s32.totalorder %s40, %s41
    %p52 = scmp.eq.s32.totalorder %s18, 0
    %p53 = por %p51, %p52
    %p54 = scmp.ne.s32.totalorder %s40, %s41
    %p55 = scmp.eq.s32.totalorder %s19, 1
    %p56 = por %p54, %p55
    %p58 = scmp.ne.s32.totalorder %s41, %s57
    %p59 = scmp.eq.s32.totalorder %s19, 0
    %p60 = por %p58, %p59
    %s61 = ssub.s32 %s20, %s32
    %s62 = ssub.s32 %s21, %s28
    %s63 = sor.u32 %s61, %s62
    %p64 = scmp.eq.s32.totalorder %s63, 0
    %s66 = sadd.s32 %s65, 1
    %s67 = scalar_select %p64, %s65, %s66
    %p70 = pneg %p64
    %p71 = scmp.eq.s32.totalorder %s13, 1
    %p72 = por %p70, %p71
    %p73 = scmp.ne.s32.totalorder %s65, %s68
    %p74 = scmp.eq.s32.totalorder %s13, 0
    %p75 = por %p73, %p74
    %p76 = scmp.ne.s32.totalorder %s65, %s68
    %p77 = scmp.eq.s32.totalorder %s18, 1
    %p78 = por %p76, %p77
    %p79 = scmp.ne.s32.totalorder %s68, %s69
    %p80 = scmp.eq.s32.totalorder %s18, 0
    %p81 = por %p79, %p80
    %p82 = scmp.ne.s32.totalorder %s68, %s69
    %p83 = scmp.eq.s32.totalorder %s19, 1
    %p84 = por %p82, %p83
    %p86 = scmp.ne.s32.totalorder %s69, %s85
    %p87 = scmp.eq.s32.totalorder %s19, 0
    %p88 = por %p86, %p87
    %s90 = sadd.s32 %s89, 1
    %p93 = scmp.eq.s32.totalorder %s13, 1
    %p94 = scmp.ne.s32.totalorder %s89, %s91
    %p95 = scmp.eq.s32.totalorder %s13, 0
    %p96 = por %p94, %p95
    %p97 = scmp.ne.s32.totalorder %s89, %s91
    %p98 = scmp.eq.s32.totalorder %s18, 1
    %p99 = por %p97, %p98
    %p100 = scmp.ne.s32.totalorder %s91, %s92
    %p101 = scmp.eq.s32.totalorder %s18, 0
    %p102 = por %p100, %p101
    %p103 = scmp.ne.s32.totalorder %s91, %s92
    %p104 = scmp.eq.s32.totalorder %s19, 1
    %p105 = por %p103, %p104
    %p107 = scmp.ne.s32.totalorder %s92, %s106
    %p108 = scmp.eq.s32.totalorder %s19, 0
    %p109 = por %p107, %p108
    %s111 = sadd.s32 %s110, 1
    %p114 = scmp.eq.s32.totalorder %s13, 1
    %p115 = scmp.ne.s32.totalorder %s110, %s112
    %p116 = scmp.eq.s32.totalorder %s13, 0
    %p117 = por %p115, %p116
    %p118 = scmp.ne.s32.totalorder %s110, %s112
    %p119 = scmp.eq.s32.totalorder %s18, 1
    %p120 = por %p118, %p119
    %p121 = scmp.ne.s32.totalorder %s112, %s113
    %p122 = scmp.eq.s32.totalorder %s18, 0
    %p123 = por %p121, %p122
    %p124 = scmp.ne.s32.totalorder %s112, %s113
    %p125 = scmp.eq.s32.totalorder %s19, 1
    %p126 = por %p124, %p125
    %p128 = scmp.ne.s32.totalorder %s113, %s127
    %p129 = scmp.eq.s32.totalorder %s19, 0
    %p130 = por %p128, %p129
    %s132 = sadd.s32 %s131, 1
    %p135 = scmp.eq.s32.totalorder %s13, 1
    %p136 = scmp.ne.s32.totalorder %s131, %s133
    %p137 = scmp.eq.s32.totalorder %s13, 0
    %p138 = por %p136, %p137
    %p139 = scmp.ne.s32.totalorder %s131, %s133
    %p140 = scmp.eq.s32.totalorder %s18, 1
    %p141 = por %p139, %p140
    %p142 = scmp.ne.s32.totalorder %s133, %s134
    %p143 = scmp.eq.s32.totalorder %s18, 0
    %p144 = por %p142, %p143
    %p145 = scmp.ne.s32.totalorder %s133, %s134
    %p146 = scmp.eq.s32.totalorder %s19, 1
    %p147 = por %p145, %p146
    %p149 = scmp.ne.s32.totalorder %s134, %s148
    %p150 = scmp.eq.s32.totalorder %s19, 0
    %p151 = por %p149, %p150
    %s153 = sadd.s32 %s152, 1
    %p156 = scmp.eq.s32.totalorder %s13, 1
    %p157 = scmp.ne.s32.totalorder %s152, %s154
    %p158 = scmp.eq.s32.totalorder %s13, 0
    %p159 = por %p157, %p158
    %p160 = scmp.ne.s32.totalorder %s152, %s154
    %p161 = scmp.eq.s32.totalorder %s18, 1
    %p162 = por %p160, %p161
    %p163 = scmp.ne.s32.totalorder %s154, %s155
    %p164 = scmp.eq.s32.totalorder %s18, 0
    %p165 = por %p163, %p164
    %p166 = scmp.ne.s32.totalorder %s154, %s155
    %p167 = scmp.eq.s32.totalorder %s19, 1
    %p168 = por %p166, %p167
    %p170 = scmp.ne.s32.totalorder %s155, %s169
    %p171 = scmp.eq.s32.totalorder %s19, 0
    %p172 = por %p170, %p171
    %s174 = sadd.s32 %s173, 1
    %p177 = scmp.eq.s32.totalorder %s13, 1
    %p178 = scmp.ne.s32.totalorder %s173, %s175
    %p179 = scmp.eq.s32.totalorder %s13, 0
    %p180 = por %p178, %p179
    %p181 = scmp.ne.s32.totalorder %s173, %s175
    %p182 = scmp.eq.s32.totalorder %s18, 1
    %p183 = por %p181, %p182
    %p184 = scmp.ne.s32.totalorder %s175, %s176
    %p185 = scmp.eq.s32.totalorder %s18, 0
    %p186 = por %p184, %p185
    %p187 = scmp.ne.s32.totalorder %s175, %s176
    %p188 = scmp.eq.s32.totalorder %s19, 1
    %p189 = por %p187, %p188
    %p191 = scmp.ne.s32.totalorder %s176, %s190
    %p192 = scmp.eq.s32.totalorder %s19, 0
    %p193 = por %p191, %p192
    %s194 = ssub.s32 %s20, %s32
    %s195 = ssub.s32 %s21, %s28
    %s196 = sor.u32 %s194, %s195
    %p197 = scmp.eq.s32.totalorder %s196, 0
    %s199 = sadd.s32 %s198, 1
    %s200 = scalar_select %p197, %s198, %s199
    %p203 = pneg %p197
    %p204 = scmp.eq.s32.totalorder %s13, 1
    %p205 = por %p203, %p204
    %p206 = scmp.ne.s32.totalorder %s198, %s201
    %p207 = scmp.eq.s32.totalorder %s13, 0
    %p208 = por %p206, %p207
    %p209 = scmp.ne.s32.totalorder %s198, %s201
    %p210 = scmp.eq.s32.totalorder %s18, 1
    %p211 = por %p209, %p210
    %p212 = scmp.ne.s32.totalorder %s201, %s202
    %p213 = scmp.eq.s32.totalorder %s18, 0
    %p214 = por %p212, %p213
    %p215 = scmp.ne.s32.totalorder %s201, %s202
    %p216 = scmp.eq.s32.totalorder %s19, 1
    %p217 = por %p215, %p216
    %p219 = scmp.ne.s32.totalorder %s202, %s218
    %p220 = scmp.eq.s32.totalorder %s19, 0
    %p221 = por %p219, %p220
    %p222 = scmp.le.s32.totalorder 1, %s13
    %p223 = scmp.lt.s32.totalorder %s13, 3
    %p224 = pnand %p222, %p223
    %p225 = pneg %p224
    // Predicated region
    $region9: #{res_block_forward.5} parent=5 // pred_check
      _
    $region10: #{res_block_forward.5} parent=5 // pred_check_branch
      %227 = sbr.rel (%p224) target = $region12
    $region11: #{res_block_forward.5} parent=5 // pred_region
      %s228 = ssub.s32 %s13, 1
      // Predicated region
      $region13: #{res_block_forward.5} parent=11 // pred_check
        %p229 = pneg %p102
      $region14: #{res_block_forward.5} parent=11 // pred_check_branch
        %231 = sbr.rel (%p229) target = $region16
      $region15: #{res_block_forward.5} parent=11 // pred_region
        _
      $region16: #{res_block_forward.5} parent=11 // pred_fallthru
        _
      // Predicated region
      $region17: #{res_block_forward.5} parent=11 // pred_check
        %p232 = pneg %p123
      $region18: #{res_block_forward.5} parent=11 // pred_check_branch
        %234 = sbr.rel (%p232) target = $region20
      $region19: #{res_block_forward.5} parent=11 // pred_region
        _
      $region20: #{res_block_forward.5} parent=11 // pred_fallthru
        _
      // Predicated region
      $region21: #{res_block_forward.5} parent=11 // pred_check
        %p235 = pneg %p144
      $region22: #{res_block_forward.5} parent=11 // pred_check_branch
        %237 = sbr.rel (%p235) target = $region24
      $region23: #{res_block_forward.5} parent=11 // pred_region
        _
      $region24: #{res_block_forward.5} parent=11 // pred_fallthru
        _
      // Predicated region
      $region25: #{res_block_forward.5} parent=11 // pred_check
        %p238 = pneg %p165
      $region26: #{res_block_forward.5} parent=11 // pred_check_branch
        %240 = sbr.rel (%p238) target = $region28
      $region27: #{res_block_forward.5} parent=11 // pred_region
        _
      $region28: #{res_block_forward.5} parent=11 // pred_fallthru
        _
      // Predicated region
      $region29: #{res_block_forward.5} parent=11 // pred_check
        %p241 = pneg %p186
      $region30: #{res_block_forward.5} parent=11 // pred_check_branch
        %243 = sbr.rel (%p241) target = $region32
      $region31: #{res_block_forward.5} parent=11 // pred_region
        _
      $region32: #{res_block_forward.5} parent=11 // pred_fallthru
        _
    $region12: #{res_block_forward.5} parent=5 // pred_fallthru
      _
    %p244 = scmp.lt.s32.totalorder %s13, 2
    // Predicated region
    $region33: #{res_block_forward.5} parent=5 // pred_check
      %p245 = pneg %p244
    $region34: #{res_block_forward.5} parent=5 // pred_check_branch
      %247 = sbr.rel (%p245) target = $region36
    $region35: #{res_block_forward.5} parent=5 // pred_region
      // Predicated region
      $region37: #{res_block_forward.5} parent=35 // pred_check
        %p248 = pneg %p47
      $region38: #{res_block_forward.5} parent=35 // pred_check_branch
        %250 = sbr.rel (%p248) target = $region40
      $region39: #{res_block_forward.5} parent=35 // pred_region
        %p251 = scmp.lt.s32.totalorder %s20, 1
        %s252 = scalar_select %p251, %s20, 1
        %p253 = scmp.lt.s32.totalorder %s21, 0
        %s254 = scalar_select %p253, %s21, 0
        %s255 = smul.addr %s254, 54
        %s256 = smul.addr %s252, 54
        %s257 = sadd.s32 %s255, %s256
        %s258 = smul.addr %s257, 4
        %s259 = scalar_lea.vmem %s0, %s258
      $region40: #{res_block_forward.5} parent=35 // pred_fallthru
        _
      // Predicated region
      $region41: #{res_block_forward.5} parent=35 // pred_check
        %p260 = pneg %p75
      $region42: #{res_block_forward.5} parent=35 // pred_check_branch
        %262 = sbr.rel (%p260) target = $region44
      $region43: #{res_block_forward.5} parent=35 // pred_region
        %p263 = scmp.lt.s32.totalorder %s20, 1
        %s264 = scalar_select %p263, %s20, 1
        %p265 = scmp.lt.s32.totalorder %s21, 0
        %s266 = scalar_select %p265, %s21, 0
        %s267 = smul.addr %s266, 60
        %s268 = smul.addr %s264, 60
        %s269 = sadd.s32 %s267, %s268
        %s270 = smul.addr %s269, 4
        %s271 = scalar_lea.vmem %s1, %s270
      $region44: #{res_block_forward.5} parent=35 // pred_fallthru
        _
    $region36: #{res_block_forward.5} parent=5 // pred_fallthru
      _
    %p272 = scmp.le.s32.totalorder 1, %s13
    %p273 = scmp.lt.s32.totalorder %s13, 3
    %p274 = pnand %p272, %p273
    %p275 = pneg %p274
    // Predicated region
    $region45: #{res_block_forward.5} parent=5 // pred_check
      _
    $region46: #{res_block_forward.5} parent=5 // pred_check_branch
      %277 = sbr.rel (%p274) target = $region48
    $region47: #{res_block_forward.5} parent=5 // pred_region
      %s278 = ssub.s32 %s13, 1
      %p279 = scmp.lt.s32.totalorder %s22, 1
      %s280 = scalar_select %p279, %s22, 1
      %p281 = scmp.lt.s32.totalorder %s23, 0
      %s282 = scalar_select %p281, %s23, 0
      %s283 = smul.addr %s282, 54
      %s284 = smul.addr %s280, 54
      %s285 = sadd.s32 %s283, %s284
      %s286 = smul.addr %s285, 4
      %s287 = scalar_lea.vmem %s0, %s286
      %p288 = pneg %p53
      %p289 = pneg %p50
      %p290 = scmp.lt.s32.totalorder %s22, 1
      %s291 = scalar_select %p290, %s22, 1
      %p292 = scmp.lt.s32.totalorder %s23, 0
      %s293 = scalar_select %p292, %s23, 0
      %s294 = smul.addr %s293, 60
      %s295 = smul.addr %s291, 60
      %s296 = sadd.s32 %s294, %s295
      %s297 = smul.addr %s296, 4
      %s298 = scalar_lea.vmem %s1, %s297
      %p299 = pneg %p81
      %p300 = pneg %p78
      %p301 = pneg %p102
      %p302 = pneg %p99
      %p303 = pneg %p123
      %p304 = pneg %p120
      %p305 = pneg %p144
      %p306 = pneg %p141
      %p307 = pneg %p165
      %p308 = pneg %p162
      %p309 = pneg %p186
      %p310 = pneg %p183
      %p311 = pneg %p214
      %p312 = pneg %p211
      %s313 = smul.u32 16, %s23
      %p314 = scmp.lt.s32.totalorder %s22, 1
      %s315 = scalar_select %p314, %s22, 1
      %p316 = scmp.lt.s32.totalorder %s313, 15
      %s317 = scalar_select %p316, %s313, 15
      %s318 = smul.addr %s317, 2
      %s319 = smul.addr %s315, 32
      %s320 = sadd.s32 %s318, %s319
      %s321 = smul.addr %s320, 8
      %s322 = scalar_lea.vmem %s7, %s321
      %p323 = scmp.lt.s32.totalorder %s22, 1
      %s324 = scalar_select %p323, %s22, 1
      %p325 = scmp.lt.s32.totalorder %s23, 0
      %s326 = scalar_select %p325, %s23, 0
      %s327 = smul.addr %s326, 54
      %s328 = smul.addr %s324, 54
      %s329 = sadd.s32 %s327, %s328
      %s330 = smul.addr %s329, 4
      %s331 = scalar_lea.vmem %s0, %s330
      %p332 = scmp.lt.s32.totalorder %s22, 1
      %s333 = scalar_select %p332, %s22, 1
      %p334 = scmp.lt.s32.totalorder %s23, 0
      %s335 = scalar_select %p334, %s23, 0
      %s336 = smul.addr %s335, 60
      %s337 = smul.addr %s333, 60
      %s338 = sadd.s32 %s336, %s337
      %s339 = smul.addr %s338, 4
      %s340 = scalar_lea.vmem %s1, %s339
      %s341 = smul.u32 16, %s23
      %p342 = scmp.lt.s32.totalorder %s22, 1
      %s343 = scalar_select %p342, %s22, 1
      %p344 = scmp.lt.s32.totalorder %s341, 15
      %s345 = scalar_select %p344, %s341, 15
      %s346 = smul.addr %s345, 2
      %s347 = smul.addr %s343, 32
      %s348 = sadd.s32 %s346, %s347
      %s349 = smul.addr %s348, 8
      %s350 = scalar_lea.vmem %s7, %s349
      %s351 = smul.u32 16, %s23
      %v354 = vld [vmem:[%s331] sm:$0xf]
      %v355 = vld [vmem:[%s331 + $0x4] sm:$0xf]
      %v356 = vld [vmem:[%s331 + $0x8] sm:$0x1]
      %v357 = vld [vmem:[%s331 + $0xc] sm:$0xf]
      %v358 = vld [vmem:[%s331 + $0x10] sm:$0xf]
      %v359 = vld [vmem:[%s331 + $0x14] sm:$0x1]
      %v360 = vld [vmem:[%s331 + $0x18] sm:$0xf]
      %v361 = vld [vmem:[%s331 + $0x1c] sm:$0xf]
      %v362 = vld [vmem:[%s331 + $0x20] sm:$0x1]
      %v363 = vld [vmem:[%s331 + $0x24] sm:$0xf]
      %v364 = vld [vmem:[%s331 + $0x28] sm:$0xf]
      %v365 = vld [vmem:[%s331 + $0x2c] sm:$0x1]
      %v366 = vld [vmem:[%s331 + $0x30] sm:$0xf]
      %v367 = vld [vmem:[%s331 + $0x34] sm:$0xf]
      %v368 = vld [vmem:[%s331 + $0x38] sm:$0x1]
      %v369 = vld [vmem:[%s331 + $0x3c] sm:$0xf]
      %v370 = vld [vmem:[%s331 + $0x40] sm:$0xf]
      %v371 = vld [vmem:[%s331 + $0x44] sm:$0x1]
      %v372 = vld [vmem:[%s331 + $0x48] sm:$0xf]
      %v373 = vld [vmem:[%s331 + $0x4c] sm:$0xf]
      %v374 = vld [vmem:[%s331 + $0x50] sm:$0x1]
      %v375 = vld [vmem:[%s331 + $0x54] sm:$0xf]
      %v376 = vld [vmem:[%s331 + $0x58] sm:$0xf]
      %v377 = vld [vmem:[%s331 + $0x5c] sm:$0x1]
      %v378 = vld [vmem:[%s331 + $0x60] sm:$0xf]
      %v379 = vld [vmem:[%s331 + $0x64] sm:$0xf]
      %v380 = vld [vmem:[%s331 + $0x68] sm:$0x1]
      %v381 = vld [vmem:[%s331 + $0x6c] sm:$0xf]
      %v382 = vld [vmem:[%s331 + $0x70] sm:$0xf]
      %v383 = vld [vmem:[%s331 + $0x74] sm:$0x1]
      %v384 = vld [vmem:[%s331 + $0x78] sm:$0xf]
      %v385 = vld [vmem:[%s331 + $0x7c] sm:$0xf]
      %v386 = vld [vmem:[%s331 + $0x80] sm:$0x1]
      %v387 = vld [vmem:[%s331 + $0x84] sm:$0xf]
      %v388 = vld [vmem:[%s331 + $0x88] sm:$0xf]
      %v389 = vld [vmem:[%s331 + $0x8c] sm:$0x1]
      %v390 = vld [vmem:[%s331 + $0x90] sm:$0xf]
      %v391 = vld [vmem:[%s331 + $0x94] sm:$0xf]
      %v392 = vld [vmem:[%s331 + $0x98] sm:$0x1]
      %v393 = vld [vmem:[%s331 + $0x9c] sm:$0xf]
      %v394 = vld [vmem:[%s331 + $0xa0] sm:$0xf]
      %v395 = vld [vmem:[%s331 + $0xa4] sm:$0x1]
      %v396 = vld [vmem:[%s331 + $0xa8] sm:$0xf]
      %v397 = vld [vmem:[%s331 + $0xac] sm:$0xf]
      %v398 = vld [vmem:[%s331 + $0xb0] sm:$0x1]
      %v399 = vld [vmem:[%s331 + $0xb4] sm:$0xf]
      %v400 = vld [vmem:[%s331 + $0xb8] sm:$0xf]
      %v401 = vld [vmem:[%s331 + $0xbc] sm:$0x1]
      %v402 = vld [vmem:[%s331 + $0xc0] sm:$0xf]
      %v403 = vld [vmem:[%s331 + $0xc4] sm:$0xf]
      %v404 = vld [vmem:[%s331 + $0xc8] sm:$0x1]
      %v405 = vld [vmem:[%s331 + $0xcc] sm:$0xf]
      %v406 = vld [vmem:[%s331 + $0xd0] sm:$0xf]
      %v407 = vld [vmem:[%s331 + $0xd4] sm:$0x1]
      %v408 = vld [vmem:[%s4] sm:$0x1]
      %v410 = vpack.i.b16 %v408, %v408
      %v412 = vlaneseq
      %v413 = vshrl.u32 %v412, 7
      %v414 = vsub.s32 0, %v413
      %v415 = vrot.slane %v410, %v414
      %v417 = vunpack.c.l.b16 %v415
      %v418 = vpack.c.b16 %v417, %v417
      %v420 = vmul.bf16 %v354, %v418
      %v421 = vmul.bf16 %v355, %v418
      %v422 = vmul.bf16 %v356, %v418
      %v423 = vmul.bf16 %v357, %v418
      %v424 = vmul.bf16 %v358, %v418
      %v425 = vmul.bf16 %v359, %v418
      %v426 = vmul.bf16 %v360, %v418
      %v427 = vmul.bf16 %v361, %v418
      %v428 = vmul.bf16 %v362, %v418
      %v429 = vmul.bf16 %v363, %v418
      %v430 = vmul.bf16 %v364, %v418
      %v431 = vmul.bf16 %v365, %v418
      %v432 = vmul.bf16 %v366, %v418
      %v433 = vmul.bf16 %v367, %v418
      %v434 = vmul.bf16 %v368, %v418
      %v435 = vmul.bf16 %v369, %v418
      %v436 = vmul.bf16 %v370, %v418
      %v437 = vmul.bf16 %v371, %v418
      %v438 = vmul.bf16 %v372, %v418
      %v439 = vmul.bf16 %v373, %v418
      %v440 = vmul.bf16 %v374, %v418
      %v441 = vmul.bf16 %v375, %v418
      %v442 = vmul.bf16 %v376, %v418
      %v443 = vmul.bf16 %v377, %v418
      %v444 = vmul.bf16 %v378, %v418
      %v445 = vmul.bf16 %v379, %v418
      %v446 = vmul.bf16 %v380, %v418
      %v447 = vmul.bf16 %v381, %v418
      %v448 = vmul.bf16 %v382, %v418
      %v449 = vmul.bf16 %v383, %v418
      %v450 = vmul.bf16 %v384, %v418
      %v451 = vmul.bf16 %v385, %v418
      %v452 = vmul.bf16 %v386, %v418
      %v453 = vmul.bf16 %v387, %v418
      %v454 = vmul.bf16 %v388, %v418
      %v455 = vmul.bf16 %v389, %v418
      %v456 = vmul.bf16 %v390, %v418
      %v457 = vmul.bf16 %v391, %v418
      %v458 = vmul.bf16 %v392, %v418
      %v459 = vmul.bf16 %v393, %v418
      %v460 = vmul.bf16 %v394, %v418
      %v461 = vmul.bf16 %v395, %v418
      %v462 = vmul.bf16 %v396, %v418
      %v463 = vmul.bf16 %v397, %v418
      %v464 = vmul.bf16 %v398, %v418
      %v465 = vmul.bf16 %v399, %v418
      %v466 = vmul.bf16 %v400, %v418
      %v467 = vmul.bf16 %v401, %v418
      %v468 = vmul.bf16 %v402, %v418
      %v469 = vmul.bf16 %v403, %v418
      %v470 = vmul.bf16 %v404, %v418
      %v471 = vmul.bf16 %v405, %v418
      %v472 = vmul.bf16 %v406, %v418
      %v473 = vmul.bf16 %v407, %v418
      %v474 = vld [vmem:[%s5] sm:$0x1]
      %v476 = vpack.i.b16 %v474, %v474
      %v478 = vlaneseq
      %v479 = vshrl.u32 %v478, 7
      %v480 = vsub.s32 0, %v479
      %v481 = vrot.slane %v476, %v480
      %v483 = vunpack.c.l.b16 %v481
      %v484 = vpack.c.b16 %v483, %v483
      %v486 = vadd.bf16 %v420, %v484
      %v487 = vadd.bf16 %v421, %v484
      %v488 = vadd.bf16 %v422, %v484
      %v489 = vadd.bf16 %v423, %v484
      %v490 = vadd.bf16 %v424, %v484
      %v491 = vadd.bf16 %v425, %v484
      %v492 = vadd.bf16 %v426, %v484
      %v493 = vadd.bf16 %v427, %v484
      %v494 = vadd.bf16 %v428, %v484
      %v495 = vadd.bf16 %v429, %v484
      %v496 = vadd.bf16 %v430, %v484
      %v497 = vadd.bf16 %v431, %v484
      %v498 = vadd.bf16 %v432, %v484
      %v499 = vadd.bf16 %v433, %v484
      %v500 = vadd.bf16 %v434, %v484
      %v501 = vadd.bf16 %v435, %v484
      %v502 = vadd.bf16 %v436, %v484
      %v503 = vadd.bf16 %v437, %v484
      %v504 = vadd.bf16 %v438, %v484
      %v505 = vadd.bf16 %v439, %v484
      %v506 = vadd.bf16 %v440, %v484
      %v507 = vadd.bf16 %v441, %v484
      %v508 = vadd.bf16 %v442, %v484
      %v509 = vadd.bf16 %v443, %v484
      %v510 = vadd.bf16 %v444, %v484
      %v511 = vadd.bf16 %v445, %v484
      %v512 = vadd.bf16 %v446, %v484
      %v513 = vadd.bf16 %v447, %v484
      %v514 = vadd.bf16 %v448, %v484
      %v515 = vadd.bf16 %v449, %v484
      %v516 = vadd.bf16 %v450, %v484
      %v517 = vadd.bf16 %v451, %v484
      %v518 = vadd.bf16 %v452, %v484
      %v519 = vadd.bf16 %v453, %v484
      %v520 = vadd.bf16 %v454, %v484
      %v521 = vadd.bf16 %v455, %v484
      %v522 = vadd.bf16 %v456, %v484
      %v523 = vadd.bf16 %v457, %v484
      %v524 = vadd.bf16 %v458, %v484
      %v525 = vadd.bf16 %v459, %v484
      %v526 = vadd.bf16 %v460, %v484
      %v527 = vadd.bf16 %v461, %v484
      %v528 = vadd.bf16 %v462, %v484
      %v529 = vadd.bf16 %v463, %v484
      %v530 = vadd.bf16 %v464, %v484
      %v531 = vadd.bf16 %v465, %v484
      %v532 = vadd.bf16 %v466, %v484
      %v533 = vadd.bf16 %v467, %v484
      %v534 = vadd.bf16 %v468, %v484
      %v535 = vadd.bf16 %v469, %v484
      %v536 = vadd.bf16 %v470, %v484
      %v537 = vadd.bf16 %v471, %v484
      %v538 = vadd.bf16 %v472, %v484
      %v539 = vadd.bf16 %v473, %v484
      %vm540 = vcmp.ge.bf16.partialorder %v486, 0
      %vm541 = vcmp.ge.bf16.partialorder %v487, 0
      %vm542 = vcmp.ge.bf16.partialorder %v488, 0
      %vm543 = vcmp.ge.bf16.partialorder %v489, 0
      %vm544 = vcmp.ge.bf16.partialorder %v490, 0
      %vm545 = vcmp.ge.bf16.partialorder %v491, 0
      %vm546 = vcmp.ge.bf16.partialorder %v492, 0
      %vm547 = vcmp.ge.bf16.partialorder %v493, 0
      %vm548 = vcmp.ge.bf16.partialorder %v494, 0
      %vm549 = vcmp.ge.bf16.partialorder %v495, 0
      %vm550 = vcmp.ge.bf16.partialorder %v496, 0
      %vm551 = vcmp.ge.bf16.partialorder %v497, 0
      %vm552 = vcmp.ge.bf16.partialorder %v498, 0
      %vm553 = vcmp.ge.bf16.partialorder %v499, 0
      %vm554 = vcmp.ge.bf16.partialorder %v500, 0
      %vm555 = vcmp.ge.bf16.partialorder %v501, 0
      %vm556 = vcmp.ge.bf16.partialorder %v502, 0
      %vm557 = vcmp.ge.bf16.partialorder %v503, 0
      %vm558 = vcmp.ge.bf16.partialorder %v504, 0
      %vm559 = vcmp.ge.bf16.partialorder %v505, 0
      %vm560 = vcmp.ge.bf16.partialorder %v506, 0
      %vm561 = vcmp.ge.bf16.partialorder %v507, 0
      %vm562 = vcmp.ge.bf16.partialorder %v508, 0
      %vm563 = vcmp.ge.bf16.partialorder %v509, 0
      %vm564 = vcmp.ge.bf16.partialorder %v510, 0
      %vm565 = vcmp.ge.bf16.partialorder %v511, 0
      %vm566 = vcmp.ge.bf16.partialorder %v512, 0
      %vm567 = vcmp.ge.bf16.partialorder %v513, 0
      %vm568 = vcmp.ge.bf16.partialorder %v514, 0
      %vm569 = vcmp.ge.bf16.partialorder %v515, 0
      %vm570 = vcmp.ge.bf16.partialorder %v516, 0
      %vm571 = vcmp.ge.bf16.partialorder %v517, 0
      %vm572 = vcmp.ge.bf16.partialorder %v518, 0
      %vm573 = vcmp.ge.bf16.partialorder %v519, 0
      %vm574 = vcmp.ge.bf16.partialorder %v520, 0
      %vm575 = vcmp.ge.bf16.partialorder %v521, 0
      %vm576 = vcmp.ge.bf16.partialorder %v522, 0
      %vm577 = vcmp.ge.bf16.partialorder %v523, 0
      %vm578 = vcmp.ge.bf16.partialorder %v524, 0
      %vm579 = vcmp.ge.bf16.partialorder %v525, 0
      %vm580 = vcmp.ge.bf16.partialorder %v526, 0
      %vm581 = vcmp.ge.bf16.partialorder %v527, 0
      %vm582 = vcmp.ge.bf16.partialorder %v528, 0
      %vm583 = vcmp.ge.bf16.partialorder %v529, 0
      %vm584 = vcmp.ge.bf16.partialorder %v530, 0
      %vm585 = vcmp.ge.bf16.partialorder %v531, 0
      %vm586 = vcmp.ge.bf16.partialorder %v532, 0
      %vm587 = vcmp.ge.bf16.partialorder %v533, 0
      %vm588 = vcmp.ge.bf16.partialorder %v534, 0
      %vm589 = vcmp.ge.bf16.partialorder %v535, 0
      %vm590 = vcmp.ge.bf16.partialorder %v536, 0
      %vm591 = vcmp.ge.bf16.partialorder %v537, 0
      %vm592 = vcmp.ge.bf16.partialorder %v538, 0
      %vm593 = vcmp.ge.bf16.partialorder %v539, 0
      %v594 = vmul.bf16 %v486, 1009007652
      %v595 = vmul.bf16 %v487, 1009007652
      %v596 = vmul.bf16 %v488, 1009007652
      %v597 = vmul.bf16 %v489, 1009007652
      %v598 = vmul.bf16 %v490, 1009007652
      %v599 = vmul.bf16 %v491, 1009007652
      %v600 = vmul.bf16 %v492, 1009007652
      %v601 = vmul.bf16 %v493, 1009007652
      %v602 = vmul.bf16 %v494, 1009007652
      %v603 = vmul.bf16 %v495, 1009007652
      %v604 = vmul.bf16 %v496, 1009007652
      %v605 = vmul.bf16 %v497, 1009007652
      %v606 = vmul.bf16 %v498, 1009007652
      %v607 = vmul.bf16 %v499, 1009007652
      %v608 = vmul.bf16 %v500, 1009007652
      %v609 = vmul.bf16 %v501, 1009007652
      %v610 = vmul.bf16 %v502, 1009007652
      %v611 = vmul.bf16 %v503, 1009007652
      %v612 = vmul.bf16 %v504, 1009007652
      %v613 = vmul.bf16 %v505, 1009007652
      %v614 = vmul.bf16 %v506, 1009007652
      %v615 = vmul.bf16 %v507, 1009007652
      %v616 = vmul.bf16 %v508, 1009007652
      %v617 = vmul.bf16 %v509, 1009007652
      %v618 = vmul.bf16 %v510, 1009007652
      %v619 = vmul.bf16 %v511, 1009007652
      %v620 = vmul.bf16 %v512, 1009007652
      %v621 = vmul.bf16 %v513, 1009007652
      %v622 = vmul.bf16 %v514, 1009007652
      %v623 = vmul.bf16 %v515, 1009007652
      %v624 = vmul.bf16 %v516, 1009007652
      %v625 = vmul.bf16 %v517, 1009007652
      %v626 = vmul.bf16 %v518, 1009007652
      %v627 = vmul.bf16 %v519, 1009007652
      %v628 = vmul.bf16 %v520, 1009007652
      %v629 = vmul.bf16 %v521, 1009007652
      %v630 = vmul.bf16 %v522, 1009007652
      %v631 = vmul.bf16 %v523, 1009007652
      %v632 = vmul.bf16 %v524, 1009007652
      %v633 = vmul.bf16 %v525, 1009007652
      %v634 = vmul.bf16 %v526, 1009007652
      %v635 = vmul.bf16 %v527, 1009007652
      %v636 = vmul.bf16 %v528, 1009007652
      %v637 = vmul.bf16 %v529, 1009007652
      %v638 = vmul.bf16 %v530, 1009007652
      %v639 = vmul.bf16 %v531, 1009007652
      %v640 = vmul.bf16 %v532, 1009007652
      %v641 = vmul.bf16 %v533, 1009007652
      %v642 = vmul.bf16 %v534, 1009007652
      %v643 = vmul.bf16 %v535, 1009007652
      %v644 = vmul.bf16 %v536, 1009007652
      %v645 = vmul.bf16 %v537, 1009007652
      %v646 = vmul.bf16 %v538, 1009007652
      %v647 = vmul.bf16 %v539, 1009007652
      %v648 = vsel %vm540, %v486, %v594
      %v649 = vsel %vm541, %v487, %v595
      %v650 = vsel %vm542, %v488, %v596
      %v651 = vsel %vm543, %v489, %v597
      %v652 = vsel %vm544, %v490, %v598
      %v653 = vsel %vm545, %v491, %v599
      %v654 = vsel %vm546, %v492, %v600
      %v655 = vsel %vm547, %v493, %v601
      %v656 = vsel %vm548, %v494, %v602
      %v657 = vsel %vm549, %v495, %v603
      %v658 = vsel %vm550, %v496, %v604
      %v659 = vsel %vm551, %v497, %v605
      %v660 = vsel %vm552, %v498, %v606
      %v661 = vsel %vm553, %v499, %v607
      %v662 = vsel %vm554, %v500, %v608
      %v663 = vsel %vm555, %v501, %v609
      %v664 = vsel %vm556, %v502, %v610
      %v665 = vsel %vm557, %v503, %v611
      %v666 = vsel %vm558, %v504, %v612
      %v667 = vsel %vm559, %v505, %v613
      %v668 = vsel %vm560, %v506, %v614
      %v669 = vsel %vm561, %v507, %v615
      %v670 = vsel %vm562, %v508, %v616
      %v671 = vsel %vm563, %v509, %v617
      %v672 = vsel %vm564, %v510, %v618
      %v673 = vsel %vm565, %v511, %v619
      %v674 = vsel %vm566, %v512, %v620
      %v675 = vsel %vm567, %v513, %v621
      %v676 = vsel %vm568, %v514, %v622
      %v677 = vsel %vm569, %v515, %v623
      %v678 = vsel %vm570, %v516, %v624
      %v679 = vsel %vm571, %v517, %v625
      %v680 = vsel %vm572, %v518, %v626
      %v681 = vsel %vm573, %v519, %v627
      %v682 = vsel %vm574, %v520, %v628
      %v683 = vsel %vm575, %v521, %v629
      %v684 = vsel %vm576, %v522, %v630
      %v685 = vsel %vm577, %v523, %v631
      %v686 = vsel %vm578, %v524, %v632
      %v687 = vsel %vm579, %v525, %v633
      %v688 = vsel %vm580, %v526, %v634
      %v689 = vsel %vm581, %v527, %v635
      %v690 = vsel %vm582, %v528, %v636
      %v691 = vsel %vm583, %v529, %v637
      %v692 = vsel %vm584, %v530, %v638
      %v693 = vsel %vm585, %v531, %v639
      %v694 = vsel %vm586, %v532, %v640
      %v695 = vsel %vm587, %v533, %v641
      %v696 = vsel %vm588, %v534, %v642
      %v697 = vsel %vm589, %v535, %v643
      %v698 = vsel %vm590, %v536, %v644
      %v699 = vsel %vm591, %v537, %v645
      %v700 = vsel %vm592, %v538, %v646
      %v701 = vsel %vm593, %v539, %v647
      %v702 = vlaneseq
      %v703 = vshrl.u32 %v702, 7
      %v704 = vadd.s32 %v703, 8
      %v705 = vadd.s32 %v703, 16
      %s706 = smul.u32 %s23, 16
      %v707 = vstv %s706
      %v708 = vadd.s32 %v707, 2
      %v709 = vadd.s32 %v707, 3
      %v710 = vadd.s32 %v707, 4
      %v711 = vadd.s32 %v707, 5
      %v712 = vadd.s32 %v707, 6
      %v713 = vadd.s32 %v707, 7
      %v714 = vadd.s32 %v707, 8
      %v715 = vadd.s32 %v707, 9
      %v716 = vadd.s32 %v707, 10
      %v717 = vadd.s32 %v707, 11
      %v718 = vadd.s32 %v707, 12
      %v719 = vadd.s32 %v707, 13
      %v720 = vadd.s32 %v707, 14
      %v721 = vadd.s32 %v707, 15
      %v722 = vadd.s32 %v707, 16
      %v723 = vadd.s32 %v707, 17
      %v724 = vsub.s32 %v707, 1
      %v725 = vsub.s32 %v708, 1
      %v726 = vsub.s32 %v709, 1
      %v727 = vsub.s32 %v710, 1
      %v728 = vsub.s32 %v711, 1
      %v729 = vsub.s32 %v712, 1
      %v730 = vsub.s32 %v713, 1
      %v731 = vsub.s32 %v714, 1
      %v732 = vsub.s32 %v715, 1
      %v733 = vsub.s32 %v716, 1
      %v734 = vsub.s32 %v717, 1
      %v735 = vsub.s32 %v718, 1
      %v736 = vsub.s32 %v719, 1
      %v737 = vsub.s32 %v720, 1
      %v738 = vsub.s32 %v721, 1
      %v739 = vsub.s32 %v722, 1
      %v740 = vsub.s32 %v723, 1
      %vm741 = vcmp.ge.s32.totalorder %v724, 0
      %vm742 = vcmp.ge.s32.totalorder %v707, 0
      %vm743 = vcmp.ge.s32.totalorder %v725, 0
      %vm744 = vcmp.ge.s32.totalorder %v726, 0
      %vm745 = vcmp.ge.s32.totalorder %v727, 0
      %vm746 = vcmp.ge.s32.totalorder %v728, 0
      %vm747 = vcmp.ge.s32.totalorder %v729, 0
      %vm748 = vcmp.ge.s32.totalorder %v730, 0
      %vm749 = vcmp.ge.s32.totalorder %v731, 0
      %vm750 = vcmp.ge.s32.totalorder %v732, 0
      %vm751 = vcmp.ge.s32.totalorder %v733, 0
      %vm752 = vcmp.ge.s32.totalorder %v734, 0
      %vm753 = vcmp.ge.s32.totalorder %v735, 0
      %vm754 = vcmp.ge.s32.totalorder %v736, 0
      %vm755 = vcmp.ge.s32.totalorder %v737, 0
      %vm756 = vcmp.ge.s32.totalorder %v738, 0
      %vm757 = vcmp.ge.s32.totalorder %v739, 0
      %vm758 = vcmp.ge.s32.totalorder %v740, 0
      %vm759 = vcmp.lt.s32.totalorder %v724, 16
      %vm760 = vcmp.lt.s32.totalorder %v707, 16
      %vm761 = vcmp.lt.s32.totalorder %v725, 16
      %vm762 = vcmp.lt.s32.totalorder %v726, 16
      %vm763 = vcmp.lt.s32.totalorder %v727, 16
      %vm764 = vcmp.lt.s32.totalorder %v728, 16
      %vm765 = vcmp.lt.s32.totalorder %v729, 16
      %vm766 = vcmp.lt.s32.totalorder %v730, 16
      %vm767 = vcmp.lt.s32.totalorder %v731, 16
      %vm768 = vcmp.lt.s32.totalorder %v732, 16
      %vm769 = vcmp.lt.s32.totalorder %v733, 16
      %vm770 = vcmp.lt.s32.totalorder %v734, 16
      %vm771 = vcmp.lt.s32.totalorder %v735, 16
      %vm772 = vcmp.lt.s32.totalorder %v736, 16
      %vm773 = vcmp.lt.s32.totalorder %v737, 16
      %vm774 = vcmp.lt.s32.totalorder %v738, 16
      %vm775 = vcmp.lt.s32.totalorder %v739, 16
      %vm776 = vcmp.lt.s32.totalorder %v740, 16
      %vm777 = vmand %vm741, %vm759
      %vm778 = vmand %vm742, %vm760
      %vm779 = vmand %vm743, %vm761
      %vm780 = vmand %vm744, %vm762
      %vm781 = vmand %vm745, %vm763
      %vm782 = vmand %vm746, %vm764
      %vm783 = vmand %vm747, %vm765
      %vm784 = vmand %vm748, %vm766
      %vm785 = vmand %vm749, %vm767
      %vm786 = vmand %vm750, %vm768
      %vm787 = vmand %vm751, %vm769
      %vm788 = vmand %vm752, %vm770
      %vm789 = vmand %vm753, %vm771
      %vm790 = vmand %vm754, %vm772
      %vm791 = vmand %vm755, %vm773
      %vm792 = vmand %vm756, %vm774
      %vm793 = vmand %vm757, %vm775
      %vm794 = vmand %vm758, %vm776
      %vm795 = vcmp.ge.s32.totalorder %v703, 1
      %vm796 = vcmp.ge.s32.totalorder %v704, 1
      %vm797 = vcmp.ge.s32.totalorder %v705, 1
      %vm798 = vmand %vm777, %vm795
      %vm799 = vmand %vm777, %vm796
      %vm800 = vmand %vm777, %vm797
      %vm801 = vmand %vm778, %vm795
      %vm802 = vmand %vm778, %vm796
      %vm803 = vmand %vm778, %vm797
      %vm804 = vmand %vm779, %vm795
      %vm805 = vmand %vm779, %vm796
      %vm806 = vmand %vm779, %vm797
      %vm807 = vmand %vm780, %vm795
      %vm808 = vmand %vm780, %vm796
      %vm809 = vmand %vm780, %vm797
      %vm810 = vmand %vm781, %vm795
      %vm811 = vmand %vm781, %vm796
      %vm812 = vmand %vm781, %vm797
      %vm813 = vmand %vm782, %vm795
      %vm814 = vmand %vm782, %vm796
      %vm815 = vmand %vm782, %vm797
      %vm816 = vmand %vm783, %vm795
      %vm817 = vmand %vm783, %vm796
      %vm818 = vmand %vm783, %vm797
      %vm819 = vmand %vm784, %vm795
      %vm820 = vmand %vm784, %vm796
      %vm821 = vmand %vm784, %vm797
      %vm822 = vmand %vm785, %vm795
      %vm823 = vmand %vm785, %vm796
      %vm824 = vmand %vm785, %vm797
      %vm825 = vmand %vm786, %vm795
      %vm826 = vmand %vm786, %vm796
      %vm827 = vmand %vm786, %vm797
      %vm828 = vmand %vm787, %vm795
      %vm829 = vmand %vm787, %vm796
      %vm830 = vmand %vm787, %vm797
      %vm831 = vmand %vm788, %vm795
      %vm832 = vmand %vm788, %vm796
      %vm833 = vmand %vm788, %vm797
      %vm834 = vmand %vm789, %vm795
      %vm835 = vmand %vm789, %vm796
      %vm836 = vmand %vm789, %vm797
      %vm837 = vmand %vm790, %vm795
      %vm838 = vmand %vm790, %vm796
      %vm839 = vmand %vm790, %vm797
      %vm840 = vmand %vm791, %vm795
      %vm841 = vmand %vm791, %vm796
      %vm842 = vmand %vm791, %vm797
      %vm843 = vmand %vm792, %vm795
      %vm844 = vmand %vm792, %vm796
      %vm845 = vmand %vm792, %vm797
      %vm846 = vmand %vm793, %vm795
      %vm847 = vmand %vm793, %vm796
      %vm848 = vmand %vm793, %vm797
      %vm849 = vmand %vm794, %vm795
      %vm850 = vmand %vm794, %vm796
      %vm851 = vmand %vm794, %vm797
      %vm852 = vcmp.le.s32.totalorder %v703, 16
      %vm853 = vcmp.le.s32.totalorder %v704, 16
      %vm854 = vcmp.le.s32.totalorder %v705, 16
      %vm855 = vmand %vm798, %vm852
      %vm856 = vmand %vm799, %vm853
      %vm857 = vmand %vm800, %vm854
      %vm858 = vmand %vm801, %vm852
      %vm859 = vmand %vm802, %vm853
      %vm860 = vmand %vm803, %vm854
      %vm861 = vmand %vm804, %vm852
      %vm862 = vmand %vm805, %vm853
      %vm863 = vmand %vm806, %vm854
      %vm864 = vmand %vm807, %vm852
      %vm865 = vmand %vm808, %vm853
      %vm866 = vmand %vm809, %vm854
      %vm867 = vmand %vm810, %vm852
      %vm868 = vmand %vm811, %vm853
      %vm869 = vmand %vm812, %vm854
      %vm870 = vmand %vm813, %vm852
      %vm871 = vmand %vm814, %vm853
      %vm872 = vmand %vm815, %vm854
      %vm873 = vmand %vm816, %vm852
      %vm874 = vmand %vm817, %vm853
      %vm875 = vmand %vm818, %vm854
      %vm876 = vmand %vm819, %vm852
      %vm877 = vmand %vm820, %vm853
      %vm878 = vmand %vm821, %vm854
      %vm879 = vmand %vm822, %vm852
      %vm880 = vmand %vm823, %vm853
      %vm881 = vmand %vm824, %vm854
      %vm882 = vmand %vm825, %vm852
      %vm883 = vmand %vm826, %vm853
      %vm884 = vmand %vm827, %vm854
      %vm885 = vmand %vm828, %vm852
      %vm886 = vmand %vm829, %vm853
      %vm887 = vmand %vm830, %vm854
      %vm888 = vmand %vm831, %vm852
      %vm889 = vmand %vm832, %vm853
      %vm890 = vmand %vm833, %vm854
      %vm891 = vmand %vm834, %vm852
      %vm892 = vmand %vm835, %vm853
      %vm893 = vmand %vm836, %vm854
      %vm894 = vmand %vm837, %vm852
      %vm895 = vmand %vm838, %vm853
      %vm896 = vmand %vm839, %vm854
      %vm897 = vmand %vm840, %vm852
      %vm898 = vmand %vm841, %vm853
      %vm899 = vmand %vm842, %vm854
      %vm900 = vmand %vm843, %vm852
      %vm901 = vmand %vm844, %vm853
      %vm902 = vmand %vm845, %vm854
      %vm903 = vmand %vm846, %vm852
      %vm904 = vmand %vm847, %vm853
      %vm905 = vmand %vm848, %vm854
      %vm906 = vmand %vm849, %vm852
      %vm907 = vmand %vm850, %vm853
      %vm908 = vmand %vm851, %vm854
      %v909 = vsel %vm855, 1, 0
      %v910 = vsel %vm856, 1, 0
      %v911 = vsel %vm857, 1, 0
      %v912 = vsel %vm858, 1, 0
      %v913 = vsel %vm859, 1, 0
      %v914 = vsel %vm860, 1, 0
      %v915 = vsel %vm861, 1, 0
      %v916 = vsel %vm862, 1, 0
      %v917 = vsel %vm863, 1, 0
      %v918 = vsel %vm864, 1, 0
      %v919 = vsel %vm865, 1, 0
      %v920 = vsel %vm866, 1, 0
      %v921 = vsel %vm867, 1, 0
      %v922 = vsel %vm868, 1, 0
      %v923 = vsel %vm869, 1, 0
      %v924 = vsel %vm870, 1, 0
      %v925 = vsel %vm871, 1, 0
      %v926 = vsel %vm872, 1, 0
      %v927 = vsel %vm873, 1, 0
      %v928 = vsel %vm874, 1, 0
      %v929 = vsel %vm875, 1, 0
      %v930 = vsel %vm876, 1, 0
      %v931 = vsel %vm877, 1, 0
      %v932 = vsel %vm878, 1, 0
      %v933 = vsel %vm879, 1, 0
      %v934 = vsel %vm880, 1, 0
      %v935 = vsel %vm881, 1, 0
      %v936 = vsel %vm882, 1, 0
      %v937 = vsel %vm883, 1, 0
      %v938 = vsel %vm884, 1, 0
      %v939 = vsel %vm885, 1, 0
      %v940 = vsel %vm886, 1, 0
      %v941 = vsel %vm887, 1, 0
      %v942 = vsel %vm888, 1, 0
      %v943 = vsel %vm889, 1, 0
      %v944 = vsel %vm890, 1, 0
      %v945 = vsel %vm891, 1, 0
      %v946 = vsel %vm892, 1, 0
      %v947 = vsel %vm893, 1, 0
      %v948 = vsel %vm894, 1, 0
      %v949 = vsel %vm895, 1, 0
      %v950 = vsel %vm896, 1, 0
      %v951 = vsel %vm897, 1, 0
      %v952 = vsel %vm898, 1, 0
      %v953 = vsel %vm899, 1, 0
      %v954 = vsel %vm900, 1, 0
      %v955 = vsel %vm901, 1, 0
      %v956 = vsel %vm902, 1, 0
      %v957 = vsel %vm903, 1, 0
      %v958 = vsel %vm904, 1, 0
      %v959 = vsel %vm905, 1, 0
      %v960 = vsel %vm906, 1, 0
      %v961 = vsel %vm907, 1, 0
      %v962 = vsel %vm908, 1, 0
      %vm963 = vcmp.eq.s32.totalorder %v909, 1
      %vm964 = vcmp.eq.s32.totalorder %v910, 1
      %vm965 = vcmp.eq.s32.totalorder %v911, 1
      %vm966 = vcmp.eq.s32.totalorder %v912, 1
      %vm967 = vcmp.eq.s32.totalorder %v913, 1
      %vm968 = vcmp.eq.s32.totalorder %v914, 1
      %vm969 = vcmp.eq.s32.totalorder %v915, 1
      %vm970 = vcmp.eq.s32.totalorder %v916, 1
      %vm971 = vcmp.eq.s32.totalorder %v917, 1
      %vm972 = vcmp.eq.s32.totalorder %v918, 1
      %vm973 = vcmp.eq.s32.totalorder %v919, 1
      %vm974 = vcmp.eq.s32.totalorder %v920, 1
      %vm975 = vcmp.eq.s32.totalorder %v921, 1
      %vm976 = vcmp.eq.s32.totalorder %v922, 1
      %vm977 = vcmp.eq.s32.totalorder %v923, 1
      %vm978 = vcmp.eq.s32.totalorder %v924, 1
      %vm979 = vcmp.eq.s32.totalorder %v925, 1
      %vm980 = vcmp.eq.s32.totalorder %v926, 1
      %vm981 = vcmp.eq.s32.totalorder %v927, 1
      %vm982 = vcmp.eq.s32.totalorder %v928, 1
      %vm983 = vcmp.eq.s32.totalorder %v929, 1
      %vm984 = vcmp.eq.s32.totalorder %v930, 1
      %vm985 = vcmp.eq.s32.totalorder %v931, 1
      %vm986 = vcmp.eq.s32.totalorder %v932, 1
      %vm987 = vcmp.eq.s32.totalorder %v933, 1
      %vm988 = vcmp.eq.s32.totalorder %v934, 1
      %vm989 = vcmp.eq.s32.totalorder %v935, 1
      %vm990 = vcmp.eq.s32.totalorder %v936, 1
      %vm991 = vcmp.eq.s32.totalorder %v937, 1
      %vm992 = vcmp.eq.s32.totalorder %v938, 1
      %vm993 = vcmp.eq.s32.totalorder %v939, 1
      %vm994 = vcmp.eq.s32.totalorder %v940, 1
      %vm995 = vcmp.eq.s32.totalorder %v941, 1
      %vm996 = vcmp.eq.s32.totalorder %v942, 1
      %vm997 = vcmp.eq.s32.totalorder %v943, 1
      %vm998 = vcmp.eq.s32.totalorder %v944, 1
      %vm999 = vcmp.eq.s32.totalorder %v945, 1
      %vm1000 = vcmp.eq.s32.totalorder %v946, 1
      %vm1001 = vcmp.eq.s32.totalorder %v947, 1
      %vm1002 = vcmp.eq.s32.totalorder %v948, 1
      %vm1003 = vcmp.eq.s32.totalorder %v949, 1
      %vm1004 = vcmp.eq.s32.totalorder %v950, 1
      %vm1005 = vcmp.eq.s32.totalorder %v951, 1
      %vm1006 = vcmp.eq.s32.totalorder %v952, 1
      %vm1007 = vcmp.eq.s32.totalorder %v953, 1
      %vm1008 = vcmp.eq.s32.totalorder %v954, 1
      %vm1009 = vcmp.eq.s32.totalorder %v955, 1
      %vm1010 = vcmp.eq.s32.totalorder %v956, 1
      %vm1011 = vcmp.eq.s32.totalorder %v957, 1
      %vm1012 = vcmp.eq.s32.totalorder %v958, 1
      %vm1013 = vcmp.eq.s32.totalorder %v959, 1
      %vm1014 = vcmp.eq.s32.totalorder %v960, 1
      %vm1015 = vcmp.eq.s32.totalorder %v961, 1
      %vm1016 = vcmp.eq.s32.totalorder %v962, 1
      %vm1017 = vmpackc.low %vm963, %vm963
      %vm1018 = vmpackc.low %vm964, %vm964
      %vm1019 = vmpackc.low %vm965, %vm965
      %vm1020 = vmpackc.low %vm966, %vm966
      %vm1021 = vmpackc.low %vm967, %vm967
      %vm1022 = vmpackc.low %vm968, %vm968
      %vm1023 = vmpackc.low %vm969, %vm969
      %vm1024 = vmpackc.low %vm970, %vm970
      %vm1025 = vmpackc.low %vm971, %vm971
      %vm1026 = vmpackc.low %vm972, %vm972
      %vm1027 = vmpackc.low %vm973, %vm973
      %vm1028 = vmpackc.low %vm974, %vm974
      %vm1029 = vmpackc.low %vm975, %vm975
      %vm1030 = vmpackc.low %vm976, %vm976
      %vm1031 = vmpackc.low %vm977, %vm977
      %vm1032 = vmpackc.low %vm978, %vm978
      %vm1033 = vmpackc.low %vm979, %vm979
      %vm1034 = vmpackc.low %vm980, %vm980
      %vm1035 = vmpackc.low %vm981, %vm981
      %vm1036 = vmpackc.low %vm982, %vm982
      %vm1037 = vmpackc.low %vm983, %vm983
      %vm1038 = vmpackc.low %vm984, %vm984
      %vm1039 = vmpackc.low %vm985, %vm985
      %vm1040 = vmpackc.low %vm986, %vm986
      %vm1041 = vmpackc.low %vm987, %vm987
      %vm1042 = vmpackc.low %vm988, %vm988
      %vm1043 = vmpackc.low %vm989, %vm989
      %vm1044 = vmpackc.low %vm990, %vm990
      %vm1045 = vmpackc.low %vm991, %vm991
      %vm1046 = vmpackc.low %vm992, %vm992
      %vm1047 = vmpackc.low %vm993, %vm993
      %vm1048 = vmpackc.low %vm994, %vm994
      %vm1049 = vmpackc.low %vm995, %vm995
      %vm1050 = vmpackc.low %vm996, %vm996
      %vm1051 = vmpackc.low %vm997, %vm997
      %vm1052 = vmpackc.low %vm998, %vm998
      %vm1053 = vmpackc.low %vm999, %vm999
      %vm1054 = vmpackc.low %vm1000, %vm1000
      %vm1055 = vmpackc.low %vm1001, %vm1001
      %vm1056 = vmpackc.low %vm1002, %vm1002
      %vm1057 = vmpackc.low %vm1003, %vm1003
      %vm1058 = vmpackc.low %vm1004, %vm1004
      %vm1059 = vmpackc.low %vm1005, %vm1005
      %vm1060 = vmpackc.low %vm1006, %vm1006
      %vm1061 = vmpackc.low %vm1007, %vm1007
      %vm1062 = vmpackc.low %vm1008, %vm1008
      %vm1063 = vmpackc.low %vm1009, %vm1009
      %vm1064 = vmpackc.low %vm1010, %vm1010
      %vm1065 = vmpackc.low %vm1011, %vm1011
      %vm1066 = vmpackc.low %vm1012, %vm1012
      %vm1067 = vmpackc.low %vm1013, %vm1013
      %vm1068 = vmpackc.low %vm1014, %vm1014
      %vm1069 = vmpackc.low %vm1015, %vm1015
      %vm1070 = vmpackc.low %vm1016, %vm1016
      %v1071 = vsel %vm1017, %v648, 0
      %v1072 = vsel %vm1018, %v649, 0
      %v1073 = vsel %vm1019, %v650, 0
      %v1074 = vsel %vm1020, %v651, 0
      %v1075 = vsel %vm1021, %v652, 0
      %v1076 = vsel %vm1022, %v653, 0
      %v1077 = vsel %vm1023, %v654, 0
      %v1078 = vsel %vm1024, %v655, 0
      %v1079 = vsel %vm1025, %v656, 0
      %v1080 = vsel %vm1026, %v657, 0
      %v1081 = vsel %vm1027, %v658, 0
      %v1082 = vsel %vm1028, %v659, 0
      %v1083 = vsel %vm1029, %v660, 0
      %v1084 = vsel %vm1030, %v661, 0
      %v1085 = vsel %vm1031, %v662, 0
      %v1086 = vsel %vm1032, %v663, 0
      %v1087 = vsel %vm1033, %v664, 0
      %v1088 = vsel %vm1034, %v665, 0
      %v1089 = vsel %vm1035, %v666, 0
      %v1090 = vsel %vm1036, %v667, 0
      %v1091 = vsel %vm1037, %v668, 0
      %v1092 = vsel %vm1038, %v669, 0
      %v1093 = vsel %vm1039, %v670, 0
      %v1094 = vsel %vm1040, %v671, 0
      %v1095 = vsel %vm1041, %v672, 0
      %v1096 = vsel %vm1042, %v673, 0
      %v1097 = vsel %vm1043, %v674, 0
      %v1098 = vsel %vm1044, %v675, 0
      %v1099 = vsel %vm1045, %v676, 0
      %v1100 = vsel %vm1046, %v677, 0
      %v1101 = vsel %vm1047, %v678, 0
      %v1102 = vsel %vm1048, %v679, 0
      %v1103 = vsel %vm1049, %v680, 0
      %v1104 = vsel %vm1050, %v681, 0
      %v1105 = vsel %vm1051, %v682, 0
      %v1106 = vsel %vm1052, %v683, 0
      %v1107 = vsel %vm1053, %v684, 0
      %v1108 = vsel %vm1054, %v685, 0
      %v1109 = vsel %vm1055, %v686, 0
      %v1110 = vsel %vm1056, %v687, 0
      %v1111 = vsel %vm1057, %v688, 0
      %v1112 = vsel %vm1058, %v689, 0
      %v1113 = vsel %vm1059, %v690, 0
      %v1114 = vsel %vm1060, %v691, 0
      %v1115 = vsel %vm1061, %v692, 0
      %v1116 = vsel %vm1062, %v693, 0
      %v1117 = vsel %vm1063, %v694, 0
      %v1118 = vsel %vm1064, %v695, 0
      %v1119 = vsel %vm1065, %v696, 0
      %v1120 = vsel %vm1066, %v697, 0
      %v1121 = vsel %vm1067, %v698, 0
      %v1122 = vsel %vm1068, %v699, 0
      %v1123 = vsel %vm1069, %v700, 0
      %v1124 = vsel %vm1070, %v701, 0
      %v1161 = vunpack.c.l.b16 %v1071
      %v1162 = vunpack.c.l.b16 %v1072
      %v1163 = vunpack.c.l.b16 %v1074
      %v1164 = vunpack.c.l.b16 %v1075
      %v1165 = vunpack.c.l.b16 %v1077
      %v1166 = vunpack.c.l.b16 %v1078
      %v1167 = vunpack.c.l.b16 %v1080
      %v1168 = vunpack.c.l.b16 %v1081
      %v1169 = vunpack.c.l.b16 %v1083
      %v1170 = vunpack.c.l.b16 %v1084
      %v1171 = vunpack.c.l.b16 %v1086
      %v1172 = vunpack.c.l.b16 %v1087
      %v1173 = vunpack.c.l.b16 %v1089
      %v1174 = vunpack.c.l.b16 %v1090
      %v1175 = vunpack.c.l.b16 %v1092
      %v1176 = vunpack.c.l.b16 %v1093
      %v1177 = vunpack.c.l.b16 %v1095
      %v1178 = vunpack.c.l.b16 %v1096
      %v1179 = vunpack.c.l.b16 %v1098
      %v1180 = vunpack.c.l.b16 %v1099
      %v1181 = vunpack.c.l.b16 %v1101
      %v1182 = vunpack.c.l.b16 %v1102
      %v1183 = vunpack.c.l.b16 %v1104
      %v1184 = vunpack.c.l.b16 %v1105
      %v1185 = vunpack.c.l.b16 %v1107
      %v1186 = vunpack.c.l.b16 %v1108
      %v1187 = vunpack.c.l.b16 %v1110
      %v1188 = vunpack.c.l.b16 %v1111
      %v1189 = vunpack.c.l.b16 %v1113
      %v1190 = vunpack.c.l.b16 %v1114
      %v1191 = vunpack.c.l.b16 %v1116
      %v1192 = vunpack.c.l.b16 %v1117
      %v1193 = vunpack.c.l.b16 %v1119
      %v1194 = vunpack.c.l.b16 %v1120
      %v1195 = vunpack.c.l.b16 %v1122
      %v1196 = vunpack.c.l.b16 %v1123
      %v1197 = vpack.c.b16 %v1162, %v1161
      %v1198 = vpack.c.b16 %v1164, %v1163
      %v1199 = vpack.c.b16 %v1166, %v1165
      %v1200 = vpack.c.b16 %v1168, %v1167
      %v1201 = vpack.c.b16 %v1170, %v1169
      %v1202 = vpack.c.b16 %v1172, %v1171
      %v1203 = vpack.c.b16 %v1174, %v1173
      %v1204 = vpack.c.b16 %v1176, %v1175
      %v1205 = vpack.c.b16 %v1178, %v1177
      %v1206 = vpack.c.b16 %v1180, %v1179
      %v1207 = vpack.c.b16 %v1182, %v1181
      %v1208 = vpack.c.b16 %v1184, %v1183
      %v1209 = vpack.c.b16 %v1186, %v1185
      %v1210 = vpack.c.b16 %v1188, %v1187
      %v1211 = vpack.c.b16 %v1190, %v1189
      %v1212 = vpack.c.b16 %v1192, %v1191
      %v1213 = vpack.c.b16 %v1194, %v1193
      %v1214 = vpack.c.b16 %v1196, %v1195
      %v1233 = vunpack.c.l.b16 %v1073
      %v1234 = vunpack.c.l.b16 %v1076
      %v1235 = vunpack.c.l.b16 %v1079
      %v1236 = vunpack.c.l.b16 %v1082
      %v1237 = vunpack.c.l.b16 %v1085
      %v1238 = vunpack.c.l.b16 %v1088
      %v1239 = vunpack.c.l.b16 %v1091
      %v1240 = vunpack.c.l.b16 %v1094
      %v1241 = vunpack.c.l.b16 %v1097
      %v1242 = vunpack.c.l.b16 %v1100
      %v1243 = vunpack.c.l.b16 %v1103
      %v1244 = vunpack.c.l.b16 %v1106
      %v1245 = vunpack.c.l.b16 %v1109
      %v1246 = vunpack.c.l.b16 %v1112
      %v1247 = vunpack.c.l.b16 %v1115
      %v1248 = vunpack.c.l.b16 %v1118
      %v1249 = vunpack.c.l.b16 %v1121
      %v1250 = vunpack.c.l.b16 %v1124
      %v1251 = vpack.c.b16 %v1233, %v1233
      %v1252 = vpack.c.b16 %v1234, %v1234
      %v1253 = vpack.c.b16 %v1235, %v1235
      %v1254 = vpack.c.b16 %v1236, %v1236
      %v1255 = vpack.c.b16 %v1237, %v1237
      %v1256 = vpack.c.b16 %v1238, %v1238
      %v1257 = vpack.c.b16 %v1239, %v1239
      %v1258 = vpack.c.b16 %v1240, %v1240
      %v1259 = vpack.c.b16 %v1241, %v1241
      %v1260 = vpack.c.b16 %v1242, %v1242
      %v1261 = vpack.c.b16 %v1243, %v1243
      %v1262 = vpack.c.b16 %v1244, %v1244
      %v1263 = vpack.c.b16 %v1245, %v1245
      %v1264 = vpack.c.b16 %v1246, %v1246
      %v1265 = vpack.c.b16 %v1247, %v1247
      %v1266 = vpack.c.b16 %v1248, %v1248
      %v1267 = vpack.c.b16 %v1249, %v1249
      %v1268 = vpack.c.b16 %v1250, %v1250
      %vm1269 = vsmask.f32 7424
      %v1271 = vshrl.u32 %v1197, 16
      %v1273 = vshll.u32 %v1197, 16
      %v1275 = vrot.slane %v1273, 1
      %v1276 = vor.u32 %v1271, %v1275
      %v1278 = vshll.u32 %v1251, 16
      %v1280 = vrot.slane %v1278, 1
      %v1281 = vsel %vm1269, %v1276, %v1280
      %v1283 = vshrl.u32 %v1198, 16
      %v1285 = vshll.u32 %v1198, 16
      %v1287 = vrot.slane %v1285, 1
      %v1288 = vor.u32 %v1283, %v1287
      %v1290 = vshll.u32 %v1252, 16
      %v1292 = vrot.slane %v1290, 1
      %v1293 = vsel %vm1269, %v1288, %v1292
      %v1295 = vshrl.u32 %v1199, 16
      %v1297 = vshll.u32 %v1199, 16
      %v1299 = vrot.slane %v1297, 1
      %v1300 = vor.u32 %v1295, %v1299
      %v1302 = vshll.u32 %v1253, 16
      %v1304 = vrot.slane %v1302, 1
      %v1305 = vsel %vm1269, %v1300, %v1304
      %v1307 = vshrl.u32 %v1200, 16
      %v1309 = vshll.u32 %v1200, 16
      %v1311 = vrot.slane %v1309, 1
      %v1312 = vor.u32 %v1307, %v1311
      %v1314 = vshll.u32 %v1254, 16
      %v1316 = vrot.slane %v1314, 1
      %v1317 = vsel %vm1269, %v1312, %v1316
      %v1319 = vshrl.u32 %v1201, 16
      %v1321 = vshll.u32 %v1201, 16
      %v1323 = vrot.slane %v1321, 1
      %v1324 = vor.u32 %v1319, %v1323
      %v1326 = vshll.u32 %v1255, 16
      %v1328 = vrot.slane %v1326, 1
      %v1329 = vsel %vm1269, %v1324, %v1328
      %v1331 = vshrl.u32 %v1202, 16
      %v1333 = vshll.u32 %v1202, 16
      %v1335 = vrot.slane %v1333, 1
      %v1336 = vor.u32 %v1331, %v1335
      %v1338 = vshll.u32 %v1256, 16
      %v1340 = vrot.slane %v1338, 1
      %v1341 = vsel %vm1269, %v1336, %v1340
      %v1343 = vshrl.u32 %v1203, 16
      %v1345 = vshll.u32 %v1203, 16
      %v1347 = vrot.slane %v1345, 1
      %v1348 = vor.u32 %v1343, %v1347
      %v1350 = vshll.u32 %v1257, 16
      %v1352 = vrot.slane %v1350, 1
      %v1353 = vsel %vm1269, %v1348, %v1352
      %v1355 = vshrl.u32 %v1204, 16
      %v1357 = vshll.u32 %v1204, 16
      %v1359 = vrot.slane %v1357, 1
      %v1360 = vor.u32 %v1355, %v1359
      %v1362 = vshll.u32 %v1258, 16
      %v1364 = vrot.slane %v1362, 1
      %v1365 = vsel %vm1269, %v1360, %v1364
      %v1367 = vshrl.u32 %v1205, 16
      %v1369 = vshll.u32 %v1205, 16
      %v1371 = vrot.slane %v1369, 1
      %v1372 = vor.u32 %v1367, %v1371
      %v1374 = vshll.u32 %v1259, 16
      %v1376 = vrot.slane %v1374, 1
      %v1377 = vsel %vm1269, %v1372, %v1376
      %v1379 = vshrl.u32 %v1206, 16
      %v1381 = vshll.u32 %v1206, 16
      %v1383 = vrot.slane %v1381, 1
      %v1384 = vor.u32 %v1379, %v1383
      %v1386 = vshll.u32 %v1260, 16
      %v1388 = vrot.slane %v1386, 1
      %v1389 = vsel %vm1269, %v1384, %v1388
      %v1391 = vshrl.u32 %v1207, 16
      %v1393 = vshll.u32 %v1207, 16
      %v1395 = vrot.slane %v1393, 1
      %v1396 = vor.u32 %v1391, %v1395
      %v1398 = vshll.u32 %v1261, 16
      %v1400 = vrot.slane %v1398, 1
      %v1401 = vsel %vm1269, %v1396, %v1400
      %v1403 = vshrl.u32 %v1208, 16
      %v1405 = vshll.u32 %v1208, 16
      %v1407 = vrot.slane %v1405, 1
      %v1408 = vor.u32 %v1403, %v1407
      %v1410 = vshll.u32 %v1262, 16
      %v1412 = vrot.slane %v1410, 1
      %v1413 = vsel %vm1269, %v1408, %v1412
      %v1415 = vshrl.u32 %v1209, 16
      %v1417 = vshll.u32 %v1209, 16
      %v1419 = vrot.slane %v1417, 1
      %v1420 = vor.u32 %v1415, %v1419
      %v1422 = vshll.u32 %v1263, 16
      %v1424 = vrot.slane %v1422, 1
      %v1425 = vsel %vm1269, %v1420, %v1424
      %v1427 = vshrl.u32 %v1210, 16
      %v1429 = vshll.u32 %v1210, 16
      %v1431 = vrot.slane %v1429, 1
      %v1432 = vor.u32 %v1427, %v1431
      %v1434 = vshll.u32 %v1264, 16
      %v1436 = vrot.slane %v1434, 1
      %v1437 = vsel %vm1269, %v1432, %v1436
      %v1439 = vshrl.u32 %v1211, 16
      %v1441 = vshll.u32 %v1211, 16
      %v1443 = vrot.slane %v1441, 1
      %v1444 = vor.u32 %v1439, %v1443
      %v1446 = vshll.u32 %v1265, 16
      %v1448 = vrot.slane %v1446, 1
      %v1449 = vsel %vm1269, %v1444, %v1448
      %v1451 = vshrl.u32 %v1212, 16
      %v1453 = vshll.u32 %v1212, 16
      %v1455 = vrot.slane %v1453, 1
      %v1456 = vor.u32 %v1451, %v1455
      %v1458 = vshll.u32 %v1266, 16
      %v1460 = vrot.slane %v1458, 1
      %v1461 = vsel %vm1269, %v1456, %v1460
      %v1463 = vshrl.u32 %v1213, 16
      %v1465 = vshll.u32 %v1213, 16
      %v1467 = vrot.slane %v1465, 1
      %v1468 = vor.u32 %v1463, %v1467
      %v1470 = vshll.u32 %v1267, 16
      %v1472 = vrot.slane %v1470, 1
      %v1473 = vsel %vm1269, %v1468, %v1472
      %v1475 = vshrl.u32 %v1214, 16
      %v1477 = vshll.u32 %v1214, 16
      %v1479 = vrot.slane %v1477, 1
      %v1480 = vor.u32 %v1475, %v1479
      %v1482 = vshll.u32 %v1268, 16
      %v1484 = vrot.slane %v1482, 1
      %v1485 = vsel %vm1269, %v1480, %v1484
      %1486 = vrot.lane.b32.xlu0 %v1281, 8
      %v1487 = vpop.permute.xlu0 %1486
      %1488 = vrot.lane.b32.xlu0 %v1293, 8
      %v1489 = vpop.permute.xlu0 %1488
      %1490 = vrot.lane.b32.xlu0 %v1305, 8
      %v1491 = vpop.permute.xlu0 %1490
      %1492 = vrot.lane.b32.xlu0 %v1317, 8
      %v1493 = vpop.permute.xlu0 %1492
      %1494 = vrot.lane.b32.xlu0 %v1329, 8
      %v1495 = vpop.permute.xlu0 %1494
      %1496 = vrot.lane.b32.xlu0 %v1341, 8
      %v1497 = vpop.permute.xlu0 %1496
      %1498 = vrot.lane.b32.xlu0 %v1353, 8
      %v1499 = vpop.permute.xlu0 %1498
      %1500 = vrot.lane.b32.xlu0 %v1365, 8
      %v1501 = vpop.permute.xlu0 %1500
      %1502 = vrot.lane.b32.xlu0 %v1377, 8
      %v1503 = vpop.permute.xlu0 %1502
      %1504 = vrot.lane.b32.xlu0 %v1389, 8
      %v1505 = vpop.permute.xlu0 %1504
      %1506 = vrot.lane.b32.xlu0 %v1401, 8
      %v1507 = vpop.permute.xlu0 %1506
      %1508 = vrot.lane.b32.xlu0 %v1413, 8
      %v1509 = vpop.permute.xlu0 %1508
      %1510 = vrot.lane.b32.xlu0 %v1425, 8
      %v1511 = vpop.permute.xlu0 %1510
      %1512 = vrot.lane.b32.xlu0 %v1437, 8
      %v1513 = vpop.permute.xlu0 %1512
      %1514 = vrot.lane.b32.xlu0 %v1449, 8
      %v1515 = vpop.permute.xlu0 %1514
      %1516 = vrot.lane.b32.xlu0 %v1461, 8
      %v1517 = vpop.permute.xlu0 %1516
      %1518 = vrot.lane.b32.xlu0 %v1473, 8
      %v1519 = vpop.permute.xlu0 %1518
      %1520 = vrot.lane.b32.xlu0 %v1485, 8
      %v1521 = vpop.permute.xlu0 %1520
      %vm1522 = vcmask 1046528
      %v1523 = vrot.slane %v1197, 1
      %v1524 = vrot.slane %v1251, 1
      %v1525 = vsel %vm1522, %v1523, %v1524
      %v1526 = vrot.slane %v1198, 1
      %v1527 = vrot.slane %v1252, 1
      %v1528 = vsel %vm1522, %v1526, %v1527
      %v1529 = vrot.slane %v1199, 1
      %v1530 = vrot.slane %v1253, 1
      %v1531 = vsel %vm1522, %v1529, %v1530
      %v1532 = vrot.slane %v1200, 1
      %v1533 = vrot.slane %v1254, 1
      %v1534 = vsel %vm1522, %v1532, %v1533
      %v1535 = vrot.slane %v1201, 1
      %v1536 = vrot.slane %v1255, 1
      %v1537 = vsel %vm1522, %v1535, %v1536
      %v1538 = vrot.slane %v1202, 1
      %v1539 = vrot.slane %v1256, 1
      %v1540 = vsel %vm1522, %v1538, %v1539
      %v1541 = vrot.slane %v1203, 1
      %v1542 = vrot.slane %v1257, 1
      %v1543 = vsel %vm1522, %v1541, %v1542
      %v1544 = vrot.slane %v1204, 1
      %v1545 = vrot.slane %v1258, 1
      %v1546 = vsel %vm1522, %v1544, %v1545
      %v1547 = vrot.slane %v1205, 1
      %v1548 = vrot.slane %v1259, 1
      %v1549 = vsel %vm1522, %v1547, %v1548
      %v1550 = vrot.slane %v1206, 1
      %v1551 = vrot.slane %v1260, 1
      %v1552 = vsel %vm1522, %v1550, %v1551
      %v1553 = vrot.slane %v1207, 1
      %v1554 = vrot.slane %v1261, 1
      %v1555 = vsel %vm1522, %v1553, %v1554
      %v1556 = vrot.slane %v1208, 1
      %v1557 = vrot.slane %v1262, 1
      %v1558 = vsel %vm1522, %v1556, %v1557
      %v1559 = vrot.slane %v1209, 1
      %v1560 = vrot.slane %v1263, 1
      %v1561 = vsel %vm1522, %v1559, %v1560
      %v1562 = vrot.slane %v1210, 1
      %v1563 = vrot.slane %v1264, 1
      %v1564 = vsel %vm1522, %v1562, %v1563
      %v1565 = vrot.slane %v1211, 1
      %v1566 = vrot.slane %v1265, 1
      %v1567 = vsel %vm1522, %v1565, %v1566
      %v1568 = vrot.slane %v1212, 1
      %v1569 = vrot.slane %v1266, 1
      %v1570 = vsel %vm1522, %v1568, %v1569
      %v1571 = vrot.slane %v1213, 1
      %v1572 = vrot.slane %v1267, 1
      %v1573 = vsel %vm1522, %v1571, %v1572
      %v1574 = vrot.slane %v1214, 1
      %v1575 = vrot.slane %v1268, 1
      %v1576 = vsel %vm1522, %v1574, %v1575
      %1577 = vrot.lane.b32.xlu0 %v1525, 16
      %v1578 = vpop.permute.xlu0 %1577
      %1579 = vrot.lane.b32.xlu0 %v1528, 16
      %v1580 = vpop.permute.xlu0 %1579
      %1581 = vrot.lane.b32.xlu0 %v1531, 16
      %v1582 = vpop.permute.xlu0 %1581
      %1583 = vrot.lane.b32.xlu0 %v1534, 16
      %v1584 = vpop.permute.xlu0 %1583
      %1585 = vrot.lane.b32.xlu0 %v1537, 16
      %v1586 = vpop.permute.xlu0 %1585
      %1587 = vrot.lane.b32.xlu0 %v1540, 16
      %v1588 = vpop.permute.xlu0 %1587
      %1589 = vrot.lane.b32.xlu0 %v1543, 16
      %v1590 = vpop.permute.xlu0 %1589
      %1591 = vrot.lane.b32.xlu0 %v1546, 16
      %v1592 = vpop.permute.xlu0 %1591
      %1593 = vrot.lane.b32.xlu0 %v1549, 16
      %v1594 = vpop.permute.xlu0 %1593
      %1595 = vrot.lane.b32.xlu0 %v1552, 16
      %v1596 = vpop.permute.xlu0 %1595
      %1597 = vrot.lane.b32.xlu0 %v1555, 16
      %v1598 = vpop.permute.xlu0 %1597
      %1599 = vrot.lane.b32.xlu0 %v1558, 16
      %v1600 = vpop.permute.xlu0 %1599
      %1601 = vrot.lane.b32.xlu0 %v1561, 16
      %v1602 = vpop.permute.xlu0 %1601
      %1603 = vrot.lane.b32.xlu0 %v1564, 16
      %v1604 = vpop.permute.xlu0 %1603
      %1605 = vrot.lane.b32.xlu0 %v1567, 16
      %v1606 = vpop.permute.xlu0 %1605
      %1607 = vrot.lane.b32.xlu0 %v1570, 16
      %v1608 = vpop.permute.xlu0 %1607
      %1609 = vrot.lane.b32.xlu0 %v1573, 16
      %v1610 = vpop.permute.xlu0 %1609
      %1611 = vrot.lane.b32.xlu0 %v1576, 16
      %v1612 = vpop.permute.xlu0 %1611
      %vm1613 = vcmask 64512
      %v1615 = vsel %vm1613, %v1197, %v1487
      %v1617 = vsel %vm1613, %v1198, %v1489
      %v1619 = vsel %vm1613, %v1199, %v1491
      %v1621 = vsel %vm1613, %v1200, %v1493
      %v1623 = vsel %vm1613, %v1201, %v1495
      %v1625 = vsel %vm1613, %v1202, %v1497
      %v1627 = vsel %vm1613, %v1203, %v1499
      %v1629 = vsel %vm1613, %v1204, %v1501
      %v1631 = vsel %vm1613, %v1205, %v1503
      %v1633 = vsel %vm1613, %v1206, %v1505
      %v1635 = vsel %vm1613, %v1207, %v1507
      %v1637 = vsel %vm1613, %v1208, %v1509
      %v1639 = vsel %vm1613, %v1209, %v1511
      %v1641 = vsel %vm1613, %v1210, %v1513
      %v1643 = vsel %vm1613, %v1211, %v1515
      %v1645 = vsel %vm1613, %v1212, %v1517
      %v1647 = vsel %vm1613, %v1213, %v1519
      %v1649 = vsel %vm1613, %v1214, %v1521
      %vm1650 = vcmask 130048
      %v1652 = vsel %vm1650, %v1615, %v1578
      %v1654 = vsel %vm1650, %v1617, %v1580
      %v1656 = vsel %vm1650, %v1619, %v1582
      %v1658 = vsel %vm1650, %v1621, %v1584
      %v1660 = vsel %vm1650, %v1623, %v1586
      %v1662 = vsel %vm1650, %v1625, %v1588
      %v1664 = vsel %vm1650, %v1627, %v1590
      %v1666 = vsel %vm1650, %v1629, %v1592
      %v1668 = vsel %vm1650, %v1631, %v1594
      %v1670 = vsel %vm1650, %v1633, %v1596
      %v1672 = vsel %vm1650, %v1635, %v1598
      %v1674 = vsel %vm1650, %v1637, %v1600
      %v1676 = vsel %vm1650, %v1639, %v1602
      %v1678 = vsel %vm1650, %v1641, %v1604
      %v1680 = vsel %vm1650, %v1643, %v1606
      %v1682 = vsel %vm1650, %v1645, %v1608
      %v1684 = vsel %vm1650, %v1647, %v1610
      %v1686 = vsel %vm1650, %v1649, %v1612
      %v1687 = vld [vmem:[%s2] sm:$0xf]
      %v1688 = vld [vmem:[%s2 + $0x4] sm:$0xf]
      %v1689 = vld [vmem:[%s2 + $0x8] sm:$0xf]
      %s1690 = scalar_lea.vmem %s2, 12
      %v1691 = vld [vmem:[%s1690] sm:$0xf]
      %v1692 = vld [vmem:[%s1690 + $0x4] sm:$0xf]
      %v1693 = vld [vmem:[%s1690 + $0x8] sm:$0xf]
      %v1697 = vunpack.c.l.b16 %v1691
      %v1698 = vunpack.c.l.b16 %v1692
      %v1699 = vunpack.c.l.b16 %v1693
      %v1700 = vpack.c.b16 %v1698, %v1697
      %v1701 = vpack.c.b16 %v1699, %v1699
      %vm1703 = vcmask 195584
      %v1704 = vsel %vm1703, %v1654, 0
      %v1706 = vsel %vm1703, %v1656, 0
      %v1708 = vsel %vm1703, %v1658, 0
      %v1710 = vsel %vm1703, %v1660, 0
      %v1712 = vsel %vm1703, %v1662, 0
      %v1714 = vsel %vm1703, %v1664, 0
      %v1716 = vsel %vm1703, %v1666, 0
      %v1718 = vsel %vm1703, %v1668, 0
      %v1720 = vsel %vm1703, %v1670, 0
      %v1722 = vsel %vm1703, %v1672, 0
      %v1724 = vsel %vm1703, %v1674, 0
      %v1726 = vsel %vm1703, %v1676, 0
      %v1728 = vsel %vm1703, %v1678, 0
      %v1730 = vsel %vm1703, %v1680, 0
      %v1732 = vsel %vm1703, %v1682, 0
      %v1734 = vsel %vm1703, %v1684, 0
      %vm1736 = vcmask 1043456
      %v1738 = vsel %vm1736, %v1701, 0
      %1740 = vmatprep.subr.bf16.mxu0 0
      %1741 = vmatpush1.bf16.msra.mxu0 %v1700
      %1742 = vmatprep.subr.bf16.mxu0 0
      %1743 = vmatpush1.bf16.msra.mxu0 %v1738
      %1744 = vmatprep.subr.bf16.mxu0 0
      %1745 = vmatpush1.bf16.msra.mxu0 0
      %1746 = vmatprep.subr.bf16.mxu0 0
      %1747 = vmatpush1.bf16.msra.mxu0 0
      %1748 = vmatprep.subr.bf16.mxu0 0
      %1749 = vmatpush1.bf16.msra.mxu0 0
      %1750 = vmatprep.subr.bf16.mxu0 0
      %1751 = vmatpush1.bf16.msra.mxu0 0
      %1752 = vmatprep.subr.bf16.mxu0 0
      %1753 = vmatpush1.bf16.msra.mxu0 0
      %1754 = vmatprep.subr.bf16.mxu0 0
      %1755 = vmatpush1.bf16.msra.mxu0 0
      %1756 = vmatprep.subr.bf16.mxu0 0
      %1757 = vmatpush1.bf16.msra.mxu0 0
      %1758 = vmatprep.subr.bf16.mxu0 0
      %1759 = vmatpush1.bf16.msra.mxu0 0
      %1760 = vmatprep.subr.bf16.mxu0 0
      %1761 = vmatpush1.bf16.msra.mxu0 0
      %1762 = vmatprep.subr.bf16.mxu0 0
      %1763 = vmatpush1.bf16.msra.mxu0 0
      %1764 = vmatprep.subr.bf16.mxu0 0
      %1765 = vmatpush1.bf16.msra.mxu0 0
      %1766 = vmatprep.subr.bf16.mxu0 0
      %1767 = vmatpush1.bf16.msra.mxu0 0
      %1768 = vmatprep.subr.bf16.mxu0 0
      %1769 = vmatpush1.bf16.msra.mxu0 0
      %1770 = vmatprep.subr.bf16.mxu0 0
      %1771 = vmatpush1.bf16.msra.mxu0 0
      %1772 = vmatprep.mubr.bf16.mxu0 0
      %1773 = vmatmul.mubr.bf16.gmra.mrb[0].mxu0 %v1704
      %v1774 = vpop.f32.mrb[0].mxu0
      %v1775 = vadd.f32 0.0, %v1774
      %v1776 = vpop.f32.mrb[0].mxu0
      %v1777 = vpop.f32.mrb[0].mxu0
      %v1778 = vadd.f32 0.0, %v1777
      %v1779 = vpop.f32.mrb[0].mxu0
      %1780 = vmatprep.mubr.bf16.mxu0 0
      %1781 = vmatmul.mubr.bf16.gmra.mrb[0].mxu0 %v1706
      %v1782 = vpop.f32.mrb[0].mxu0
      %v1783 = vadd.f32 0.0, %v1782
      %v1784 = vpop.f32.mrb[0].mxu0
      %v1785 = vpop.f32.mrb[0].mxu0
      %v1786 = vadd.f32 0.0, %v1785
      %v1787 = vpop.f32.mrb[0].mxu0
      %1788 = vmatprep.mubr.bf16.mxu0 0
      %1789 = vmatmul.mubr.bf16.gmra.mrb[0].mxu0 %v1708
      %v1790 = vpop.f32.mrb[0].mxu0
      %v1791 = vadd.f32 0.0, %v1790
      %v1792 = vpop.f32.mrb[0].mxu0
      %v1793 = vpop.f32.mrb[0].mxu0
      %v1794 = vadd.f32 0.0, %v1793
      %v1795 = vpop.f32.mrb[0].mxu0
      %1796 = vmatprep.mubr.bf16.mxu0 0
      %1797 = vmatmul.mubr.bf16.gmra.mrb[0].mxu0 %v1710
      %v1798 = vpop.f32.mrb[0].mxu0
      %v1799 = vadd.f32 0.0, %v1798
      %v1800 = vpop.f32.mrb[0].mxu0
      %v1801 = vpop.f32.mrb[0].mxu0
      %v1802 = vadd.f32 0.0, %v1801
      %v1803 = vpop.f32.mrb[0].mxu0
      %1804 = vmatprep.mubr.bf16.mxu0 0
      %1805 = vmatmul.mubr.bf16.gmra.mrb[0].mxu0 %v1712
      %v1806 = vpop.f32.mrb[0].mxu0
      %v1807 = vadd.f32 0.0, %v1806
      %v1808 = vpop.f32.mrb[0].mxu0
      %v1809 = vpop.f32.mrb[0].mxu0
      %v1810 = vadd.f32 0.0, %v1809
      %v1811 = vpop.f32.mrb[0].mxu0
      %1812 = vmatprep.mubr.bf16.mxu0 0
      %1813 = vmatmul.mubr.bf16.gmra.mrb[0].mxu0 %v1714
      %v1814 = vpop.f32.mrb[0].mxu0
      %v1815 = vadd.f32 0.0, %v1814
      %v1816 = vpop.f32.mrb[0].mxu0
      %v1817 = vpop.f32.mrb[0].mxu0
      %v1818 = vadd.f32 0.0, %v1817
      %v1819 = vpop.f32.mrb[0].mxu0
      %1820 = vmatprep.mubr.bf16.mxu0 0
      %1821 = vmatmul.mubr.bf16.gmra.mrb[0].mxu0 %v1716
      %v1822 = vpop.f32.mrb[0].mxu0
      %v1823 = vadd.f32 0.0, %v1822
      %v1824 = vpop.f32.mrb[0].mxu0
      %v1825 = vpop.f32.mrb[0].mxu0
      %v1826 = vadd.f32 0.0, %v1825
      %v1827 = vpop.f32.mrb[0].mxu0
      %1828 = vmatprep.mubr.bf16.mxu0 0
      %1829 = vmatmul.mubr.bf16.gmra.mrb[0].mxu0 %v1718
      %v1830 = vpop.f32.mrb[0].mxu0
      %v1831 = vadd.f32 0.0, %v1830
      %v1832 = vpop.f32.mrb[0].mxu0
      %v1833 = vpop.f32.mrb[0].mxu0
      %v1834 = vadd.f32 0.0, %v1833
      %v1835 = vpop.f32.mrb[0].mxu0
      %1836 = vmatprep.mubr.bf16.mxu0 0
      %1837 = vmatmul.mubr.bf16.gmra.mrb[0].mxu0 %v1720
      %v1838 = vpop.f32.mrb[0].mxu0
      %v1839 = vadd.f32 0.0, %v1838
      %v1840 = vpop.f32.mrb[0].mxu0
      %v1841 = vpop.f32.mrb[0].mxu0
      %v1842 = vadd.f32 0.0, %v1841
      %v1843 = vpop.f32.mrb[0].mxu0
      %1844 = vmatprep.mubr.bf16.mxu0 0
      %1845 = vmatmul.mubr.bf16.gmra.mrb[0].mxu0 %v1722
      %v1846 = vpop.f32.mrb[0].mxu0
      %v1847 = vadd.f32 0.0, %v1846
      %v1848 = vpop.f32.mrb[0].mxu0
      %v1849 = vpop.f32.mrb[0].mxu0
      %v1850 = vadd.f32 0.0, %v1849
      %v1851 = vpop.f32.mrb[0].mxu0
      %1852 = vmatprep.mubr.bf16.mxu0 0
      %1853 = vmatmul.mubr.bf16.gmra.mrb[0].mxu0 %v1724
      %v1854 = vpop.f32.mrb[0].mxu0
      %v1855 = vadd.f32 0.0, %v1854
      %v1856 = vpop.f32.mrb[0].mxu0
      %v1857 = vpop.f32.mrb[0].mxu0
      %v1858 = vadd.f32 0.0, %v1857
      %v1859 = vpop.f32.mrb[0].mxu0
      %1860 = vmatprep.mubr.bf16.mxu0 0
      %1861 = vmatmul.mubr.bf16.gmra.mrb[0].mxu0 %v1726
      %v1862 = vpop.f32.mrb[0].mxu0
      %v1863 = vadd.f32 0.0, %v1862
      %v1864 = vpop.f32.mrb[0].mxu0
      %v1865 = vpop.f32.mrb[0].mxu0
      %v1866 = vadd.f32 0.0, %v1865
      %v1867 = vpop.f32.mrb[0].mxu0
      %1868 = vmatprep.mubr.bf16.mxu0 0
      %1869 = vmatmul.mubr.bf16.gmra.mrb[0].mxu0 %v1728
      %v1870 = vpop.f32.mrb[0].mxu0
      %v1871 = vadd.f32 0.0, %v1870
      %v1872 = vpop.f32.mrb[0].mxu0
      %v1873 = vpop.f32.mrb[0].mxu0
      %v1874 = vadd.f32 0.0, %v1873
      %v1875 = vpop.f32.mrb[0].mxu0
      %1876 = vmatprep.mubr.bf16.mxu0 0
      %1877 = vmatmul.mubr.bf16.gmra.mrb[0].mxu0 %v1730
      %v1878 = vpop.f32.mrb[0].mxu0
      %v1879 = vadd.f32 0.0, %v1878
      %v1880 = vpop.f32.mrb[0].mxu0
      %v1881 = vpop.f32.mrb[0].mxu0
      %v1882 = vadd.f32 0.0, %v1881
      %v1883 = vpop.f32.mrb[0].mxu0
      %1884 = vmatprep.mubr.bf16.mxu0 0
      %1885 = vmatmul.mubr.bf16.gmra.mrb[0].mxu0 %v1732
      %v1886 = vpop.f32.mrb[0].mxu0
      %v1887 = vadd.f32 0.0, %v1886
      %v1888 = vpop.f32.mrb[0].mxu0
      %v1889 = vpop.f32.mrb[0].mxu0
      %v1890 = vadd.f32 0.0, %v1889
      %v1891 = vpop.f32.mrb[0].mxu0
      %1892 = vmatprep.mubr.bf16.mxu0 0
      %1893 = vmatmul.mubr.bf16.gmra.mrb[0].mxu0 %v1734
      %v1894 = vpop.f32.mrb[0].mxu0
      %v1895 = vadd.f32 0.0, %v1894
      %v1896 = vpop.f32.mrb[0].mxu0
      %v1897 = vpop.f32.mrb[0].mxu0
      %v1898 = vadd.f32 0.0, %v1897
      %v1899 = vpop.f32.mrb[0].mxu0
      %1900 = vdwg.mxu0
      %v1904 = vunpack.c.l.b16 %v1687
      %v1905 = vunpack.c.l.b16 %v1688
      %v1906 = vunpack.c.l.b16 %v1689
      %v1907 = vpack.c.b16 %v1905, %v1904
      %v1908 = vpack.c.b16 %v1906, %v1906
      %v1910 = vsel %vm1703, %v1652, 0
      %v1913 = vsel %vm1736, %v1908, 0
      %1915 = vmatprep.subr.bf16.mxu0 0
      %1916 = vmatpush1.bf16.msra.mxu0 %v1907
      %1917 = vmatprep.subr.bf16.mxu0 0
      %1918 = vmatpush1.bf16.msra.mxu0 %v1913
      %1919 = vmatprep.subr.bf16.mxu0 0
      %1920 = vmatpush1.bf16.msra.mxu0 0
      %1921 = vmatprep.subr.bf16.mxu0 0
      %1922 = vmatpush1.bf16.msra.mxu0 0
      %1923 = vmatprep.subr.bf16.mxu0 0
      %1924 = vmatpush1.bf16.msra.mxu0 0
      %1925 = vmatprep.subr.bf16.mxu0 0
      %1926 = vmatpush1.bf16.msra.mxu0 0
      %1927 = vmatprep.subr.bf16.mxu0 0
      %1928 = vmatpush1.bf16.msra.mxu0 0
      %1929 = vmatprep.subr.bf16.mxu0 0
      %1930 = vmatpush1.bf16.msra.mxu0 0
      %1931 = vmatprep.subr.bf16.mxu0 0
      %1932 = vmatpush1.bf16.msra.mxu0 0
      %1933 = vmatprep.subr.bf16.mxu0 0
      %1934 = vmatpush1.bf16.msra.mxu0 0
      %1935 = vmatprep.subr.bf16.mxu0 0
      %1936 = vmatpush1.bf16.msra.mxu0 0
      %1937 = vmatprep.subr.bf16.mxu0 0
      %1938 = vmatpush1.bf16.msra.mxu0 0
      %1939 = vmatprep.subr.bf16.mxu0 0
      %1940 = vmatpush1.bf16.msra.mxu0 0
      %1941 = vmatprep.subr.bf16.mxu0 0
      %1942 = vmatpush1.bf16.msra.mxu0 0
      %1943 = vmatprep.subr.bf16.mxu0 0
      %1944 = vmatpush1.bf16.msra.mxu0 0
      %1945 = vmatprep.subr.bf16.mxu0 0
      %1946 = vmatpush1.bf16.msra.mxu0 0
      %1947 = vmatprep.mubr.bf16.mxu0 0
      %1948 = vmatmul.mubr.bf16.gmra.mrb[0].mxu0 %v1910
      %v1949 = vpop.f32.mrb[0].mxu0
      %v1950 = vadd.f32 %v1775, %v1949
      %v1951 = vpop.f32.mrb[0].mxu0
      %v1952 = vpop.f32.mrb[0].mxu0
      %v1953 = vadd.f32 %v1778, %v1952
      %v1954 = vpop.f32.mrb[0].mxu0
      %1955 = vmatprep.mubr.bf16.mxu0 0
      %1956 = vmatmul.mubr.bf16.gmra.mrb[0].mxu0 %v1704
      %v1957 = vpop.f32.mrb[0].mxu0
      %v1958 = vadd.f32 %v1783, %v1957
      %v1959 = vpop.f32.mrb[0].mxu0
      %v1960 = vpop.f32.mrb[0].mxu0
      %v1961 = vadd.f32 %v1786, %v1960
      %v1962 = vpop.f32.mrb[0].mxu0
      %1963 = vmatprep.mubr.bf16.mxu0 0
      %1964 = vmatmul.mubr.bf16.gmra.mrb[0].mxu0 %v1706
      %v1965 = vpop.f32.mrb[0].mxu0
      %v1966 = vadd.f32 %v1791, %v1965
      %v1967 = vpop.f32.mrb[0].mxu0
      %v1968 = vpop.f32.mrb[0].mxu0
      %v1969 = vadd.f32 %v1794, %v1968
      %v1970 = vpop.f32.mrb[0].mxu0
      %1971 = vmatprep.mubr.bf16.mxu0 0
      %1972 = vmatmul.mubr.bf16.gmra.mrb[0].mxu0 %v1708
      %v1973 = vpop.f32.mrb[0].mxu0
      %v1974 = vadd.f32 %v1799, %v1973
      %v1975 = vpop.f32.mrb[0].mxu0
      %v1976 = vpop.f32.mrb[0].mxu0
      %v1977 = vadd.f32 %v1802, %v1976
      %v1978 = vpop.f32.mrb[0].mxu0
      %1979 = vmatprep.mubr.bf16.mxu0 0
      %1980 = vmatmul.mubr.bf16.gmra.mrb[0].mxu0 %v1710
      %v1981 = vpop.f32.mrb[0].mxu0
      %v1982 = vadd.f32 %v1807, %v1981
      %v1983 = vpop.f32.mrb[0].mxu0
      %v1984 = vpop.f32.mrb[0].mxu0
      %v1985 = vadd.f32 %v1810, %v1984
      %v1986 = vpop.f32.mrb[0].mxu0
      %1987 = vmatprep.mubr.bf16.mxu0 0
      %1988 = vmatmul.mubr.bf16.gmra.mrb[0].mxu0 %v1712
      %v1989 = vpop.f32.mrb[0].mxu0
      %v1990 = vadd.f32 %v1815, %v1989
      %v1991 = vpop.f32.mrb[0].mxu0
      %v1992 = vpop.f32.mrb[0].mxu0
      %v1993 = vadd.f32 %v1818, %v1992
      %v1994 = vpop.f32.mrb[0].mxu0
      %1995 = vmatprep.mubr.bf16.mxu0 0
      %1996 = vmatmul.mubr.bf16.gmra.mrb[0].mxu0 %v1714
      %v1997 = vpop.f32.mrb[0].mxu0
      %v1998 = vadd.f32 %v1823, %v1997
      %v1999 = vpop.f32.mrb[0].mxu0
      %v2000 = vpop.f32.mrb[0].mxu0
      %v2001 = vadd.f32 %v1826, %v2000
      %v2002 = vpop.f32.mrb[0].mxu0
      %2003 = vmatprep.mubr.bf16.mxu0 0
      %2004 = vmatmul.mubr.bf16.gmra.mrb[0].mxu0 %v1716
      %v2005 = vpop.f32.mrb[0].mxu0
      %v2006 = vadd.f32 %v1831, %v2005
      %v2007 = vpop.f32.mrb[0].mxu0
      %v2008 = vpop.f32.mrb[0].mxu0
      %v2009 = vadd.f32 %v1834, %v2008
      %v2010 = vpop.f32.mrb[0].mxu0
      %2011 = vmatprep.mubr.bf16.mxu0 0
      %2012 = vmatmul.mubr.bf16.gmra.mrb[0].mxu0 %v1718
      %v2013 = vpop.f32.mrb[0].mxu0
      %v2014 = vadd.f32 %v1839, %v2013
      %v2015 = vpop.f32.mrb[0].mxu0
      %v2016 = vpop.f32.mrb[0].mxu0
      %v2017 = vadd.f32 %v1842, %v2016
      %v2018 = vpop.f32.mrb[0].mxu0
      %2019 = vmatprep.mubr.bf16.mxu0 0
      %2020 = vmatmul.mubr.bf16.gmra.mrb[0].mxu0 %v1720
      %v2021 = vpop.f32.mrb[0].mxu0
      %v2022 = vadd.f32 %v1847, %v2021
      %v2023 = vpop.f32.mrb[0].mxu0
      %v2024 = vpop.f32.mrb[0].mxu0
      %v2025 = vadd.f32 %v1850, %v2024
      %v2026 = vpop.f32.mrb[0].mxu0
      %2027 = vmatprep.mubr.bf16.mxu0 0
      %2028 = vmatmul.mubr.bf16.gmra.mrb[0].mxu0 %v1722
      %v2029 = vpop.f32.mrb[0].mxu0
      %v2030 = vadd.f32 %v1855, %v2029
      %v2031 = vpop.f32.mrb[0].mxu0
      %v2032 = vpop.f32.mrb[0].mxu0
      %v2033 = vadd.f32 %v1858, %v2032
      %v2034 = vpop.f32.mrb[0].mxu0
      %2035 = vmatprep.mubr.bf16.mxu0 0
      %2036 = vmatmul.mubr.bf16.gmra.mrb[0].mxu0 %v1724
      %v2037 = vpop.f32.mrb[0].mxu0
      %v2038 = vadd.f32 %v1863, %v2037
      %v2039 = vpop.f32.mrb[0].mxu0
      %v2040 = vpop.f32.mrb[0].mxu0
      %v2041 = vadd.f32 %v1866, %v2040
      %v2042 = vpop.f32.mrb[0].mxu0
      %2043 = vmatprep.mubr.bf16.mxu0 0
      %2044 = vmatmul.mubr.bf16.gmra.mrb[0].mxu0 %v1726
      %v2045 = vpop.f32.mrb[0].mxu0
      %v2046 = vadd.f32 %v1871, %v2045
      %v2047 = vpop.f32.mrb[0].mxu0
      %v2048 = vpop.f32.mrb[0].mxu0
      %v2049 = vadd.f32 %v1874, %v2048
      %v2050 = vpop.f32.mrb[0].mxu0
      %2051 = vmatprep.mubr.bf16.mxu0 0
      %2052 = vmatmul.mubr.bf16.gmra.mrb[0].mxu0 %v1728
      %v2053 = vpop.f32.mrb[0].mxu0
      %v2054 = vadd.f32 %v1879, %v2053
      %v2055 = vpop.f32.mrb[0].mxu0
      %v2056 = vpop.f32.mrb[0].mxu0
      %v2057 = vadd.f32 %v1882, %v2056
      %v2058 = vpop.f32.mrb[0].mxu0
      %2059 = vmatprep.mubr.bf16.mxu0 0
      %2060 = vmatmul.mubr.bf16.gmra.mrb[0].mxu0 %v1730
      %v2061 = vpop.f32.mrb[0].mxu0
      %v2062 = vadd.f32 %v1887, %v2061
      %v2063 = vpop.f32.mrb[0].mxu0
      %v2064 = vpop.f32.mrb[0].mxu0
      %v2065 = vadd.f32 %v1890, %v2064
      %v2066 = vpop.f32.mrb[0].mxu0
      %2067 = vmatprep.mubr.bf16.mxu0 0
      %2068 = vmatmul.mubr.bf16.gmra.mrb[0].mxu0 %v1732
      %v2069 = vpop.f32.mrb[0].mxu0
      %v2070 = vadd.f32 %v1895, %v2069
      %v2071 = vpop.f32.mrb[0].mxu0
      %v2072 = vpop.f32.mrb[0].mxu0
      %v2073 = vadd.f32 %v1898, %v2072
      %v2074 = vpop.f32.mrb[0].mxu0
      %2075 = vdwg.mxu0
      %s2076 = scalar_lea.vmem %s2, 24
      %v2077 = vld [vmem:[%s2076] sm:$0xf]
      %v2078 = vld [vmem:[%s2076 + $0x4] sm:$0xf]
      %v2079 = vld [vmem:[%s2076 + $0x8] sm:$0xf]
      %v2083 = vunpack.c.l.b16 %v2077
      %v2084 = vunpack.c.l.b16 %v2078
      %v2085 = vunpack.c.l.b16 %v2079
      %v2086 = vpack.c.b16 %v2084, %v2083
      %v2087 = vpack.c.b16 %v2085, %v2085
      %v2089 = vsel %vm1703, %v1686, 0
      %v2092 = vsel %vm1736, %v2087, 0
      %2094 = vmatprep.subr.bf16.mxu0 0
      %2095 = vmatpush1.bf16.msra.mxu0 %v2086
      %2096 = vmatprep.subr.bf16.mxu0 0
      %2097 = vmatpush1.bf16.msra.mxu0 %v2092
      %2098 = vmatprep.subr.bf16.mxu0 0
      %2099 = vmatpush1.bf16.msra.mxu0 0
      %2100 = vmatprep.subr.bf16.mxu0 0
      %2101 = vmatpush1.bf16.msra.mxu0 0
      %2102 = vmatprep.subr.bf16.mxu0 0
      %2103 = vmatpush1.bf16.msra.mxu0 0
      %2104 = vmatprep.subr.bf16.mxu0 0
      %2105 = vmatpush1.bf16.msra.mxu0 0
      %2106 = vmatprep.subr.bf16.mxu0 0
      %2107 = vmatpush1.bf16.msra.mxu0 0
      %2108 = vmatprep.subr.bf16.mxu0 0
      %2109 = vmatpush1.bf16.msra.mxu0 0
      %2110 = vmatprep.subr.bf16.mxu0 0
      %2111 = vmatpush1.bf16.msra.mxu0 0
      %2112 = vmatprep.subr.bf16.mxu0 0
      %2113 = vmatpush1.bf16.msra.mxu0 0
      %2114 = vmatprep.subr.bf16.mxu0 0
      %2115 = vmatpush1.bf16.msra.mxu0 0
      %2116 = vmatprep.subr.bf16.mxu0 0
      %2117 = vmatpush1.bf16.msra.mxu0 0
      %2118 = vmatprep.subr.bf16.mxu0 0
      %2119 = vmatpush1.bf16.msra.mxu0 0
      %2120 = vmatprep.subr.bf16.mxu0 0
      %2121 = vmatpush1.bf16.msra.mxu0 0
      %2122 = vmatprep.subr.bf16.mxu0 0
      %2123 = vmatpush1.bf16.msra.mxu0 0
      %2124 = vmatprep.subr.bf16.mxu0 0
      %2125 = vmatpush1.bf16.msra.mxu0 0
      %2126 = vmatprep.mubr.bf16.mxu0 0
      %2127 = vmatmul.mubr.bf16.gmra.mrb[0].mxu0 %v1706
      %v2128 = vpop.f32.mrb[0].mxu0
      %v2129 = vadd.f32 0.0, %v2128
      %v2130 = vpop.f32.mrb[0].mxu0
      %v2131 = vpop.f32.mrb[0].mxu0
      %v2132 = vadd.f32 0.0, %v2131
      %v2133 = vpop.f32.mrb[0].mxu0
      %2134 = vmatprep.mubr.bf16.mxu0 0
      %2135 = vmatmul.mubr.bf16.gmra.mrb[0].mxu0 %v1708
      %v2136 = vpop.f32.mrb[0].mxu0
      %v2137 = vadd.f32 0.0, %v2136
      %v2138 = vpop.f32.mrb[0].mxu0
      %v2139 = vpop.f32.mrb[0].mxu0
      %v2140 = vadd.f32 0.0, %v2139
      %v2141 = vpop.f32.mrb[0].mxu0
      %2142 = vmatprep.mubr.bf16.mxu0 0
      %2143 = vmatmul.mubr.bf16.gmra.mrb[0].mxu0 %v1710
      %v2144 = vpop.f32.mrb[0].mxu0
      %v2145 = vadd.f32 0.0, %v2144
      %v2146 = vpop.f32.mrb[0].mxu0
      %v2147 = vpop.f32.mrb[0].mxu0
      %v2148 = vadd.f32 0.0, %v2147
      %v2149 = vpop.f32.mrb[0].mxu0
      %2150 = vmatprep.mubr.bf16.mxu0 0
      %2151 = vmatmul.mubr.bf16.gmra.mrb[0].mxu0 %v1712
      %v2152 = vpop.f32.mrb[0].mxu0
      %v2153 = vadd.f32 0.0, %v2152
      %v2154 = vpop.f32.mrb[0].mxu0
      %v2155 = vpop.f32.mrb[0].mxu0
      %v2156 = vadd.f32 0.0, %v2155
      %v2157 = vpop.f32.mrb[0].mxu0
      %2158 = vmatprep.mubr.bf16.mxu0 0
      %2159 = vmatmul.mubr.bf16.gmra.mrb[0].mxu0 %v1714
      %v2160 = vpop.f32.mrb[0].mxu0
      %v2161 = vadd.f32 0.0, %v2160
      %v2162 = vpop.f32.mrb[0].mxu0
      %v2163 = vpop.f32.mrb[0].mxu0
      %v2164 = vadd.f32 0.0, %v2163
      %v2165 = vpop.f32.mrb[0].mxu0
      %2166 = vmatprep.mubr.bf16.mxu0 0
      %2167 = vmatmul.mubr.bf16.gmra.mrb[0].mxu0 %v1716
      %v2168 = vpop.f32.mrb[0].mxu0
      %v2169 = vadd.f32 0.0, %v2168
      %v2170 = vpop.f32.mrb[0].mxu0
      %v2171 = vpop.f32.mrb[0].mxu0
      %v2172 = vadd.f32 0.0, %v2171
      %v2173 = vpop.f32.mrb[0].mxu0
      %2174 = vmatprep.mubr.bf16.mxu0 0
      %2175 = vmatmul.mubr.bf16.gmra.mrb[0].mxu0 %v1718
      %v2176 = vpop.f32.mrb[0].mxu0
      %v2177 = vadd.f32 0.0, %v2176
      %v2178 = vpop.f32.mrb[0].mxu0
      %v2179 = vpop.f32.mrb[0].mxu0
      %v2180 = vadd.f32 0.0, %v2179
      %v2181 = vpop.f32.mrb[0].mxu0
      %2182 = vmatprep.mubr.bf16.mxu0 0
      %2183 = vmatmul.mubr.bf16.gmra.mrb[0].mxu0 %v1720
      %v2184 = vpop.f32.mrb[0].mxu0
      %v2185 = vadd.f32 0.0, %v2184
      %v2186 = vpop.f32.mrb[0].mxu0
      %v2187 = vpop.f32.mrb[0].mxu0
      %v2188 = vadd.f32 0.0, %v2187
      %v2189 = vpop.f32.mrb[0].mxu0
      %2190 = vmatprep.mubr.bf16.mxu0 0
      %2191 = vmatmul.mubr.bf16.gmra.mrb[0].mxu0 %v1722
      %v2192 = vpop.f32.mrb[0].mxu0
      %v2193 = vadd.f32 0.0, %v2192
      %v2194 = vpop.f32.mrb[0].mxu0
      %v2195 = vpop.f32.mrb[0].mxu0
      %v2196 = vadd.f32 0.0, %v2195
      %v2197 = vpop.f32.mrb[0].mxu0
      %2198 = vmatprep.mubr.bf16.mxu0 0
      %2199 = vmatmul.mubr.bf16.gmra.mrb[0].mxu0 %v1724
      %v2200 = vpop.f32.mrb[0].mxu0
      %v2201 = vadd.f32 0.0, %v2200
      %v2202 = vpop.f32.mrb[0].mxu0
      %v2203 = vpop.f32.mrb[0].mxu0
      %v2204 = vadd.f32 0.0, %v2203
      %v2205 = vpop.f32.mrb[0].mxu0
      %2206 = vmatprep.mubr.bf16.mxu0 0
      %2207 = vmatmul.mubr.bf16.gmra.mrb[0].mxu0 %v1726
      %v2208 = vpop.f32.mrb[0].mxu0
      %v2209 = vadd.f32 0.0, %v2208
      %v2210 = vpop.f32.mrb[0].mxu0
      %v2211 = vpop.f32.mrb[0].mxu0
      %v2212 = vadd.f32 0.0, %v2211
      %v2213 = vpop.f32.mrb[0].mxu0
      %2214 = vmatprep.mubr.bf16.mxu0 0
      %2215 = vmatmul.mubr.bf16.gmra.mrb[0].mxu0 %v1728
      %v2216 = vpop.f32.mrb[0].mxu0
      %v2217 = vadd.f32 0.0, %v2216
      %v2218 = vpop.f32.mrb[0].mxu0
      %v2219 = vpop.f32.mrb[0].mxu0
      %v2220 = vadd.f32 0.0, %v2219
      %v2221 = vpop.f32.mrb[0].mxu0
      %2222 = vmatprep.mubr.bf16.mxu0 0
      %2223 = vmatmul.mubr.bf16.gmra.mrb[0].mxu0 %v1730
      %v2224 = vpop.f32.mrb[0].mxu0
      %v2225 = vadd.f32 0.0, %v2224
      %v2226 = vpop.f32.mrb[0].mxu0
      %v2227 = vpop.f32.mrb[0].mxu0
      %v2228 = vadd.f32 0.0, %v2227
      %v2229 = vpop.f32.mrb[0].mxu0
      %2230 = vmatprep.mubr.bf16.mxu0 0
      %2231 = vmatmul.mubr.bf16.gmra.mrb[0].mxu0 %v1732
      %v2232 = vpop.f32.mrb[0].mxu0
      %v2233 = vadd.f32 0.0, %v2232
      %v2234 = vpop.f32.mrb[0].mxu0
      %v2235 = vpop.f32.mrb[0].mxu0
      %v2236 = vadd.f32 0.0, %v2235
      %v2237 = vpop.f32.mrb[0].mxu0
      %2238 = vmatprep.mubr.bf16.mxu0 0
      %2239 = vmatmul.mubr.bf16.gmra.mrb[0].mxu0 %v1734
      %v2240 = vpop.f32.mrb[0].mxu0
      %v2241 = vadd.f32 0.0, %v2240
      %v2242 = vpop.f32.mrb[0].mxu0
      %v2243 = vpop.f32.mrb[0].mxu0
      %v2244 = vadd.f32 0.0, %v2243
      %v2245 = vpop.f32.mrb[0].mxu0
      %2246 = vmatprep.mubr.bf16.mxu0 0
      %2247 = vmatmul.mubr.bf16.gmra.mrb[0].mxu0 %v2089
      %v2248 = vpop.f32.mrb[0].mxu0
      %v2249 = vadd.f32 0.0, %v2248
      %v2250 = vpop.f32.mrb[0].mxu0
      %v2251 = vpop.f32.mrb[0].mxu0
      %v2252 = vadd.f32 0.0, %v2251
      %v2253 = vpop.f32.mrb[0].mxu0
      %2254 = vdwg.mxu0
      %v2255 = vadd.f32 %v1950, %v2129
      %v2256 = vadd.f32 %v1953, %v2132
      %v2257 = vadd.f32 %v1958, %v2137
      %v2258 = vadd.f32 %v1961, %v2140
      %v2259 = vadd.f32 %v1966, %v2145
      %v2260 = vadd.f32 %v1969, %v2148
      %v2261 = vadd.f32 %v1974, %v2153
      %v2262 = vadd.f32 %v1977, %v2156
      %v2263 = vadd.f32 %v1982, %v2161
      %v2264 = vadd.f32 %v1985, %v2164
      %v2265 = vadd.f32 %v1990, %v2169
      %v2266 = vadd.f32 %v1993, %v2172
      %v2267 = vadd.f32 %v1998, %v2177
      %v2268 = vadd.f32 %v2001, %v2180
      %v2269 = vadd.f32 %v2006, %v2185
      %v2270 = vadd.f32 %v2009, %v2188
      %v2271 = vadd.f32 %v2014, %v2193
      %v2272 = vadd.f32 %v2017, %v2196
      %v2273 = vadd.f32 %v2022, %v2201
      %v2274 = vadd.f32 %v2025, %v2204
      %v2275 = vadd.f32 %v2030, %v2209
      %v2276 = vadd.f32 %v2033, %v2212
      %v2277 = vadd.f32 %v2038, %v2217
      %v2278 = vadd.f32 %v2041, %v2220
      %v2279 = vadd.f32 %v2046, %v2225
      %v2280 = vadd.f32 %v2049, %v2228
      %v2281 = vadd.f32 %v2054, %v2233
      %v2282 = vadd.f32 %v2057, %v2236
      %v2283 = vadd.f32 %v2062, %v2241
      %v2284 = vadd.f32 %v2065, %v2244
      %v2285 = vadd.f32 %v2070, %v2249
      %v2286 = vadd.f32 %v2073, %v2252
      %v2287 = vld [vmem:[%s340 + $0x18] sm:$0xf]
      %v2288 = vld [vmem:[%s340 + $0x1c] sm:$0xf]
      %v2289 = vld [vmem:[%s340 + $0x20] sm:$0x1]
      %v2290 = vld [vmem:[%s340 + $0x24] sm:$0xf]
      %v2291 = vld [vmem:[%s340 + $0x28] sm:$0xf]
      %v2292 = vld [vmem:[%s340 + $0x2c] sm:$0x1]
      %v2293 = vld [vmem:[%s340 + $0x30] sm:$0xf]
      %v2294 = vld [vmem:[%s340 + $0x34] sm:$0xf]
      %v2295 = vld [vmem:[%s340 + $0x38] sm:$0x1]
      %v2296 = vld [vmem:[%s340 + $0x3c] sm:$0xf]
      %v2297 = vld [vmem:[%s340 + $0x40] sm:$0xf]
      %v2298 = vld [vmem:[%s340 + $0x44] sm:$0x1]
      %v2299 = vld [vmem:[%s340 + $0x48] sm:$0xf]
      %v2300 = vld [vmem:[%s340 + $0x4c] sm:$0xf]
      %v2301 = vld [vmem:[%s340 + $0x50] sm:$0x1]
      %v2302 = vld [vmem:[%s340 + $0x54] sm:$0xf]
      %v2303 = vld [vmem:[%s340 + $0x58] sm:$0xf]
      %v2304 = vld [vmem:[%s340 + $0x5c] sm:$0x1]
      %v2305 = vld [vmem:[%s340 + $0x60] sm:$0xf]
      %v2306 = vld [vmem:[%s340 + $0x64] sm:$0xf]
      %v2307 = vld [vmem:[%s340 + $0x68] sm:$0x1]
      %v2308 = vld [vmem:[%s340 + $0x6c] sm:$0xf]
      %v2309 = vld [vmem:[%s340 + $0x70] sm:$0xf]
      %v2310 = vld [vmem:[%s340 + $0x74] sm:$0x1]
      %v2311 = vld [vmem:[%s340 + $0x78] sm:$0xf]
      %v2312 = vld [vmem:[%s340 + $0x7c] sm:$0xf]
      %v2313 = vld [vmem:[%s340 + $0x80] sm:$0x1]
      %v2314 = vld [vmem:[%s340 + $0x84] sm:$0xf]
      %v2315 = vld [vmem:[%s340 + $0x88] sm:$0xf]
      %v2316 = vld [vmem:[%s340 + $0x8c] sm:$0x1]
      %v2317 = vld [vmem:[%s340 + $0x90] sm:$0xf]
      %v2318 = vld [vmem:[%s340 + $0x94] sm:$0xf]
      %v2319 = vld [vmem:[%s340 + $0x98] sm:$0x1]
      %v2320 = vld [vmem:[%s340 + $0x9c] sm:$0xf]
      %v2321 = vld [vmem:[%s340 + $0xa0] sm:$0xf]
      %v2322 = vld [vmem:[%s340 + $0xa4] sm:$0x1]
      %v2323 = vld [vmem:[%s340 + $0xa8] sm:$0xf]
      %v2324 = vld [vmem:[%s340 + $0xac] sm:$0xf]
      %v2325 = vld [vmem:[%s340 + $0xb0] sm:$0x1]
      %v2326 = vld [vmem:[%s340 + $0xb4] sm:$0xf]
      %v2327 = vld [vmem:[%s340 + $0xb8] sm:$0xf]
      %v2328 = vld [vmem:[%s340 + $0xbc] sm:$0x1]
      %v2329 = vld [vmem:[%s340 + $0xc0] sm:$0xf]
      %v2330 = vld [vmem:[%s340 + $0xc4] sm:$0xf]
      %v2331 = vld [vmem:[%s340 + $0xc8] sm:$0x1]
      %v2332 = vld [vmem:[%s340 + $0xcc] sm:$0xf]
      %v2333 = vld [vmem:[%s340 + $0xd0] sm:$0xf]
      %v2334 = vld [vmem:[%s340 + $0xd4] sm:$0x1]
      %vm2335 = vsmask.f32 3328
      %vm2336 = vsmask.f32 7440
      %vm2337 = vmor %vm2335, %vm2336
      %v2339 = vshrl.u32 %v2287, 16
      %v2341 = vrot.slane %v2339, 4
      %v2342 = vshll.u32 %v2287, 16
      %v2344 = vrot.slane %v2342, 5
      %v2345 = vor.u32 %v2341, %v2344
      %v2346 = vrot.slane %v2345, 4
      %v2348 = vshll.u32 %v2288, 16
      %v2350 = vrot.slane %v2348, 5
      %v2351 = vsel %vm2337, %v2346, %v2350
      %v2352 = vshrl.u32 %v2288, 16
      %v2354 = vrot.slane %v2352, 4
      %v2355 = vor.u32 %v2354, %v2350
      %v2356 = vrot.slane %v2355, 4
      %v2358 = vshll.u32 %v2289, 16
      %v2360 = vrot.slane %v2358, 5
      %v2361 = vsel %vm2337, %v2356, %v2360
      %v2363 = vshrl.u32 %v2290, 16
      %v2365 = vrot.slane %v2363, 4
      %v2366 = vshll.u32 %v2290, 16
      %v2368 = vrot.slane %v2366, 5
      %v2369 = vor.u32 %v2365, %v2368
      %v2370 = vrot.slane %v2369, 4
      %v2372 = vshll.u32 %v2291, 16
      %v2374 = vrot.slane %v2372, 5
      %v2375 = vsel %vm2337, %v2370, %v2374
      %v2376 = vshrl.u32 %v2291, 16
      %v2378 = vrot.slane %v2376, 4
      %v2379 = vor.u32 %v2378, %v2374
      %v2380 = vrot.slane %v2379, 4
      %v2382 = vshll.u32 %v2292, 16
      %v2384 = vrot.slane %v2382, 5
      %v2385 = vsel %vm2337, %v2380, %v2384
      %v2387 = vshrl.u32 %v2293, 16
      %v2389 = vrot.slane %v2387, 4
      %v2390 = vshll.u32 %v2293, 16
      %v2392 = vrot.slane %v2390, 5
      %v2393 = vor.u32 %v2389, %v2392
      %v2394 = vrot.slane %v2393, 4
      %v2396 = vshll.u32 %v2294, 16
      %v2398 = vrot.slane %v2396, 5
      %v2399 = vsel %vm2337, %v2394, %v2398
      %v2400 = vshrl.u32 %v2294, 16
      %v2402 = vrot.slane %v2400, 4
      %v2403 = vor.u32 %v2402, %v2398
      %v2404 = vrot.slane %v2403, 4
      %v2406 = vshll.u32 %v2295, 16
      %v2408 = vrot.slane %v2406, 5
      %v2409 = vsel %vm2337, %v2404, %v2408
      %v2411 = vshrl.u32 %v2296, 16
      %v2413 = vrot.slane %v2411, 4
      %v2414 = vshll.u32 %v2296, 16
      %v2416 = vrot.slane %v2414, 5
      %v2417 = vor.u32 %v2413, %v2416
      %v2418 = vrot.slane %v2417, 4
      %v2420 = vshll.u32 %v2297, 16
      %v2422 = vrot.slane %v2420, 5
      %v2423 = vsel %vm2337, %v2418, %v2422
      %v2424 = vshrl.u32 %v2297, 16
      %v2426 = vrot.slane %v2424, 4
      %v2427 = vor.u32 %v2426, %v2422
      %v2428 = vrot.slane %v2427, 4
      %v2430 = vshll.u32 %v2298, 16
      %v2432 = vrot.slane %v2430, 5
      %v2433 = vsel %vm2337, %v2428, %v2432
      %v2435 = vshrl.u32 %v2299, 16
      %v2437 = vrot.slane %v2435, 4
      %v2438 = vshll.u32 %v2299, 16
      %v2440 = vrot.slane %v2438, 5
      %v2441 = vor.u32 %v2437, %v2440
      %v2442 = vrot.slane %v2441, 4
      %v2444 = vshll.u32 %v2300, 16
      %v2446 = vrot.slane %v2444, 5
      %v2447 = vsel %vm2337, %v2442, %v2446
      %v2448 = vshrl.u32 %v2300, 16
      %v2450 = vrot.slane %v2448, 4
      %v2451 = vor.u32 %v2450, %v2446
      %v2452 = vrot.slane %v2451, 4
      %v2454 = vshll.u32 %v2301, 16
      %v2456 = vrot.slane %v2454, 5
      %v2457 = vsel %vm2337, %v2452, %v2456
      %v2459 = vshrl.u32 %v2302, 16
      %v2461 = vrot.slane %v2459, 4
      %v2462 = vshll.u32 %v2302, 16
      %v2464 = vrot.slane %v2462, 5
      %v2465 = vor.u32 %v2461, %v2464
      %v2466 = vrot.slane %v2465, 4
      %v2468 = vshll.u32 %v2303, 16
      %v2470 = vrot.slane %v2468, 5
      %v2471 = vsel %vm2337, %v2466, %v2470
      %v2472 = vshrl.u32 %v2303, 16
      %v2474 = vrot.slane %v2472, 4
      %v2475 = vor.u32 %v2474, %v2470
      %v2476 = vrot.slane %v2475, 4
      %v2478 = vshll.u32 %v2304, 16
      %v2480 = vrot.slane %v2478, 5
      %v2481 = vsel %vm2337, %v2476, %v2480
      %v2483 = vshrl.u32 %v2305, 16
      %v2485 = vrot.slane %v2483, 4
      %v2486 = vshll.u32 %v2305, 16
      %v2488 = vrot.slane %v2486, 5
      %v2489 = vor.u32 %v2485, %v2488
      %v2490 = vrot.slane %v2489, 4
      %v2492 = vshll.u32 %v2306, 16
      %v2494 = vrot.slane %v2492, 5
      %v2495 = vsel %vm2337, %v2490, %v2494
      %v2496 = vshrl.u32 %v2306, 16
      %v2498 = vrot.slane %v2496, 4
      %v2499 = vor.u32 %v2498, %v2494
      %v2500 = vrot.slane %v2499, 4
      %v2502 = vshll.u32 %v2307, 16
      %v2504 = vrot.slane %v2502, 5
      %v2505 = vsel %vm2337, %v2500, %v2504
      %v2507 = vshrl.u32 %v2308, 16
      %v2509 = vrot.slane %v2507, 4
      %v2510 = vshll.u32 %v2308, 16
      %v2512 = vrot.slane %v2510, 5
      %v2513 = vor.u32 %v2509, %v2512
      %v2514 = vrot.slane %v2513, 4
      %v2516 = vshll.u32 %v2309, 16
      %v2518 = vrot.slane %v2516, 5
      %v2519 = vsel %vm2337, %v2514, %v2518
      %v2520 = vshrl.u32 %v2309, 16
      %v2522 = vrot.slane %v2520, 4
      %v2523 = vor.u32 %v2522, %v2518
      %v2524 = vrot.slane %v2523, 4
      %v2526 = vshll.u32 %v2310, 16
      %v2528 = vrot.slane %v2526, 5
      %v2529 = vsel %vm2337, %v2524, %v2528
      %v2531 = vshrl.u32 %v2311, 16
      %v2533 = vrot.slane %v2531, 4
      %v2534 = vshll.u32 %v2311, 16
      %v2536 = vrot.slane %v2534, 5
      %v2537 = vor.u32 %v2533, %v2536
      %v2538 = vrot.slane %v2537, 4
      %v2540 = vshll.u32 %v2312, 16
      %v2542 = vrot.slane %v2540, 5
      %v2543 = vsel %vm2337, %v2538, %v2542
      %v2544 = vshrl.u32 %v2312, 16
      %v2546 = vrot.slane %v2544, 4
      %v2547 = vor.u32 %v2546, %v2542
      %v2548 = vrot.slane %v2547, 4
      %v2550 = vshll.u32 %v2313, 16
      %v2552 = vrot.slane %v2550, 5
      %v2553 = vsel %vm2337, %v2548, %v2552
      %v2555 = vshrl.u32 %v2314, 16
      %v2557 = vrot.slane %v2555, 4
      %v2558 = vshll.u32 %v2314, 16
      %v2560 = vrot.slane %v2558, 5
      %v2561 = vor.u32 %v2557, %v2560
      %v2562 = vrot.slane %v2561, 4
      %v2564 = vshll.u32 %v2315, 16
      %v2566 = vrot.slane %v2564, 5
      %v2567 = vsel %vm2337, %v2562, %v2566
      %v2568 = vshrl.u32 %v2315, 16
      %v2570 = vrot.slane %v2568, 4
      %v2571 = vor.u32 %v2570, %v2566
      %v2572 = vrot.slane %v2571, 4
      %v2574 = vshll.u32 %v2316, 16
      %v2576 = vrot.slane %v2574, 5
      %v2577 = vsel %vm2337, %v2572, %v2576
      %v2579 = vshrl.u32 %v2317, 16
      %v2581 = vrot.slane %v2579, 4
      %v2582 = vshll.u32 %v2317, 16
      %v2584 = vrot.slane %v2582, 5
      %v2585 = vor.u32 %v2581, %v2584
      %v2586 = vrot.slane %v2585, 4
      %v2588 = vshll.u32 %v2318, 16
      %v2590 = vrot.slane %v2588, 5
      %v2591 = vsel %vm2337, %v2586, %v2590
      %v2592 = vshrl.u32 %v2318, 16
      %v2594 = vrot.slane %v2592, 4
      %v2595 = vor.u32 %v2594, %v2590
      %v2596 = vrot.slane %v2595, 4
      %v2598 = vshll.u32 %v2319, 16
      %v2600 = vrot.slane %v2598, 5
      %v2601 = vsel %vm2337, %v2596, %v2600
      %v2603 = vshrl.u32 %v2320, 16
      %v2605 = vrot.slane %v2603, 4
      %v2606 = vshll.u32 %v2320, 16
      %v2608 = vrot.slane %v2606, 5
      %v2609 = vor.u32 %v2605, %v2608
      %v2610 = vrot.slane %v2609, 4
      %v2612 = vshll.u32 %v2321, 16
      %v2614 = vrot.slane %v2612, 5
      %v2615 = vsel %vm2337, %v2610, %v2614
      %v2616 = vshrl.u32 %v2321, 16
      %v2618 = vrot.slane %v2616, 4
      %v2619 = vor.u32 %v2618, %v2614
      %v2620 = vrot.slane %v2619, 4
      %v2622 = vshll.u32 %v2322, 16
      %v2624 = vrot.slane %v2622, 5
      %v2625 = vsel %vm2337, %v2620, %v2624
      %v2627 = vshrl.u32 %v2323, 16
      %v2629 = vrot.slane %v2627, 4
      %v2630 = vshll.u32 %v2323, 16
      %v2632 = vrot.slane %v2630, 5
      %v2633 = vor.u32 %v2629, %v2632
      %v2634 = vrot.slane %v2633, 4
      %v2636 = vshll.u32 %v2324, 16
      %v2638 = vrot.slane %v2636, 5
      %v2639 = vsel %vm2337, %v2634, %v2638
      %v2640 = vshrl.u32 %v2324, 16
      %v2642 = vrot.slane %v2640, 4
      %v2643 = vor.u32 %v2642, %v2638
      %v2644 = vrot.slane %v2643, 4
      %v2646 = vshll.u32 %v2325, 16
      %v2648 = vrot.slane %v2646, 5
      %v2649 = vsel %vm2337, %v2644, %v2648
      %v2651 = vshrl.u32 %v2326, 16
      %v2653 = vrot.slane %v2651, 4
      %v2654 = vshll.u32 %v2326, 16
      %v2656 = vrot.slane %v2654, 5
      %v2657 = vor.u32 %v2653, %v2656
      %v2658 = vrot.slane %v2657, 4
      %v2660 = vshll.u32 %v2327, 16
      %v2662 = vrot.slane %v2660, 5
      %v2663 = vsel %vm2337, %v2658, %v2662
      %v2664 = vshrl.u32 %v2327, 16
      %v2666 = vrot.slane %v2664, 4
      %v2667 = vor.u32 %v2666, %v2662
      %v2668 = vrot.slane %v2667, 4
      %v2670 = vshll.u32 %v2328, 16
      %v2672 = vrot.slane %v2670, 5
      %v2673 = vsel %vm2337, %v2668, %v2672
      %v2675 = vshrl.u32 %v2329, 16
      %v2677 = vrot.slane %v2675, 4
      %v2678 = vshll.u32 %v2329, 16
      %v2680 = vrot.slane %v2678, 5
      %v2681 = vor.u32 %v2677, %v2680
      %v2682 = vrot.slane %v2681, 4
      %v2684 = vshll.u32 %v2330, 16
      %v2686 = vrot.slane %v2684, 5
      %v2687 = vsel %vm2337, %v2682, %v2686
      %v2688 = vshrl.u32 %v2330, 16
      %v2690 = vrot.slane %v2688, 4
      %v2691 = vor.u32 %v2690, %v2686
      %v2692 = vrot.slane %v2691, 4
      %v2694 = vshll.u32 %v2331, 16
      %v2696 = vrot.slane %v2694, 5
      %v2697 = vsel %vm2337, %v2692, %v2696
      %v2699 = vshrl.u32 %v2332, 16
      %v2701 = vrot.slane %v2699, 4
      %v2702 = vshll.u32 %v2332, 16
      %v2704 = vrot.slane %v2702, 5
      %v2705 = vor.u32 %v2701, %v2704
      %v2706 = vrot.slane %v2705, 4
      %v2708 = vshll.u32 %v2333, 16
      %v2710 = vrot.slane %v2708, 5
      %v2711 = vsel %vm2337, %v2706, %v2710
      %v2712 = vshrl.u32 %v2333, 16
      %v2714 = vrot.slane %v2712, 4
      %v2715 = vor.u32 %v2714, %v2710
      %v2716 = vrot.slane %v2715, 4
      %v2718 = vshll.u32 %v2334, 16
      %v2720 = vrot.slane %v2718, 5
      %v2721 = vsel %vm2337, %v2716, %v2720
      %v2722 = vld [vmem:[%s3] sm:$0x3]
      %v2723 = vunpack.c.l.b16 %v2351
      %v2724 = vunpack.c.l.b16 %v2361
      %v2725 = vunpack.c.l.b16 %v2375
      %v2726 = vunpack.c.l.b16 %v2385
      %v2727 = vunpack.c.l.b16 %v2399
      %v2728 = vunpack.c.l.b16 %v2409
      %v2729 = vunpack.c.l.b16 %v2423
      %v2730 = vunpack.c.l.b16 %v2433
      %v2731 = vunpack.c.l.b16 %v2447
      %v2732 = vunpack.c.l.b16 %v2457
      %v2733 = vunpack.c.l.b16 %v2471
      %v2734 = vunpack.c.l.b16 %v2481
      %v2735 = vunpack.c.l.b16 %v2495
      %v2736 = vunpack.c.l.b16 %v2505
      %v2737 = vunpack.c.l.b16 %v2519
      %v2738 = vunpack.c.l.b16 %v2529
      %v2739 = vunpack.c.l.b16 %v2543
      %v2740 = vunpack.c.l.b16 %v2553
      %v2741 = vunpack.c.l.b16 %v2567
      %v2742 = vunpack.c.l.b16 %v2577
      %v2743 = vunpack.c.l.b16 %v2591
      %v2744 = vunpack.c.l.b16 %v2601
      %v2745 = vunpack.c.l.b16 %v2615
      %v2746 = vunpack.c.l.b16 %v2625
      %v2747 = vunpack.c.l.b16 %v2639
      %v2748 = vunpack.c.l.b16 %v2649
      %v2749 = vunpack.c.l.b16 %v2663
      %v2750 = vunpack.c.l.b16 %v2673
      %v2751 = vunpack.c.l.b16 %v2687
      %v2752 = vunpack.c.l.b16 %v2697
      %v2753 = vunpack.c.l.b16 %v2711
      %v2754 = vunpack.c.l.b16 %v2721
      %v2755 = vpack.c.b16 %v2724, %v2723
      %v2756 = vpack.c.b16 %v2726, %v2725
      %v2757 = vpack.c.b16 %v2728, %v2727
      %v2758 = vpack.c.b16 %v2730, %v2729
      %v2759 = vpack.c.b16 %v2732, %v2731
      %v2760 = vpack.c.b16 %v2734, %v2733
      %v2761 = vpack.c.b16 %v2736, %v2735
      %v2762 = vpack.c.b16 %v2738, %v2737
      %v2763 = vpack.c.b16 %v2740, %v2739
      %v2764 = vpack.c.b16 %v2742, %v2741
      %v2765 = vpack.c.b16 %v2744, %v2743
      %v2766 = vpack.c.b16 %v2746, %v2745
      %v2767 = vpack.c.b16 %v2748, %v2747
      %v2768 = vpack.c.b16 %v2750, %v2749
      %v2769 = vpack.c.b16 %v2752, %v2751
      %v2770 = vpack.c.b16 %v2754, %v2753
      %vm2771 = vcmask 31744
      %v2773 = vsel %vm2771, %v2755, 0
      %v2776 = vsel %vm2771, %v2756, 0
      %v2779 = vsel %vm2771, %v2757, 0
      %v2782 = vsel %vm2771, %v2758, 0
      %v2785 = vsel %vm2771, %v2759, 0
      %v2788 = vsel %vm2771, %v2760, 0
      %v2791 = vsel %vm2771, %v2761, 0
      %v2794 = vsel %vm2771, %v2762, 0
      %v2797 = vsel %vm2771, %v2763, 0
      %v2800 = vsel %vm2771, %v2764, 0
      %v2803 = vsel %vm2771, %v2765, 0
      %v2806 = vsel %vm2771, %v2766, 0
      %v2809 = vsel %vm2771, %v2767, 0
      %v2812 = vsel %vm2771, %v2768, 0
      %v2815 = vsel %vm2771, %v2769, 0
      %v2818 = vsel %vm2771, %v2770, 0
      %vm2820 = vcmask 1041408
      %v2822 = vsel %vm2820, %v2722, 0
      %2824 = vmatprep.subr.bf16.mxu0 0
      %2825 = vmatpush1.bf16.msra.mxu0 %v2822
      %2826 = vmatprep.subr.bf16.mxu0 0
      %2827 = vmatpush1.bf16.msra.mxu0 0
      %2828 = vmatprep.subr.bf16.mxu0 0
      %2829 = vmatpush1.bf16.msra.mxu0 0
      %2830 = vmatprep.subr.bf16.mxu0 0
      %2831 = vmatpush1.bf16.msra.mxu0 0
      %2832 = vmatprep.subr.bf16.mxu0 0
      %2833 = vmatpush1.bf16.msra.mxu0 0
      %2834 = vmatprep.subr.bf16.mxu0 0
      %2835 = vmatpush1.bf16.msra.mxu0 0
      %2836 = vmatprep.subr.bf16.mxu0 0
      %2837 = vmatpush1.bf16.msra.mxu0 0
      %2838 = vmatprep.subr.bf16.mxu0 0
      %2839 = vmatpush1.bf16.msra.mxu0 0
      %2840 = vmatprep.subr.bf16.mxu0 0
      %2841 = vmatpush1.bf16.msra.mxu0 0
      %2842 = vmatprep.subr.bf16.mxu0 0
      %2843 = vmatpush1.bf16.msra.mxu0 0
      %2844 = vmatprep.subr.bf16.mxu0 0
      %2845 = vmatpush1.bf16.msra.mxu0 0
      %2846 = vmatprep.subr.bf16.mxu0 0
      %2847 = vmatpush1.bf16.msra.mxu0 0
      %2848 = vmatprep.subr.bf16.mxu0 0
      %2849 = vmatpush1.bf16.msra.mxu0 0
      %2850 = vmatprep.subr.bf16.mxu0 0
      %2851 = vmatpush1.bf16.msra.mxu0 0
      %2852 = vmatprep.subr.bf16.mxu0 0
      %2853 = vmatpush1.bf16.msra.mxu0 0
      %2854 = vmatprep.subr.bf16.mxu0 0
      %2855 = vmatpush1.bf16.msra.mxu0 0
      %2856 = vmatprep.mubr.bf16.mxu0 0
      %2857 = vmatmul.mubr.bf16.gmra.mrb[0].mxu0 %v2773
      %v2858 = vpop.f32.mrb[0].mxu0
      %v2859 = vadd.f32 0.0, %v2858
      %v2860 = vpop.f32.mrb[0].mxu0
      %v2861 = vpop.f32.mrb[0].mxu0
      %v2862 = vadd.f32 0.0, %v2861
      %v2863 = vpop.f32.mrb[0].mxu0
      %2864 = vmatprep.mubr.bf16.mxu0 0
      %2865 = vmatmul.mubr.bf16.gmra.mrb[0].mxu0 %v2776
      %v2866 = vpop.f32.mrb[0].mxu0
      %v2867 = vadd.f32 0.0, %v2866
      %v2868 = vpop.f32.mrb[0].mxu0
      %v2869 = vpop.f32.mrb[0].mxu0
      %v2870 = vadd.f32 0.0, %v2869
      %v2871 = vpop.f32.mrb[0].mxu0
      %2872 = vmatprep.mubr.bf16.mxu0 0
      %2873 = vmatmul.mubr.bf16.gmra.mrb[0].mxu0 %v2779
      %v2874 = vpop.f32.mrb[0].mxu0
      %v2875 = vadd.f32 0.0, %v2874
      %v2876 = vpop.f32.mrb[0].mxu0
      %v2877 = vpop.f32.mrb[0].mxu0
      %v2878 = vadd.f32 0.0, %v2877
      %v2879 = vpop.f32.mrb[0].mxu0
      %2880 = vmatprep.mubr.bf16.mxu0 0
      %2881 = vmatmul.mubr.bf16.gmra.mrb[0].mxu0 %v2782
      %v2882 = vpop.f32.mrb[0].mxu0
      %v2883 = vadd.f32 0.0, %v2882
      %v2884 = vpop.f32.mrb[0].mxu0
      %v2885 = vpop.f32.mrb[0].mxu0
      %v2886 = vadd.f32 0.0, %v2885
      %v2887 = vpop.f32.mrb[0].mxu0
      %2888 = vmatprep.mubr.bf16.mxu0 0
      %2889 = vmatmul.mubr.bf16.gmra.mrb[0].mxu0 %v2785
      %v2890 = vpop.f32.mrb[0].mxu0
      %v2891 = vadd.f32 0.0, %v2890
      %v2892 = vpop.f32.mrb[0].mxu0
      %v2893 = vpop.f32.mrb[0].mxu0
      %v2894 = vadd.f32 0.0, %v2893
      %v2895 = vpop.f32.mrb[0].mxu0
      %2896 = vmatprep.mubr.bf16.mxu0 0
      %2897 = vmatmul.mubr.bf16.gmra.mrb[0].mxu0 %v2788
      %v2898 = vpop.f32.mrb[0].mxu0
      %v2899 = vadd.f32 0.0, %v2898
      %v2900 = vpop.f32.mrb[0].mxu0
      %v2901 = vpop.f32.mrb[0].mxu0
      %v2902 = vadd.f32 0.0, %v2901
      %v2903 = vpop.f32.mrb[0].mxu0
      %2904 = vmatprep.mubr.bf16.mxu0 0
      %2905 = vmatmul.mubr.bf16.gmra.mrb[0].mxu0 %v2791
      %v2906 = vpop.f32.mrb[0].mxu0
      %v2907 = vadd.f32 0.0, %v2906
      %v2908 = vpop.f32.mrb[0].mxu0
      %v2909 = vpop.f32.mrb[0].mxu0
      %v2910 = vadd.f32 0.0, %v2909
      %v2911 = vpop.f32.mrb[0].mxu0
      %2912 = vmatprep.mubr.bf16.mxu0 0
      %2913 = vmatmul.mubr.bf16.gmra.mrb[0].mxu0 %v2794
      %v2914 = vpop.f32.mrb[0].mxu0
      %v2915 = vadd.f32 0.0, %v2914
      %v2916 = vpop.f32.mrb[0].mxu0
      %v2917 = vpop.f32.mrb[0].mxu0
      %v2918 = vadd.f32 0.0, %v2917
      %v2919 = vpop.f32.mrb[0].mxu0
      %2920 = vmatprep.mubr.bf16.mxu0 0
      %2921 = vmatmul.mubr.bf16.gmra.mrb[0].mxu0 %v2797
      %v2922 = vpop.f32.mrb[0].mxu0
      %v2923 = vadd.f32 0.0, %v2922
      %v2924 = vpop.f32.mrb[0].mxu0
      %v2925 = vpop.f32.mrb[0].mxu0
      %v2926 = vadd.f32 0.0, %v2925
      %v2927 = vpop.f32.mrb[0].mxu0
      %2928 = vmatprep.mubr.bf16.mxu0 0
      %2929 = vmatmul.mubr.bf16.gmra.mrb[0].mxu0 %v2800
      %v2930 = vpop.f32.mrb[0].mxu0
      %v2931 = vadd.f32 0.0, %v2930
      %v2932 = vpop.f32.mrb[0].mxu0
      %v2933 = vpop.f32.mrb[0].mxu0
      %v2934 = vadd.f32 0.0, %v2933
      %v2935 = vpop.f32.mrb[0].mxu0
      %2936 = vmatprep.mubr.bf16.mxu0 0
      %2937 = vmatmul.mubr.bf16.gmra.mrb[0].mxu0 %v2803
      %v2938 = vpop.f32.mrb[0].mxu0
      %v2939 = vadd.f32 0.0, %v2938
      %v2940 = vpop.f32.mrb[0].mxu0
      %v2941 = vpop.f32.mrb[0].mxu0
      %v2942 = vadd.f32 0.0, %v2941
      %v2943 = vpop.f32.mrb[0].mxu0
      %2944 = vmatprep.mubr.bf16.mxu0 0
      %2945 = vmatmul.mubr.bf16.gmra.mrb[0].mxu0 %v2806
      %v2946 = vpop.f32.mrb[0].mxu0
      %v2947 = vadd.f32 0.0, %v2946
      %v2948 = vpop.f32.mrb[0].mxu0
      %v2949 = vpop.f32.mrb[0].mxu0
      %v2950 = vadd.f32 0.0, %v2949
      %v2951 = vpop.f32.mrb[0].mxu0
      %2952 = vmatprep.mubr.bf16.mxu0 0
      %2953 = vmatmul.mubr.bf16.gmra.mrb[0].mxu0 %v2809
      %v2954 = vpop.f32.mrb[0].mxu0
      %v2955 = vadd.f32 0.0, %v2954
      %v2956 = vpop.f32.mrb[0].mxu0
      %v2957 = vpop.f32.mrb[0].mxu0
      %v2958 = vadd.f32 0.0, %v2957
      %v2959 = vpop.f32.mrb[0].mxu0
      %2960 = vmatprep.mubr.bf16.mxu0 0
      %2961 = vmatmul.mubr.bf16.gmra.mrb[0].mxu0 %v2812
      %v2962 = vpop.f32.mrb[0].mxu0
      %v2963 = vadd.f32 0.0, %v2962
      %v2964 = vpop.f32.mrb[0].mxu0
      %v2965 = vpop.f32.mrb[0].mxu0
      %v2966 = vadd.f32 0.0, %v2965
      %v2967 = vpop.f32.mrb[0].mxu0
      %2968 = vmatprep.mubr.bf16.mxu0 0
      %2969 = vmatmul.mubr.bf16.gmra.mrb[0].mxu0 %v2815
      %v2970 = vpop.f32.mrb[0].mxu0
      %v2971 = vadd.f32 0.0, %v2970
      %v2972 = vpop.f32.mrb[0].mxu0
      %v2973 = vpop.f32.mrb[0].mxu0
      %v2974 = vadd.f32 0.0, %v2973
      %v2975 = vpop.f32.mrb[0].mxu0
      %2976 = vmatprep.mubr.bf16.mxu0 0
      %2977 = vmatmul.mubr.bf16.gmra.mrb[0].mxu0 %v2818
      %v2978 = vpop.f32.mrb[0].mxu0
      %v2979 = vadd.f32 0.0, %v2978
      %v2980 = vpop.f32.mrb[0].mxu0
      %v2981 = vpop.f32.mrb[0].mxu0
      %v2982 = vadd.f32 0.0, %v2981
      %v2983 = vpop.f32.mrb[0].mxu0
      %2984 = vdwg.mxu0
      %v2985 = vadd.f32 %v2255, %v2859
      %v2986 = vadd.f32 %v2256, %v2862
      %v2987 = vadd.f32 %v2257, %v2867
      %v2988 = vadd.f32 %v2258, %v2870
      %v2989 = vadd.f32 %v2259, %v2875
      %v2990 = vadd.f32 %v2260, %v2878
      %v2991 = vadd.f32 %v2261, %v2883
      %v2992 = vadd.f32 %v2262, %v2886
      %v2993 = vadd.f32 %v2263, %v2891
      %v2994 = vadd.f32 %v2264, %v2894
      %v2995 = vadd.f32 %v2265, %v2899
      %v2996 = vadd.f32 %v2266, %v2902
      %v2997 = vadd.f32 %v2267, %v2907
      %v2998 = vadd.f32 %v2268, %v2910
      %v2999 = vadd.f32 %v2269, %v2915
      %v3000 = vadd.f32 %v2270, %v2918
      %v3001 = vadd.f32 %v2271, %v2923
      %v3002 = vadd.f32 %v2272, %v2926
      %v3003 = vadd.f32 %v2273, %v2931
      %v3004 = vadd.f32 %v2274, %v2934
      %v3005 = vadd.f32 %v2275, %v2939
      %v3006 = vadd.f32 %v2276, %v2942
      %v3007 = vadd.f32 %v2277, %v2947
      %v3008 = vadd.f32 %v2278, %v2950
      %v3009 = vadd.f32 %v2279, %v2955
      %v3010 = vadd.f32 %v2280, %v2958
      %v3011 = vadd.f32 %v2281, %v2963
      %v3012 = vadd.f32 %v2282, %v2966
      %v3013 = vadd.f32 %v2283, %v2971
      %v3014 = vadd.f32 %v2284, %v2974
      %v3015 = vadd.f32 %v2285, %v2979
      %v3016 = vadd.f32 %v2286, %v2982
      %v3017 = vld [vmem:[%s6] sm:$0x1]
      %v3019 = vlaneseq
      %v3020 = vshrl.u32 %v3019, 7
      %v3021 = vsub.s32 0, %v3020
      %v3022 = vrot.slane %v3017, %v3021
      %v3024 = vadd.f32 %v2985, %v3022
      %v3025 = vadd.f32 %v2986, %v3022
      %v3026 = vadd.f32 %v2987, %v3022
      %v3027 = vadd.f32 %v2988, %v3022
      %v3028 = vadd.f32 %v2989, %v3022
      %v3029 = vadd.f32 %v2990, %v3022
      %v3030 = vadd.f32 %v2991, %v3022
      %v3031 = vadd.f32 %v2992, %v3022
      %v3032 = vadd.f32 %v2993, %v3022
      %v3033 = vadd.f32 %v2994, %v3022
      %v3034 = vadd.f32 %v2995, %v3022
      %v3035 = vadd.f32 %v2996, %v3022
      %v3036 = vadd.f32 %v2997, %v3022
      %v3037 = vadd.f32 %v2998, %v3022
      %v3038 = vadd.f32 %v2999, %v3022
      %v3039 = vadd.f32 %v3000, %v3022
      %v3040 = vadd.f32 %v3001, %v3022
      %v3041 = vadd.f32 %v3002, %v3022
      %v3042 = vadd.f32 %v3003, %v3022
      %v3043 = vadd.f32 %v3004, %v3022
      %v3044 = vadd.f32 %v3005, %v3022
      %v3045 = vadd.f32 %v3006, %v3022
      %v3046 = vadd.f32 %v3007, %v3022
      %v3047 = vadd.f32 %v3008, %v3022
      %v3048 = vadd.f32 %v3009, %v3022
      %v3049 = vadd.f32 %v3010, %v3022
      %v3050 = vadd.f32 %v3011, %v3022
      %v3051 = vadd.f32 %v3012, %v3022
      %v3052 = vadd.f32 %v3013, %v3022
      %v3053 = vadd.f32 %v3014, %v3022
      %v3054 = vadd.f32 %v3015, %v3022
      %v3055 = vadd.f32 %v3016, %v3022
      %3056 = vst.msk [vmem:[%s350] sm:$0xff] %vm1613, %v3024
      %3057 = vst.msk [vmem:[%s350 + $0x8] sm:$0xff] %vm1613, %v3025
      %3058 = vst.msk [vmem:[%s350 + $0x10] sm:$0xff] %vm1613, %v3026
      %3059 = vst.msk [vmem:[%s350 + $0x18] sm:$0xff] %vm1613, %v3027
      %3060 = vst.msk [vmem:[%s350 + $0x20] sm:$0xff] %vm1613, %v3028
      %3061 = vst.msk [vmem:[%s350 + $0x28] sm:$0xff] %vm1613, %v3029
      %3062 = vst.msk [vmem:[%s350 + $0x30] sm:$0xff] %vm1613, %v3030
      %3063 = vst.msk [vmem:[%s350 + $0x38] sm:$0xff] %vm1613, %v3031
      %3064 = vst.msk [vmem:[%s350 + $0x40] sm:$0xff] %vm1613, %v3032
      %3065 = vst.msk [vmem:[%s350 + $0x48] sm:$0xff] %vm1613, %v3033
      %3066 = vst.msk [vmem:[%s350 + $0x50] sm:$0xff] %vm1613, %v3034
      %3067 = vst.msk [vmem:[%s350 + $0x58] sm:$0xff] %vm1613, %v3035
      %3068 = vst.msk [vmem:[%s350 + $0x60] sm:$0xff] %vm1613, %v3036
      %3069 = vst.msk [vmem:[%s350 + $0x68] sm:$0xff] %vm1613, %v3037
      %3070 = vst.msk [vmem:[%s350 + $0x70] sm:$0xff] %vm1613, %v3038
      %3071 = vst.msk [vmem:[%s350 + $0x78] sm:$0xff] %vm1613, %v3039
      %3072 = vst.msk [vmem:[%s350 + $0x80] sm:$0xff] %vm1613, %v3040
      %3073 = vst.msk [vmem:[%s350 + $0x88] sm:$0xff] %vm1613, %v3041
      %3074 = vst.msk [vmem:[%s350 + $0x90] sm:$0xff] %vm1613, %v3042
      %3075 = vst.msk [vmem:[%s350 + $0x98] sm:$0xff] %vm1613, %v3043
      %3076 = vst.msk [vmem:[%s350 + $0xa0] sm:$0xff] %vm1613, %v3044
      %3077 = vst.msk [vmem:[%s350 + $0xa8] sm:$0xff] %vm1613, %v3045
      %3078 = vst.msk [vmem:[%s350 + $0xb0] sm:$0xff] %vm1613, %v3046
      %3079 = vst.msk [vmem:[%s350 + $0xb8] sm:$0xff] %vm1613, %v3047
      %3080 = vst.msk [vmem:[%s350 + $0xc0] sm:$0xff] %vm1613, %v3048
      %3081 = vst.msk [vmem:[%s350 + $0xc8] sm:$0xff] %vm1613, %v3049
      %3082 = vst.msk [vmem:[%s350 + $0xd0] sm:$0xff] %vm1613, %v3050
      %3083 = vst.msk [vmem:[%s350 + $0xd8] sm:$0xff] %vm1613, %v3051
      %3084 = vst.msk [vmem:[%s350 + $0xe0] sm:$0xff] %vm1613, %v3052
      %3085 = vst.msk [vmem:[%s350 + $0xe8] sm:$0xff] %vm1613, %v3053
      %3086 = vst.msk [vmem:[%s350 + $0xf0] sm:$0xff] %vm1613, %v3054
      %3087 = vst.msk [vmem:[%s350 + $0xf8] sm:$0xff] %vm1613, %v3055
      %s3088 = smul.u32 16, %s23
      %p3089 = scmp.lt.s32.totalorder %s22, 1
      %s3090 = scalar_select %p3089, %s22, 1
      %p3091 = scmp.lt.s32.totalorder %s3088, 15
      %s3092 = scalar_select %p3091, %s3088, 15
      %s3093 = smul.addr %s3092, 2
      %s3094 = smul.addr %s3090, 32
      %s3095 = sadd.s32 %s3093, %s3094
      %s3096 = smul.addr %s3095, 8
      %s3097 = scalar_lea.vmem %s7, %s3096
      // Predicated region
      $region49: #{res_block_forward.5} parent=47 // pred_check
        %p3098 = pneg %p211
      $region50: #{res_block_forward.5} parent=47 // pred_check_branch
        %3100 = sbr.rel (%p3098) target = $region52
      $region51: #{res_block_forward.5} parent=47 // pred_region
        %s3101 = smul.u32 16, %s23
      $region52: #{res_block_forward.5} parent=47 // pred_fallthru
        _
    $region48: #{res_block_forward.5} parent=5 // pred_fallthru
      _
    %p3102 = scmp.le.s32.totalorder 2, %s13
    // Predicated region
    $region53: #{res_block_forward.5} parent=5 // pred_check
      %p3103 = pneg %p3102
    $region54: #{res_block_forward.5} parent=5 // pred_check_branch
      %3105 = sbr.rel (%p3103) target = $region56
    $region55: #{res_block_forward.5} parent=5 // pred_region
      %s3106 = ssub.s32 %s13, 2
      // Predicated region
      $region57: #{res_block_forward.5} parent=55 // pred_check
        %p3107 = pneg %p217
      $region58: #{res_block_forward.5} parent=55 // pred_check_branch
        %3109 = sbr.rel (%p3107) target = $region60
      $region59: #{res_block_forward.5} parent=55 // pred_region
        %s3110 = smul.u32 16, %s25
        %p3111 = scmp.lt.s32.totalorder %s24, 1
        %s3112 = scalar_select %p3111, %s24, 1
        %p3113 = scmp.lt.s32.totalorder %s3110, 15
        %s3114 = scalar_select %p3113, %s3110, 15
        %s3115 = smul.addr %s3114, 2
        %s3116 = smul.addr %s3112, 32
        %s3117 = sadd.s32 %s3115, %s3116
        %s3118 = smul.addr %s3117, 8
        %s3119 = scalar_lea.vmem %s7, %s3118
      $region60: #{res_block_forward.5} parent=55 // pred_fallthru
        _
    $region56: #{res_block_forward.5} parent=5 // pred_fallthru
      _
  $region6: #{res_block_forward.5} parent=0 // loop_footer
    %s17 = sadd.s32 1, %s13
  $region7: #{res_block_forward.5} parent=0 // loop_footer_branch
    %12 = sbr.rel target = $region3
  $region8: #{res_block_forward.5} parent=0 // loop_exit
    _

</llo_original>
